<compile_context>
chip_gen: v5e
topology: v5e:2x2
jax: 0.10.0
libtpu: 0.0.40
codegen_flags: <defaults>
</compile_context>

<pallas_src>
import math

import numpy as np
import jax
import jax.numpy as jnp
from jax import lax
from jax.experimental import pallas as pl
from jax.experimental.pallas import tpu as pltpu


def _round_up(x, m):
    return ((x + m - 1) // m) * m


# ----------------------------------------------------------------------------
# Pallas kernel
# ----------------------------------------------------------------------------
def _make_sinkhorn_kernel(D, N0, N1, Ncp, NcP, Bblk, iters):
    M, Nc = N0 + 1, N1 + 1
    inv_sqrt_d = 1.0 / math.sqrt(D)
    norm = -math.log(N0 + N1)
    log_mu_last = math.log(N1) + norm
    log_nu_last = math.log(N0) + norm

    def kernel(dcat_ref, wp_ref, wzf_ref, wz2_ref, cst_ref, out_ref):
        d = dcat_ref[...]                                  # (Bblk, Ncp, D) bf16
        wp = wp_ref[...]                                   # (D, D) bf16 (pre-transposed)

        b_proj = cst_ref[:, 0:D]                           # (1, D)  f32
        bz1f = cst_ref[:, D:2 * D]                         # (1, D)  folded Linear#1 bias
        bz2 = cst_ref[:, 2 * D:2 * D + 64]                 # (1, 64)
        wz3 = cst_ref[:, 2 * D + 128:2 * D + 192]          # (1, 64)
        bz3 = cst_ref[:, 2 * D + 256:2 * D + 257]          # (1, 1)

        # ---- z head (Linear#1 folded through final_proj, so it only needs
        #      mean(d0) and does not wait on the projection matmul) ----
        m0 = jnp.mean(d[:, 0:N0, :].astype(jnp.float32), axis=1)          # (Bblk, D) f32
        h1 = jnp.dot(m0.astype(jnp.bfloat16), wzf_ref[...],
                     preferred_element_type=jnp.float32) + bz1f
        h1 = jnp.maximum(h1, 0.0)
        h2 = jnp.dot(h1.astype(jnp.bfloat16), wz2_ref[...],
                     preferred_element_type=jnp.float32) + bz2
        h2 = jnp.maximum(h2, 0.0)
        z = jnp.sum(h2 * wz3, axis=1, keepdims=True) + bz3                # (Bblk, 1) f32
        z = z[:, :, None]                                                 # (Bblk, 1, 1)

        # ---- fused final_proj: one MXU matmul for both descriptor sets and
        #      all Bblk samples (Ncp is a multiple of 16 -> free reshape) ----
        md = jnp.dot(d.reshape(Bblk * Ncp, D), wp,
                     preferred_element_type=jnp.float32) + b_proj         # (Bblk*Ncp, D)
        md = md.reshape(Bblk, Ncp, D)

        # ---- pairwise scores directly at the augmented (M, Nc) shape.
        #      Row M-1 of md0p / row Nc-1 of md1p hold garbage (padding /
        #      neighbouring rows); those positions are overwritten by z. ----
        md0p = md[:, 0:M, :].astype(jnp.bfloat16)                         # (Bblk, M, D)
        md1p = md[:, N0:N0 + Nc, :].astype(jnp.bfloat16)                  # (Bblk, Nc, D)
        sc = lax.dot_general(md0p, md1p, (((2,), (2,)), ((0,), (0,))),
                             preferred_element_type=jnp.float32) * inv_sqrt_d

        ri = lax.broadcasted_iota(jnp.int32, (1, M, 1), 1)
        ci = lax.broadcasted_iota(jnp.int32, (1, 1, Nc), 2)
        interior = (ri < N0) & (ci < N1)                                  # (1, M, Nc)
        Z = jnp.where(interior, sc, z)                                    # (Bblk, M, Nc)

        # ---- log-space Sinkhorn iterations (statically unrolled, all f32) ----
        log_mu = jnp.where(ri < N0, jnp.float32(norm), jnp.float32(log_mu_last))
        log_nu = jnp.where(ci < N1, jnp.float32(norm), jnp.float32(log_nu_last))
        u = jnp.zeros((Bblk, M, 1), jnp.float32)
        v = jnp.zeros((Bblk, 1, Nc), jnp.float32)
        for _ in range(iters):
            t = Z + v
            mx = jnp.max(t, axis=2, keepdims=True)
            u = log_mu - (mx + jnp.log(jnp.sum(jnp.exp(t - mx), axis=2, keepdims=True)))
            t = Z + u
            mx = jnp.max(t, axis=1, keepdims=True)
            v = log_nu - (mx + jnp.log(jnp.sum(jnp.exp(t - mx), axis=1, keepdims=True)))
        Zf = Z + u + v - norm

        # ---- row softmax of the augmented matrix (module: softmax(dim=2)) ----
        mx = jnp.max(Zf, axis=2, keepdims=True)
        e = jnp.exp(Zf - mx)
        inv = pl.reciprocal(jnp.sum(e, axis=2, keepdims=True), approx=True)
        probs = e * inv                                                   # (Bblk, M, Nc)

        # lane-padded output block (NcP multiple of 128): aligned writeback.
        if NcP > Nc:
            out_ref[...] = jnp.zeros_like(out_ref)
            out_ref[:, :, 0:Nc] = probs
        else:
            out_ref[...] = probs

    return kernel


# ----------------------------------------------------------------------------
# JAX wrapper
# ----------------------------------------------------------------------------
def _match_from_scores(scores_full, match_threshold):
    # TODO(synk): argmax/gather mutual-match postprocessing stays in plain JAX;
    # dynamic per-row gathers have no clean Pallas TPU equivalent at these sizes.
    # Note: faithful to the module, mscores0 = exp(softmaxed score), which makes
    # the match_threshold test effectively always-true (module quirk, preserved).
    s = scores_full[:, :-1, :-1]
    max0, indices0 = jnp.max(s, axis=2), jnp.argmax(s, axis=2)   # (B, N0)
    max1, indices1 = jnp.max(s, axis=1), jnp.argmax(s, axis=1)   # (B, N1)
    n0, n1 = s.shape[1], s.shape[2]
    ar0 = jnp.arange(n0)[None, :]
    ar1 = jnp.arange(n1)[None, :]
    mutual0 = ar0 == jnp.take_along_axis(indices1, indices0, axis=1)
    mutual1 = ar1 == jnp.take_along_axis(indices0, indices1, axis=1)
    zero = jnp.zeros((), scores_full.dtype)
    mscores0 = jnp.where(mutual0, jnp.exp(max0), zero)
    mscores1 = jnp.where(mutual1, jnp.take_along_axis(mscores0, indices1, axis=1), zero)
    valid0 = mutual0 & (mscores0 > match_threshold)
    valid1 = mutual1 & jnp.take_along_axis(valid0, indices1, axis=1)
    matches0 = jnp.where(valid0, indices0, -1)
    matches1 = jnp.where(valid1, indices1, -1)
    return matches0, matches1, mscores0, mscores1


def _plan_batch(B, max_bblk):
    # >= 2 grid steps when possible so v7x can use both TensorCores; on
    # v5e/v6e the extra step only costs ~0.35us.
    if B <= 1:
        return 1, 1
    bblk = min(max_bblk, pl.cdiv(B, 2))
    return pl.cdiv(B, bblk), bblk


def sinkhorn_wz_pallas(desc0, desc1, params, *, iters, match_threshold, max_bblk=8):
    """desc0: (B, C, N0), desc1: (B, C, N1) channel-major, like the PyTorch module."""
    # TODO(synk): assumes all batch elements share (N0, N1); the PyTorch module
    # loops over ragged per-sample descriptor lists.
    if desc0.shape[1] == 128:
        # Same channel-duplication quirk as the module's forward.
        desc0 = jnp.concatenate([desc0, desc0], axis=1)
        desc1 = jnp.concatenate([desc1, desc1], axis=1)
    B, D, N0 = desc0.shape
    N1 = desc1.shape[2]
    assert D == 256
    M, Nc = N0 + 1, N1 + 1

    # keypoint-major layout (channels on the lane axis) + bf16 MXU operands.
    # Both descriptor sets are stacked along the keypoint axis so the kernel
    # runs a single fused projection matmul; keypoint rows are padded to a
    # multiple of 16 (bf16 sublane packing -> free in-kernel reshape) and by at
    # least one extra row for the padded-score dustbin trick.
    d0 = jnp.swapaxes(desc0, 1, 2).astype(jnp.bfloat16)   # (B, N0, D)
    d1 = jnp.swapaxes(desc1, 1, 2).astype(jnp.bfloat16)   # (B, N1, D)
    Ncp = _round_up(N0 + N1 + 1, 16)
    dcat = jnp.zeros((B, Ncp, D), jnp.bfloat16)
    dcat = dcat.at[:, 0:N0, :].set(d0)
    dcat = dcat.at[:, N0:N0 + N1, :].set(d1)

    # batch blocking: Bblk samples per grid step (amortizes grid overhead and
    # fattens the MXU tiles); pad the batch with zero samples if needed.
    n_steps, Bblk = _plan_batch(B, max_bblk)
    Bpad = n_steps * Bblk
    if Bpad != B:
        dcat = jnp.concatenate(
            [dcat, jnp.zeros((Bpad - B, Ncp, D), jnp.bfloat16)], axis=0)

    # weights: final_proj (transposed); z-MLP Linear#1 folded through the
    # projection (module quirk m = [mean(mdesc0), mean(mdesc0)]); Linear#2.
    wpT = params["w_proj"].T                                       # (D, D) f32
    wz1cT = (params["wz1"][:, :D] + params["wz1"][:, D:]).T        # (D, D) f32
    wzfT = wpT @ wz1cT                                             # folded Linear#1
    bz1f = params["b_proj"] @ wz1cT + params["bz1"]

    # small f32 constants packed into one lane-aligned row:
    # [b_proj | bz1_fold | bz2 (pad) | wz3 (pad) | bz3 (pad)] -> width 896 = 7*128
    CW = 2 * D + 3 * 128
    cst = jnp.zeros((1, CW), jnp.float32)
    cst = cst.at[0, 0:D].set(params["b_proj"])
    cst = cst.at[0, D:2 * D].set(bz1f)
    cst = cst.at[0, 2 * D:2 * D + 64].set(params["bz2"])
    cst = cst.at[0, 2 * D + 128:2 * D + 192].set(params["wz3"].reshape(-1))
    cst = cst.at[0, 2 * D + 256].set(params["bz3"][0])

    NcP = _round_up(Nc, 128)     # lane-dense output block
    kernel = _make_sinkhorn_kernel(D, N0, N1, Ncp, NcP, Bblk, iters)

    # TODO(synk): pipeline_mode=pl.Buffered(1) on the constant-index specs would
    # drop their second pipeline buffer; omitted since total VMEM use is <1 MiB.
    scores_pad = pl.pallas_call(
        kernel,
        out_shape=jax.ShapeDtypeStruct((Bpad, M, NcP), jnp.float32),
        grid=(n_steps,),
        in_specs=[
            pl.BlockSpec((Bblk, Ncp, D), lambda b: (b, 0, 0)),   # stacked descriptors
            pl.BlockSpec((D, D), lambda b: (0, 0)),              # final_proj weight^T
            pl.BlockSpec((D, D), lambda b: (0, 0)),              # folded z Linear#1^T
            pl.BlockSpec((D, 64), lambda b: (0, 0)),             # z Linear#2^T
            pl.BlockSpec((1, CW), lambda b: (0, 0)),             # packed f32 constants
        ],
        out_specs=pl.BlockSpec((Bblk, M, NcP), lambda b: (b, 0, 0)),
        compiler_params=pltpu.CompilerParams(
            dimension_semantics=("parallel",)),
    )(dcat,
      wpT.astype(jnp.bfloat16),
      wzfT.astype(jnp.bfloat16),
      params["wz2"].T.astype(jnp.bfloat16),
      cst)

    scores = scores_pad[:B, :, :Nc]
    m0i, m1i, ms0, ms1 = _match_from_scores(scores, match_threshold)
    return {"matches0": m0i, "matches1": m1i,
            "matches_scores0": ms0, "matches_scores1": ms1,
            "scores": scores}


# ----------------------------------------------------------------------------
# Pure-JAX references.
#   mirror_kernel=False : PyTorch-faithful full-f32 forward (including the
#                         m1 = mean(mdesc0) quirk).
#   mirror_kernel=True  : mirrors the kernel's numerics exactly (bf16 MXU
#                         operands, z Linear#1 folded through the projection,
#                         mean taken pre-projection) for a tight check.
# ----------------------------------------------------------------------------
def sinkhorn_wz_scores_ref(desc0, desc1, params, *, iters, mirror_kernel=False):
    if desc0.shape[1] == 128:
        desc0 = jnp.concatenate([desc0, desc0], axis=1)
        desc1 = jnp.concatenate([desc1, desc1], axis=1)
    D = desc0.shape[1]
    d0 = jnp.swapaxes(desc0, 1, 2)      # (B, N0, D) f32
    d1 = jnp.swapaxes(desc1, 1, 2)
    if mirror_kernel:
        d0 = d0.astype(jnp.bfloat16).astype(jnp.float32)
        d1 = d1.astype(jnp.bfloat16).astype(jnp.float32)

    def mm(a, b):
        if mirror_kernel:
            a = a.astype(jnp.bfloat16)
            b = b.astype(jnp.bfloat16)
        return jnp.matmul(a, b, preferred_element_type=jnp.float32)

    wpT = params["w_proj"].T
    wz1cT = (params["wz1"][:, :D] + params["wz1"][:, D:]).T   # m = [m0, m0] quirk

    md0 = mm(d0, wpT) + params["b_proj"][None, None, :]
    md1 = mm(d1, wpT) + params["b_proj"][None, None, :]

    if mirror_kernel:
        m0 = jnp.mean(d0, axis=1)                               # (B, D), pre-projection
        wzfT = wpT @ wz1cT
        bz1f = params["b_proj"] @ wz1cT + params["bz1"]
        h1 = jax.nn.relu(mm(m0, wzfT) + bz1f[None, :])
    else:
        m0 = jnp.mean(md0, axis=1)
        h1 = jax.nn.relu(mm(m0, wz1cT) + params["bz1"][None, :])
    h2 = jax.nn.relu(mm(h1, params["wz2"].T) + params["bz2"][None, :])
    z = jnp.sum(h2 * params["wz3"], axis=-1, keepdims=True) + params["bz3"][None, :]
    z = z[:, :, None]                                           # (B, 1, 1)

    sc = mm(md0, jnp.swapaxes(md1, 1, 2)) / jnp.sqrt(jnp.float32(D))
    B, n0, n1 = sc.shape
    couplings = jnp.concatenate(
        [jnp.concatenate([sc, jnp.broadcast_to(z, (B, n0, 1))], axis=2),
         jnp.concatenate([jnp.broadcast_to(z, (B, 1, n1)),
                          jnp.broadcast_to(z, (B, 1, 1))], axis=2)], axis=1)

    norm = -jnp.log(jnp.float32(n0 + n1))
    log_mu = jnp.concatenate([jnp.broadcast_to(norm, (n0,)),
                              (jnp.log(jnp.float32(n1)) + norm)[None]])
    log_nu = jnp.concatenate([jnp.broadcast_to(norm, (n1,)),
                              (jnp.log(jnp.float32(n0)) + norm)[None]])
    log_mu = jnp.broadcast_to(log_mu[None, :], (B, n0 + 1))
    log_nu = jnp.broadcast_to(log_nu[None, :], (B, n1 + 1))

    u, v = jnp.zeros_like(log_mu), jnp.zeros_like(log_nu)
    for _ in range(iters):
        u = log_mu - jax.scipy.special.logsumexp(couplings + v[:, None, :], axis=2)
        v = log_nu - jax.scipy.special.logsumexp(couplings + u[:, :, None], axis=1)
    Z = couplings + u[:, :, None] + v[:, None, :] - norm
    return jax.nn.softmax(Z, axis=2)


def make_params(key, D=256):
    ks = jax.random.split(key, 8)
    rnd = lambda k, shape, scale: jax.random.normal(k, shape, jnp.float32) * scale
    return {
        "w_proj": rnd(ks[0], (D, D), 1.0 / np.sqrt(D)),       # final_proj Conv1d
        "b_proj": rnd(ks[1], (D,), 0.1),
        "wz1": rnd(ks[2], (D, 2 * D), 1.0 / np.sqrt(2 * D)),  # Linear(2D, D)
        "bz1": rnd(ks[3], (D,), 0.1),
        "wz2": rnd(ks[4], (64, D), 1.0 / np.sqrt(D)),         # Linear(D, 64)
        "bz2": rnd(ks[5], (64,), 0.1),
        "wz3": rnd(ks[6], (1, 64), 1.0 / np.sqrt(64)),        # Linear(64, 1)
        "bz3": rnd(ks[7], (1,), 0.1),
    }


if __name__ == "__main__":
    SINKHORN_ITERS = 20
    MATCH_THRESHOLD = 0.2
    base_key = jax.random.PRNGKey(0)

    # Two configs: B=2 (one sample per grid step) and B=5 (Bblk=3 per step,
    # exercises batch blocking and batch padding).
    for cfg_idx, (B, C, N0, N1) in enumerate([(2, 256, 16, 20), (5, 256, 16, 20)]):
        key = jax.random.fold_in(base_key, cfg_idx)
        k0, k1, kp = jax.random.split(key, 3)
        desc0 = jax.random.normal(k0, (B, C, N0), jnp.float32)
        desc1 = jax.random.normal(k1, (B, C, N1), jnp.float32)
        params = make_params(kp, C)

        out = sinkhorn_wz_pallas(desc0, desc1, params,
                                 iters=SINKHORN_ITERS, match_threshold=MATCH_THRESHOLD)
        scores = jax.block_until_ready(out["scores"])

        # Tight check vs a reference that mirrors the kernel numerics exactly.
        ref_mirror = jax.block_until_ready(
            sinkhorn_wz_scores_ref(desc0, desc1, params,
                                   iters=SINKHORN_ITERS, mirror_kernel=True))
        np.testing.assert_allclose(np.asarray(scores), np.asarray(ref_mirror),
                                   rtol=1e-2, atol=5e-3)

        # Fidelity sanity check vs the full-f32 (PyTorch-faithful) reference.
        ref_f32 = jax.block_until_ready(
            sinkhorn_wz_scores_ref(desc0, desc1, params,
                                   iters=SINKHORN_ITERS, mirror_kernel=False))
        np.testing.assert_allclose(np.asarray(scores), np.asarray(ref_f32),
                                   rtol=1e-1, atol=7.5e-2)

        assert scores.shape == (B, N0 + 1, N1 + 1)
        assert out["matches0"].shape == (B, N0) and out["matches1"].shape == (B, N1)
        assert out["matches_scores0"].shape == (B, N0)
        assert out["matches_scores1"].shape == (B, N1)

    print("KERNEL_OK")
</pallas_src>

<mosaic_0001>
module attributes {stable_mosaic.version = 11 : i64} {
  func.func @kernel(%arg0: i32, %arg1: memref<1x48x256xbf16, #tpu.memory_space<vmem>>, %arg2: memref<256x256xbf16, #tpu.memory_space<vmem>>, %arg3: memref<256x256xbf16, #tpu.memory_space<vmem>>, %arg4: memref<256x64xbf16, #tpu.memory_space<vmem>>, %arg5: memref<1x896xf32, #tpu.memory_space<vmem>>, %arg6: memref<1x17x128xf32, #tpu.memory_space<vmem>>) attributes {dimension_semantics = [#tpu.dimension_semantics<parallel>], iteration_bounds = array<i64: 2>, scalar_prefetch = 0 : i64, scratch_operands = 0 : i64, tpu.core_type = #tpu.core_type<tc>, window_params = [{transform_indices = @transform_0, window_bounds = array<i64: 1, 48, 256>}, {pipeline_mode = #tpu.pipeline_mode<synchronous>, transform_indices = @transform_1, window_bounds = array<i64: 256, 256>}, {pipeline_mode = #tpu.pipeline_mode<synchronous>, transform_indices = @transform_2, window_bounds = array<i64: 256, 256>}, {pipeline_mode = #tpu.pipeline_mode<synchronous>, transform_indices = @transform_3, window_bounds = array<i64: 256, 64>}, {pipeline_mode = #tpu.pipeline_mode<synchronous>, transform_indices = @transform_4, window_bounds = array<i64: 1, 896>}, {transform_indices = @transform_5, window_bounds = array<i64: 1, 17, 128>}]} {
    %c0 = arith.constant 0 : index
    %c0_0 = arith.constant 0 : index
    %c0_1 = arith.constant 0 : index
    %0 = vector.load %arg1[%c0, %c0_0, %c0_1] : memref<1x48x256xbf16, #tpu.memory_space<vmem>>, vector<1x48x256xbf16>
    %c0_2 = arith.constant 0 : index
    %c0_3 = arith.constant 0 : index
    %1 = vector.load %arg2[%c0_2, %c0_3] : memref<256x256xbf16, #tpu.memory_space<vmem>>, vector<256x256xbf16>
    %c0_4 = arith.constant 0 : index
    %c0_5 = arith.constant 0 : index
    %2 = vector.load %arg5[%c0_4, %c0_5] : memref<1x896xf32, #tpu.memory_space<vmem>>, vector<1x256xf32>
    %c0_6 = arith.constant 0 : index
    %c256 = arith.constant 256 : index
    %3 = vector.load %arg5[%c0_6, %c256] : memref<1x896xf32, #tpu.memory_space<vmem>>, vector<1x256xf32>
    %c0_7 = arith.constant 0 : index
    %c512 = arith.constant 512 : index
    %4 = vector.load %arg5[%c0_7, %c512] : memref<1x896xf32, #tpu.memory_space<vmem>>, vector<1x64xf32>
    %c0_8 = arith.constant 0 : index
    %c640 = arith.constant 640 : index
    %5 = vector.load %arg5[%c0_8, %c640] : memref<1x896xf32, #tpu.memory_space<vmem>>, vector<1x64xf32>
    %c0_9 = arith.constant 0 : index
    %c768 = arith.constant 768 : index
    %6 = vector.load %arg5[%c0_9, %c768] : memref<1x896xf32, #tpu.memory_space<vmem>>, vector<1x1xf32>
    %7 = vector.extract_strided_slice %0 {offsets = [0, 0, 0], sizes = [1, 16, 256], strides = [1, 1, 1]} : vector<1x48x256xbf16> to vector<1x16x256xbf16>
    %8 = arith.extf %7 : vector<1x16x256xbf16> to vector<1x16x256xf32>
    %cst = arith.constant dense<0.000000e+00> : vector<1x256xf32>
    %9 = vector.multi_reduction <add>, %8, %cst [1] : vector<1x16x256xf32> to vector<1x256xf32>
    %cst_10 = arith.constant 1.600000e+01 : f32
    %10 = vector.broadcast %cst_10 : f32 to vector<1x256xf32>
    %11 = arith.divf %9, %10 : vector<1x256xf32>
    %12 = arith.truncf %11 : vector<1x256xf32> to vector<1x256xbf16>
    %c0_11 = arith.constant 0 : index
    %c0_12 = arith.constant 0 : index
    %13 = vector.load %arg3[%c0_11, %c0_12] : memref<256x256xbf16, #tpu.memory_space<vmem>>, vector<256x256xbf16>
    %cst_13 = arith.constant dense<0.000000e+00> : vector<1x256xf32>
    %14 = tpu.matmul %12, %13, %cst_13 {dimension_numbers = #tpu.dot_dimension_numbers<[1], [0], [0], [1], [0, 0, 1, 1], [], []>} : vector<1x256xbf16>, vector<256x256xbf16>, vector<1x256xf32> -> vector<1x256xf32>
    %15 = arith.addf %14, %3 : vector<1x256xf32>
    %cst_14 = arith.constant 0.000000e+00 : f32
    %16 = vector.broadcast %cst_14 : f32 to vector<1x256xf32>
    %17 = arith.maximumf %15, %16 : vector<1x256xf32>
    %18 = arith.truncf %17 : vector<1x256xf32> to vector<1x256xbf16>
    %c0_15 = arith.constant 0 : index
    %c0_16 = arith.constant 0 : index
    %19 = vector.load %arg4[%c0_15, %c0_16] : memref<256x64xbf16, #tpu.memory_space<vmem>>, vector<256x64xbf16>
    %cst_17 = arith.constant dense<0.000000e+00> : vector<1x64xf32>
    %20 = tpu.matmul %18, %19, %cst_17 {dimension_numbers = #tpu.dot_dimension_numbers<[1], [0], [0], [1], [0, 0, 1, 1], [], []>} : vector<1x256xbf16>, vector<256x64xbf16>, vector<1x64xf32> -> vector<1x64xf32>
    %21 = arith.addf %20, %4 : vector<1x64xf32>
    %cst_18 = arith.constant 0.000000e+00 : f32
    %22 = vector.broadcast %cst_18 : f32 to vector<1x64xf32>
    %23 = arith.maximumf %21, %22 : vector<1x64xf32>
    %24 = arith.mulf %23, %5 : vector<1x64xf32>
    %cst_19 = arith.constant dense<0.000000e+00> : vector<1xf32>
    %25 = vector.multi_reduction <add>, %24, %cst_19 [1] : vector<1x64xf32> to vector<1xf32>
    %26 = vector.shape_cast %25 : vector<1xf32> to vector<1x1xf32>
    %27 = arith.addf %26, %6 : vector<1x1xf32>
    %28 = vector.shape_cast %27 : vector<1x1xf32> to vector<1x1x1xf32>
    %29 = vector.shape_cast %0 : vector<1x48x256xbf16> to vector<48x256xbf16>
    %cst_20 = arith.constant dense<0.000000e+00> : vector<48x256xf32>
    %30 = tpu.matmul %29, %1, %cst_20 {dimension_numbers = #tpu.dot_dimension_numbers<[1], [0], [0], [1], [0, 0, 1, 1], [], []>} : vector<48x256xbf16>, vector<256x256xbf16>, vector<48x256xf32> -> vector<48x256xf32>
    %31 = vector.broadcast %2 : vector<1x256xf32> to vector<48x256xf32>
    %32 = arith.addf %30, %31 : vector<48x256xf32>
    %33 = vector.shape_cast %32 : vector<48x256xf32> to vector<1x48x256xf32>
    %34 = vector.extract_strided_slice %33 {offsets = [0, 0, 0], sizes = [1, 17, 256], strides = [1, 1, 1]} : vector<1x48x256xf32> to vector<1x17x256xf32>
    %35 = arith.truncf %34 : vector<1x17x256xf32> to vector<1x17x256xbf16>
    %36 = vector.extract_strided_slice %33 {offsets = [0, 16, 0], sizes = [1, 21, 256], strides = [1, 1, 1]} : vector<1x48x256xf32> to vector<1x21x256xf32>
    %37 = arith.truncf %36 : vector<1x21x256xf32> to vector<1x21x256xbf16>
    %cst_21 = arith.constant dense<0.000000e+00> : vector<1x17x21xf32>
    %38 = tpu.matmul %35, %37, %cst_21 {dimension_numbers = #tpu.dot_dimension_numbers<[2], [2], [1], [1], [0, 0, 0, 1, 1, 1], [0], [0]>} : vector<1x17x256xbf16>, vector<1x21x256xbf16>, vector<1x17x21xf32> -> vector<1x17x21xf32>
    %cst_22 = arith.constant 6.250000e-02 : f32
    %39 = vector.broadcast %cst_22 : f32 to vector<1x17x21xf32>
    %40 = arith.mulf %38, %39 : vector<1x17x21xf32>
    %41 = tpu.iota {dimensions = array<i32: 1>} : vector<1x17x1xi32>
    %42 = tpu.iota {dimensions = array<i32: 2>} : vector<1x1x21xi32>
    %c16_i32 = arith.constant 16 : i32
    %43 = vector.broadcast %c16_i32 : i32 to vector<1x17x1xi32>
    %44 = arith.cmpi slt, %41, %43 : vector<1x17x1xi32>
    %c20_i32 = arith.constant 20 : i32
    %45 = vector.broadcast %c20_i32 : i32 to vector<1x1x21xi32>
    %46 = arith.cmpi slt, %42, %45 : vector<1x1x21xi32>
    %47 = vector.broadcast %44 : vector<1x17x1xi1> to vector<1x17x21xi1>
    %48 = vector.broadcast %46 : vector<1x1x21xi1> to vector<1x17x21xi1>
    %49 = arith.andi %47, %48 : vector<1x17x21xi1>
    %50 = vector.shape_cast %28 : vector<1x1x1xf32> to vector<1x1x1xf32>
    %51 = vector.broadcast %50 : vector<1x1x1xf32> to vector<1x17x21xf32>
    %52 = arith.select %49, %40, %51 : vector<1x17x21xi1>, vector<1x17x21xf32>
    %c16_i32_23 = arith.constant 16 : i32
    %53 = vector.broadcast %c16_i32_23 : i32 to vector<1x17x1xi32>
    %54 = arith.cmpi slt, %41, %53 : vector<1x17x1xi32>
    %cst_24 = arith.constant -3.58351898 : f32
    %cst_25 = arith.constant -0.587786674 : f32
    %55 = vector.broadcast %cst_24 : f32 to vector<1x17x1xf32>
    %56 = vector.broadcast %cst_25 : f32 to vector<1x17x1xf32>
    %57 = arith.select %54, %55, %56 : vector<1x17x1xi1>, vector<1x17x1xf32>
    %c20_i32_26 = arith.constant 20 : i32
    %58 = vector.broadcast %c20_i32_26 : i32 to vector<1x1x21xi32>
    %59 = arith.cmpi slt, %42, %58 : vector<1x1x21xi32>
    %cst_27 = arith.constant -3.58351898 : f32
    %cst_28 = arith.constant -0.810930192 : f32
    %60 = vector.broadcast %cst_27 : f32 to vector<1x1x21xf32>
    %61 = vector.broadcast %cst_28 : f32 to vector<1x1x21xf32>
    %62 = arith.select %59, %60, %61 : vector<1x1x21xi1>, vector<1x1x21xf32>
    %cst_29 = arith.constant 0.000000e+00 : f32
    %63 = vector.broadcast %cst_29 : f32 to vector<1x1x21xf32>
    %64 = vector.broadcast %63 : vector<1x1x21xf32> to vector<1x17x21xf32>
    %65 = arith.addf %52, %64 : vector<1x17x21xf32>
    %cst_30 = arith.constant dense<0xFF800000> : vector<1x17xf32>
    %66 = vector.multi_reduction <maximumf>, %65, %cst_30 [2] : vector<1x17x21xf32> to vector<1x17xf32>
    %67 = vector.shape_cast %66 : vector<1x17xf32> to vector<1x17x1xf32>
    %68 = vector.broadcast %67 : vector<1x17x1xf32> to vector<1x17x21xf32>
    %69 = arith.subf %65, %68 : vector<1x17x21xf32>
    %70 = math.exp %69 : vector<1x17x21xf32>
    %cst_31 = arith.constant dense<0.000000e+00> : vector<1x17xf32>
    %71 = vector.multi_reduction <add>, %70, %cst_31 [2] : vector<1x17x21xf32> to vector<1x17xf32>
    %72 = vector.shape_cast %71 : vector<1x17xf32> to vector<1x17x1xf32>
    %73 = math.log %72 : vector<1x17x1xf32>
    %74 = arith.addf %67, %73 : vector<1x17x1xf32>
    %75 = arith.subf %57, %74 : vector<1x17x1xf32>
    %76 = vector.broadcast %75 : vector<1x17x1xf32> to vector<1x17x21xf32>
    %77 = arith.addf %52, %76 : vector<1x17x21xf32>
    %cst_32 = arith.constant dense<0xFF800000> : vector<1x21xf32>
    %78 = vector.multi_reduction <maximumf>, %77, %cst_32 [1] : vector<1x17x21xf32> to vector<1x21xf32>
    %79 = vector.shape_cast %78 : vector<1x21xf32> to vector<1x1x21xf32>
    %80 = vector.broadcast %79 : vector<1x1x21xf32> to vector<1x17x21xf32>
    %81 = arith.subf %77, %80 : vector<1x17x21xf32>
    %82 = math.exp %81 : vector<1x17x21xf32>
    %cst_33 = arith.constant dense<0.000000e+00> : vector<1x21xf32>
    %83 = vector.multi_reduction <add>, %82, %cst_33 [1] : vector<1x17x21xf32> to vector<1x21xf32>
    %84 = vector.shape_cast %83 : vector<1x21xf32> to vector<1x1x21xf32>
    %85 = math.log %84 : vector<1x1x21xf32>
    %86 = arith.addf %79, %85 : vector<1x1x21xf32>
    %87 = arith.subf %62, %86 : vector<1x1x21xf32>
    %88 = vector.broadcast %87 : vector<1x1x21xf32> to vector<1x17x21xf32>
    %89 = arith.addf %52, %88 : vector<1x17x21xf32>
    %cst_34 = arith.constant dense<0xFF800000> : vector<1x17xf32>
    %90 = vector.multi_reduction <maximumf>, %89, %cst_34 [2] : vector<1x17x21xf32> to vector<1x17xf32>
    %91 = vector.shape_cast %90 : vector<1x17xf32> to vector<1x17x1xf32>
    %92 = vector.broadcast %91 : vector<1x17x1xf32> to vector<1x17x21xf32>
    %93 = arith.subf %89, %92 : vector<1x17x21xf32>
    %94 = math.exp %93 : vector<1x17x21xf32>
    %cst_35 = arith.constant dense<0.000000e+00> : vector<1x17xf32>
    %95 = vector.multi_reduction <add>, %94, %cst_35 [2] : vector<1x17x21xf32> to vector<1x17xf32>
    %96 = vector.shape_cast %95 : vector<1x17xf32> to vector<1x17x1xf32>
    %97 = math.log %96 : vector<1x17x1xf32>
    %98 = arith.addf %91, %97 : vector<1x17x1xf32>
    %99 = arith.subf %57, %98 : vector<1x17x1xf32>
    %100 = vector.broadcast %99 : vector<1x17x1xf32> to vector<1x17x21xf32>
    %101 = arith.addf %52, %100 : vector<1x17x21xf32>
    %cst_36 = arith.constant dense<0xFF800000> : vector<1x21xf32>
    %102 = vector.multi_reduction <maximumf>, %101, %cst_36 [1] : vector<1x17x21xf32> to vector<1x21xf32>
    %103 = vector.shape_cast %102 : vector<1x21xf32> to vector<1x1x21xf32>
    %104 = vector.broadcast %103 : vector<1x1x21xf32> to vector<1x17x21xf32>
    %105 = arith.subf %101, %104 : vector<1x17x21xf32>
    %106 = math.exp %105 : vector<1x17x21xf32>
    %cst_37 = arith.constant dense<0.000000e+00> : vector<1x21xf32>
    %107 = vector.multi_reduction <add>, %106, %cst_37 [1] : vector<1x17x21xf32> to vector<1x21xf32>
    %108 = vector.shape_cast %107 : vector<1x21xf32> to vector<1x1x21xf32>
    %109 = math.log %108 : vector<1x1x21xf32>
    %110 = arith.addf %103, %109 : vector<1x1x21xf32>
    %111 = arith.subf %62, %110 : vector<1x1x21xf32>
    %112 = vector.broadcast %111 : vector<1x1x21xf32> to vector<1x17x21xf32>
    %113 = arith.addf %52, %112 : vector<1x17x21xf32>
    %cst_38 = arith.constant dense<0xFF800000> : vector<1x17xf32>
    %114 = vector.multi_reduction <maximumf>, %113, %cst_38 [2] : vector<1x17x21xf32> to vector<1x17xf32>
    %115 = vector.shape_cast %114 : vector<1x17xf32> to vector<1x17x1xf32>
    %116 = vector.broadcast %115 : vector<1x17x1xf32> to vector<1x17x21xf32>
    %117 = arith.subf %113, %116 : vector<1x17x21xf32>
    %118 = math.exp %117 : vector<1x17x21xf32>
    %cst_39 = arith.constant dense<0.000000e+00> : vector<1x17xf32>
    %119 = vector.multi_reduction <add>, %118, %cst_39 [2] : vector<1x17x21xf32> to vector<1x17xf32>
    %120 = vector.shape_cast %119 : vector<1x17xf32> to vector<1x17x1xf32>
    %121 = math.log %120 : vector<1x17x1xf32>
    %122 = arith.addf %115, %121 : vector<1x17x1xf32>
    %123 = arith.subf %57, %122 : vector<1x17x1xf32>
    %124 = vector.broadcast %123 : vector<1x17x1xf32> to vector<1x17x21xf32>
    %125 = arith.addf %52, %124 : vector<1x17x21xf32>
    %cst_40 = arith.constant dense<0xFF800000> : vector<1x21xf32>
    %126 = vector.multi_reduction <maximumf>, %125, %cst_40 [1] : vector<1x17x21xf32> to vector<1x21xf32>
    %127 = vector.shape_cast %126 : vector<1x21xf32> to vector<1x1x21xf32>
    %128 = vector.broadcast %127 : vector<1x1x21xf32> to vector<1x17x21xf32>
    %129 = arith.subf %125, %128 : vector<1x17x21xf32>
    %130 = math.exp %129 : vector<1x17x21xf32>
    %cst_41 = arith.constant dense<0.000000e+00> : vector<1x21xf32>
    %131 = vector.multi_reduction <add>, %130, %cst_41 [1] : vector<1x17x21xf32> to vector<1x21xf32>
    %132 = vector.shape_cast %131 : vector<1x21xf32> to vector<1x1x21xf32>
    %133 = math.log %132 : vector<1x1x21xf32>
    %134 = arith.addf %127, %133 : vector<1x1x21xf32>
    %135 = arith.subf %62, %134 : vector<1x1x21xf32>
    %136 = vector.broadcast %135 : vector<1x1x21xf32> to vector<1x17x21xf32>
    %137 = arith.addf %52, %136 : vector<1x17x21xf32>
    %cst_42 = arith.constant dense<0xFF800000> : vector<1x17xf32>
    %138 = vector.multi_reduction <maximumf>, %137, %cst_42 [2] : vector<1x17x21xf32> to vector<1x17xf32>
    %139 = vector.shape_cast %138 : vector<1x17xf32> to vector<1x17x1xf32>
    %140 = vector.broadcast %139 : vector<1x17x1xf32> to vector<1x17x21xf32>
    %141 = arith.subf %137, %140 : vector<1x17x21xf32>
    %142 = math.exp %141 : vector<1x17x21xf32>
    %cst_43 = arith.constant dense<0.000000e+00> : vector<1x17xf32>
    %143 = vector.multi_reduction <add>, %142, %cst_43 [2] : vector<1x17x21xf32> to vector<1x17xf32>
    %144 = vector.shape_cast %143 : vector<1x17xf32> to vector<1x17x1xf32>
    %145 = math.log %144 : vector<1x17x1xf32>
    %146 = arith.addf %139, %145 : vector<1x17x1xf32>
    %147 = arith.subf %57, %146 : vector<1x17x1xf32>
    %148 = vector.broadcast %147 : vector<1x17x1xf32> to vector<1x17x21xf32>
    %149 = arith.addf %52, %148 : vector<1x17x21xf32>
    %cst_44 = arith.constant dense<0xFF800000> : vector<1x21xf32>
    %150 = vector.multi_reduction <maximumf>, %149, %cst_44 [1] : vector<1x17x21xf32> to vector<1x21xf32>
    %151 = vector.shape_cast %150 : vector<1x21xf32> to vector<1x1x21xf32>
    %152 = vector.broadcast %151 : vector<1x1x21xf32> to vector<1x17x21xf32>
    %153 = arith.subf %149, %152 : vector<1x17x21xf32>
    %154 = math.exp %153 : vector<1x17x21xf32>
    %cst_45 = arith.constant dense<0.000000e+00> : vector<1x21xf32>
    %155 = vector.multi_reduction <add>, %154, %cst_45 [1] : vector<1x17x21xf32> to vector<1x21xf32>
    %156 = vector.shape_cast %155 : vector<1x21xf32> to vector<1x1x21xf32>
    %157 = math.log %156 : vector<1x1x21xf32>
    %158 = arith.addf %151, %157 : vector<1x1x21xf32>
    %159 = arith.subf %62, %158 : vector<1x1x21xf32>
    %160 = vector.broadcast %159 : vector<1x1x21xf32> to vector<1x17x21xf32>
    %161 = arith.addf %52, %160 : vector<1x17x21xf32>
    %cst_46 = arith.constant dense<0xFF800000> : vector<1x17xf32>
    %162 = vector.multi_reduction <maximumf>, %161, %cst_46 [2] : vector<1x17x21xf32> to vector<1x17xf32>
    %163 = vector.shape_cast %162 : vector<1x17xf32> to vector<1x17x1xf32>
    %164 = vector.broadcast %163 : vector<1x17x1xf32> to vector<1x17x21xf32>
    %165 = arith.subf %161, %164 : vector<1x17x21xf32>
    %166 = math.exp %165 : vector<1x17x21xf32>
    %cst_47 = arith.constant dense<0.000000e+00> : vector<1x17xf32>
    %167 = vector.multi_reduction <add>, %166, %cst_47 [2] : vector<1x17x21xf32> to vector<1x17xf32>
    %168 = vector.shape_cast %167 : vector<1x17xf32> to vector<1x17x1xf32>
    %169 = math.log %168 : vector<1x17x1xf32>
    %170 = arith.addf %163, %169 : vector<1x17x1xf32>
    %171 = arith.subf %57, %170 : vector<1x17x1xf32>
    %172 = vector.broadcast %171 : vector<1x17x1xf32> to vector<1x17x21xf32>
    %173 = arith.addf %52, %172 : vector<1x17x21xf32>
    %cst_48 = arith.constant dense<0xFF800000> : vector<1x21xf32>
    %174 = vector.multi_reduction <maximumf>, %173, %cst_48 [1] : vector<1x17x21xf32> to vector<1x21xf32>
    %175 = vector.shape_cast %174 : vector<1x21xf32> to vector<1x1x21xf32>
    %176 = vector.broadcast %175 : vector<1x1x21xf32> to vector<1x17x21xf32>
    %177 = arith.subf %173, %176 : vector<1x17x21xf32>
    %178 = math.exp %177 : vector<1x17x21xf32>
    %cst_49 = arith.constant dense<0.000000e+00> : vector<1x21xf32>
    %179 = vector.multi_reduction <add>, %178, %cst_49 [1] : vector<1x17x21xf32> to vector<1x21xf32>
    %180 = vector.shape_cast %179 : vector<1x21xf32> to vector<1x1x21xf32>
    %181 = math.log %180 : vector<1x1x21xf32>
    %182 = arith.addf %175, %181 : vector<1x1x21xf32>
    %183 = arith.subf %62, %182 : vector<1x1x21xf32>
    %184 = vector.broadcast %183 : vector<1x1x21xf32> to vector<1x17x21xf32>
    %185 = arith.addf %52, %184 : vector<1x17x21xf32>
    %cst_50 = arith.constant dense<0xFF800000> : vector<1x17xf32>
    %186 = vector.multi_reduction <maximumf>, %185, %cst_50 [2] : vector<1x17x21xf32> to vector<1x17xf32>
    %187 = vector.shape_cast %186 : vector<1x17xf32> to vector<1x17x1xf32>
    %188 = vector.broadcast %187 : vector<1x17x1xf32> to vector<1x17x21xf32>
    %189 = arith.subf %185, %188 : vector<1x17x21xf32>
    %190 = math.exp %189 : vector<1x17x21xf32>
    %cst_51 = arith.constant dense<0.000000e+00> : vector<1x17xf32>
    %191 = vector.multi_reduction <add>, %190, %cst_51 [2] : vector<1x17x21xf32> to vector<1x17xf32>
    %192 = vector.shape_cast %191 : vector<1x17xf32> to vector<1x17x1xf32>
    %193 = math.log %192 : vector<1x17x1xf32>
    %194 = arith.addf %187, %193 : vector<1x17x1xf32>
    %195 = arith.subf %57, %194 : vector<1x17x1xf32>
    %196 = vector.broadcast %195 : vector<1x17x1xf32> to vector<1x17x21xf32>
    %197 = arith.addf %52, %196 : vector<1x17x21xf32>
    %cst_52 = arith.constant dense<0xFF800000> : vector<1x21xf32>
    %198 = vector.multi_reduction <maximumf>, %197, %cst_52 [1] : vector<1x17x21xf32> to vector<1x21xf32>
    %199 = vector.shape_cast %198 : vector<1x21xf32> to vector<1x1x21xf32>
    %200 = vector.broadcast %199 : vector<1x1x21xf32> to vector<1x17x21xf32>
    %201 = arith.subf %197, %200 : vector<1x17x21xf32>
    %202 = math.exp %201 : vector<1x17x21xf32>
    %cst_53 = arith.constant dense<0.000000e+00> : vector<1x21xf32>
    %203 = vector.multi_reduction <add>, %202, %cst_53 [1] : vector<1x17x21xf32> to vector<1x21xf32>
    %204 = vector.shape_cast %203 : vector<1x21xf32> to vector<1x1x21xf32>
    %205 = math.log %204 : vector<1x1x21xf32>
    %206 = arith.addf %199, %205 : vector<1x1x21xf32>
    %207 = arith.subf %62, %206 : vector<1x1x21xf32>
    %208 = vector.broadcast %207 : vector<1x1x21xf32> to vector<1x17x21xf32>
    %209 = arith.addf %52, %208 : vector<1x17x21xf32>
    %cst_54 = arith.constant dense<0xFF800000> : vector<1x17xf32>
    %210 = vector.multi_reduction <maximumf>, %209, %cst_54 [2] : vector<1x17x21xf32> to vector<1x17xf32>
    %211 = vector.shape_cast %210 : vector<1x17xf32> to vector<1x17x1xf32>
    %212 = vector.broadcast %211 : vector<1x17x1xf32> to vector<1x17x21xf32>
    %213 = arith.subf %209, %212 : vector<1x17x21xf32>
    %214 = math.exp %213 : vector<1x17x21xf32>
    %cst_55 = arith.constant dense<0.000000e+00> : vector<1x17xf32>
    %215 = vector.multi_reduction <add>, %214, %cst_55 [2] : vector<1x17x21xf32> to vector<1x17xf32>
    %216 = vector.shape_cast %215 : vector<1x17xf32> to vector<1x17x1xf32>
    %217 = math.log %216 : vector<1x17x1xf32>
    %218 = arith.addf %211, %217 : vector<1x17x1xf32>
    %219 = arith.subf %57, %218 : vector<1x17x1xf32>
    %220 = vector.broadcast %219 : vector<1x17x1xf32> to vector<1x17x21xf32>
    %221 = arith.addf %52, %220 : vector<1x17x21xf32>
    %cst_56 = arith.constant dense<0xFF800000> : vector<1x21xf32>
    %222 = vector.multi_reduction <maximumf>, %221, %cst_56 [1] : vector<1x17x21xf32> to vector<1x21xf32>
    %223 = vector.shape_cast %222 : vector<1x21xf32> to vector<1x1x21xf32>
    %224 = vector.broadcast %223 : vector<1x1x21xf32> to vector<1x17x21xf32>
    %225 = arith.subf %221, %224 : vector<1x17x21xf32>
    %226 = math.exp %225 : vector<1x17x21xf32>
    %cst_57 = arith.constant dense<0.000000e+00> : vector<1x21xf32>
    %227 = vector.multi_reduction <add>, %226, %cst_57 [1] : vector<1x17x21xf32> to vector<1x21xf32>
    %228 = vector.shape_cast %227 : vector<1x21xf32> to vector<1x1x21xf32>
    %229 = math.log %228 : vector<1x1x21xf32>
    %230 = arith.addf %223, %229 : vector<1x1x21xf32>
    %231 = arith.subf %62, %230 : vector<1x1x21xf32>
    %232 = vector.broadcast %231 : vector<1x1x21xf32> to vector<1x17x21xf32>
    %233 = arith.addf %52, %232 : vector<1x17x21xf32>
    %cst_58 = arith.constant dense<0xFF800000> : vector<1x17xf32>
    %234 = vector.multi_reduction <maximumf>, %233, %cst_58 [2] : vector<1x17x21xf32> to vector<1x17xf32>
    %235 = vector.shape_cast %234 : vector<1x17xf32> to vector<1x17x1xf32>
    %236 = vector.broadcast %235 : vector<1x17x1xf32> to vector<1x17x21xf32>
    %237 = arith.subf %233, %236 : vector<1x17x21xf32>
    %238 = math.exp %237 : vector<1x17x21xf32>
    %cst_59 = arith.constant dense<0.000000e+00> : vector<1x17xf32>
    %239 = vector.multi_reduction <add>, %238, %cst_59 [2] : vector<1x17x21xf32> to vector<1x17xf32>
    %240 = vector.shape_cast %239 : vector<1x17xf32> to vector<1x17x1xf32>
    %241 = math.log %240 : vector<1x17x1xf32>
    %242 = arith.addf %235, %241 : vector<1x17x1xf32>
    %243 = arith.subf %57, %242 : vector<1x17x1xf32>
    %244 = vector.broadcast %243 : vector<1x17x1xf32> to vector<1x17x21xf32>
    %245 = arith.addf %52, %244 : vector<1x17x21xf32>
    %cst_60 = arith.constant dense<0xFF800000> : vector<1x21xf32>
    %246 = vector.multi_reduction <maximumf>, %245, %cst_60 [1] : vector<1x17x21xf32> to vector<1x21xf32>
    %247 = vector.shape_cast %246 : vector<1x21xf32> to vector<1x1x21xf32>
    %248 = vector.broadcast %247 : vector<1x1x21xf32> to vector<1x17x21xf32>
    %249 = arith.subf %245, %248 : vector<1x17x21xf32>
    %250 = math.exp %249 : vector<1x17x21xf32>
    %cst_61 = arith.constant dense<0.000000e+00> : vector<1x21xf32>
    %251 = vector.multi_reduction <add>, %250, %cst_61 [1] : vector<1x17x21xf32> to vector<1x21xf32>
    %252 = vector.shape_cast %251 : vector<1x21xf32> to vector<1x1x21xf32>
    %253 = math.log %252 : vector<1x1x21xf32>
    %254 = arith.addf %247, %253 : vector<1x1x21xf32>
    %255 = arith.subf %62, %254 : vector<1x1x21xf32>
    %256 = vector.broadcast %255 : vector<1x1x21xf32> to vector<1x17x21xf32>
    %257 = arith.addf %52, %256 : vector<1x17x21xf32>
    %cst_62 = arith.constant dense<0xFF800000> : vector<1x17xf32>
    %258 = vector.multi_reduction <maximumf>, %257, %cst_62 [2] : vector<1x17x21xf32> to vector<1x17xf32>
    %259 = vector.shape_cast %258 : vector<1x17xf32> to vector<1x17x1xf32>
    %260 = vector.broadcast %259 : vector<1x17x1xf32> to vector<1x17x21xf32>
    %261 = arith.subf %257, %260 : vector<1x17x21xf32>
    %262 = math.exp %261 : vector<1x17x21xf32>
    %cst_63 = arith.constant dense<0.000000e+00> : vector<1x17xf32>
    %263 = vector.multi_reduction <add>, %262, %cst_63 [2] : vector<1x17x21xf32> to vector<1x17xf32>
    %264 = vector.shape_cast %263 : vector<1x17xf32> to vector<1x17x1xf32>
    %265 = math.log %264 : vector<1x17x1xf32>
    %266 = arith.addf %259, %265 : vector<1x17x1xf32>
    %267 = arith.subf %57, %266 : vector<1x17x1xf32>
    %268 = vector.broadcast %267 : vector<1x17x1xf32> to vector<1x17x21xf32>
    %269 = arith.addf %52, %268 : vector<1x17x21xf32>
    %cst_64 = arith.constant dense<0xFF800000> : vector<1x21xf32>
    %270 = vector.multi_reduction <maximumf>, %269, %cst_64 [1] : vector<1x17x21xf32> to vector<1x21xf32>
    %271 = vector.shape_cast %270 : vector<1x21xf32> to vector<1x1x21xf32>
    %272 = vector.broadcast %271 : vector<1x1x21xf32> to vector<1x17x21xf32>
    %273 = arith.subf %269, %272 : vector<1x17x21xf32>
    %274 = math.exp %273 : vector<1x17x21xf32>
    %cst_65 = arith.constant dense<0.000000e+00> : vector<1x21xf32>
    %275 = vector.multi_reduction <add>, %274, %cst_65 [1] : vector<1x17x21xf32> to vector<1x21xf32>
    %276 = vector.shape_cast %275 : vector<1x21xf32> to vector<1x1x21xf32>
    %277 = math.log %276 : vector<1x1x21xf32>
    %278 = arith.addf %271, %277 : vector<1x1x21xf32>
    %279 = arith.subf %62, %278 : vector<1x1x21xf32>
    %280 = vector.broadcast %279 : vector<1x1x21xf32> to vector<1x17x21xf32>
    %281 = arith.addf %52, %280 : vector<1x17x21xf32>
    %cst_66 = arith.constant dense<0xFF800000> : vector<1x17xf32>
    %282 = vector.multi_reduction <maximumf>, %281, %cst_66 [2] : vector<1x17x21xf32> to vector<1x17xf32>
    %283 = vector.shape_cast %282 : vector<1x17xf32> to vector<1x17x1xf32>
    %284 = vector.broadcast %283 : vector<1x17x1xf32> to vector<1x17x21xf32>
    %285 = arith.subf %281, %284 : vector<1x17x21xf32>
    %286 = math.exp %285 : vector<1x17x21xf32>
    %cst_67 = arith.constant dense<0.000000e+00> : vector<1x17xf32>
    %287 = vector.multi_reduction <add>, %286, %cst_67 [2] : vector<1x17x21xf32> to vector<1x17xf32>
    %288 = vector.shape_cast %287 : vector<1x17xf32> to vector<1x17x1xf32>
    %289 = math.log %288 : vector<1x17x1xf32>
    %290 = arith.addf %283, %289 : vector<1x17x1xf32>
    %291 = arith.subf %57, %290 : vector<1x17x1xf32>
    %292 = vector.broadcast %291 : vector<1x17x1xf32> to vector<1x17x21xf32>
    %293 = arith.addf %52, %292 : vector<1x17x21xf32>
    %cst_68 = arith.constant dense<0xFF800000> : vector<1x21xf32>
    %294 = vector.multi_reduction <maximumf>, %293, %cst_68 [1] : vector<1x17x21xf32> to vector<1x21xf32>
    %295 = vector.shape_cast %294 : vector<1x21xf32> to vector<1x1x21xf32>
    %296 = vector.broadcast %295 : vector<1x1x21xf32> to vector<1x17x21xf32>
    %297 = arith.subf %293, %296 : vector<1x17x21xf32>
    %298 = math.exp %297 : vector<1x17x21xf32>
    %cst_69 = arith.constant dense<0.000000e+00> : vector<1x21xf32>
    %299 = vector.multi_reduction <add>, %298, %cst_69 [1] : vector<1x17x21xf32> to vector<1x21xf32>
    %300 = vector.shape_cast %299 : vector<1x21xf32> to vector<1x1x21xf32>
    %301 = math.log %300 : vector<1x1x21xf32>
    %302 = arith.addf %295, %301 : vector<1x1x21xf32>
    %303 = arith.subf %62, %302 : vector<1x1x21xf32>
    %304 = vector.broadcast %303 : vector<1x1x21xf32> to vector<1x17x21xf32>
    %305 = arith.addf %52, %304 : vector<1x17x21xf32>
    %cst_70 = arith.constant dense<0xFF800000> : vector<1x17xf32>
    %306 = vector.multi_reduction <maximumf>, %305, %cst_70 [2] : vector<1x17x21xf32> to vector<1x17xf32>
    %307 = vector.shape_cast %306 : vector<1x17xf32> to vector<1x17x1xf32>
    %308 = vector.broadcast %307 : vector<1x17x1xf32> to vector<1x17x21xf32>
    %309 = arith.subf %305, %308 : vector<1x17x21xf32>
    %310 = math.exp %309 : vector<1x17x21xf32>
    %cst_71 = arith.constant dense<0.000000e+00> : vector<1x17xf32>
    %311 = vector.multi_reduction <add>, %310, %cst_71 [2] : vector<1x17x21xf32> to vector<1x17xf32>
    %312 = vector.shape_cast %311 : vector<1x17xf32> to vector<1x17x1xf32>
    %313 = math.log %312 : vector<1x17x1xf32>
    %314 = arith.addf %307, %313 : vector<1x17x1xf32>
    %315 = arith.subf %57, %314 : vector<1x17x1xf32>
    %316 = vector.broadcast %315 : vector<1x17x1xf32> to vector<1x17x21xf32>
    %317 = arith.addf %52, %316 : vector<1x17x21xf32>
    %cst_72 = arith.constant dense<0xFF800000> : vector<1x21xf32>
    %318 = vector.multi_reduction <maximumf>, %317, %cst_72 [1] : vector<1x17x21xf32> to vector<1x21xf32>
    %319 = vector.shape_cast %318 : vector<1x21xf32> to vector<1x1x21xf32>
    %320 = vector.broadcast %319 : vector<1x1x21xf32> to vector<1x17x21xf32>
    %321 = arith.subf %317, %320 : vector<1x17x21xf32>
    %322 = math.exp %321 : vector<1x17x21xf32>
    %cst_73 = arith.constant dense<0.000000e+00> : vector<1x21xf32>
    %323 = vector.multi_reduction <add>, %322, %cst_73 [1] : vector<1x17x21xf32> to vector<1x21xf32>
    %324 = vector.shape_cast %323 : vector<1x21xf32> to vector<1x1x21xf32>
    %325 = math.log %324 : vector<1x1x21xf32>
    %326 = arith.addf %319, %325 : vector<1x1x21xf32>
    %327 = arith.subf %62, %326 : vector<1x1x21xf32>
    %328 = vector.broadcast %327 : vector<1x1x21xf32> to vector<1x17x21xf32>
    %329 = arith.addf %52, %328 : vector<1x17x21xf32>
    %cst_74 = arith.constant dense<0xFF800000> : vector<1x17xf32>
    %330 = vector.multi_reduction <maximumf>, %329, %cst_74 [2] : vector<1x17x21xf32> to vector<1x17xf32>
    %331 = vector.shape_cast %330 : vector<1x17xf32> to vector<1x17x1xf32>
    %332 = vector.broadcast %331 : vector<1x17x1xf32> to vector<1x17x21xf32>
    %333 = arith.subf %329, %332 : vector<1x17x21xf32>
    %334 = math.exp %333 : vector<1x17x21xf32>
    %cst_75 = arith.constant dense<0.000000e+00> : vector<1x17xf32>
    %335 = vector.multi_reduction <add>, %334, %cst_75 [2] : vector<1x17x21xf32> to vector<1x17xf32>
    %336 = vector.shape_cast %335 : vector<1x17xf32> to vector<1x17x1xf32>
    %337 = math.log %336 : vector<1x17x1xf32>
    %338 = arith.addf %331, %337 : vector<1x17x1xf32>
    %339 = arith.subf %57, %338 : vector<1x17x1xf32>
    %340 = vector.broadcast %339 : vector<1x17x1xf32> to vector<1x17x21xf32>
    %341 = arith.addf %52, %340 : vector<1x17x21xf32>
    %cst_76 = arith.constant dense<0xFF800000> : vector<1x21xf32>
    %342 = vector.multi_reduction <maximumf>, %341, %cst_76 [1] : vector<1x17x21xf32> to vector<1x21xf32>
    %343 = vector.shape_cast %342 : vector<1x21xf32> to vector<1x1x21xf32>
    %344 = vector.broadcast %343 : vector<1x1x21xf32> to vector<1x17x21xf32>
    %345 = arith.subf %341, %344 : vector<1x17x21xf32>
    %346 = math.exp %345 : vector<1x17x21xf32>
    %cst_77 = arith.constant dense<0.000000e+00> : vector<1x21xf32>
    %347 = vector.multi_reduction <add>, %346, %cst_77 [1] : vector<1x17x21xf32> to vector<1x21xf32>
    %348 = vector.shape_cast %347 : vector<1x21xf32> to vector<1x1x21xf32>
    %349 = math.log %348 : vector<1x1x21xf32>
    %350 = arith.addf %343, %349 : vector<1x1x21xf32>
    %351 = arith.subf %62, %350 : vector<1x1x21xf32>
    %352 = vector.broadcast %351 : vector<1x1x21xf32> to vector<1x17x21xf32>
    %353 = arith.addf %52, %352 : vector<1x17x21xf32>
    %cst_78 = arith.constant dense<0xFF800000> : vector<1x17xf32>
    %354 = vector.multi_reduction <maximumf>, %353, %cst_78 [2] : vector<1x17x21xf32> to vector<1x17xf32>
    %355 = vector.shape_cast %354 : vector<1x17xf32> to vector<1x17x1xf32>
    %356 = vector.broadcast %355 : vector<1x17x1xf32> to vector<1x17x21xf32>
    %357 = arith.subf %353, %356 : vector<1x17x21xf32>
    %358 = math.exp %357 : vector<1x17x21xf32>
    %cst_79 = arith.constant dense<0.000000e+00> : vector<1x17xf32>
    %359 = vector.multi_reduction <add>, %358, %cst_79 [2] : vector<1x17x21xf32> to vector<1x17xf32>
    %360 = vector.shape_cast %359 : vector<1x17xf32> to vector<1x17x1xf32>
    %361 = math.log %360 : vector<1x17x1xf32>
    %362 = arith.addf %355, %361 : vector<1x17x1xf32>
    %363 = arith.subf %57, %362 : vector<1x17x1xf32>
    %364 = vector.broadcast %363 : vector<1x17x1xf32> to vector<1x17x21xf32>
    %365 = arith.addf %52, %364 : vector<1x17x21xf32>
    %cst_80 = arith.constant dense<0xFF800000> : vector<1x21xf32>
    %366 = vector.multi_reduction <maximumf>, %365, %cst_80 [1] : vector<1x17x21xf32> to vector<1x21xf32>
    %367 = vector.shape_cast %366 : vector<1x21xf32> to vector<1x1x21xf32>
    %368 = vector.broadcast %367 : vector<1x1x21xf32> to vector<1x17x21xf32>
    %369 = arith.subf %365, %368 : vector<1x17x21xf32>
    %370 = math.exp %369 : vector<1x17x21xf32>
    %cst_81 = arith.constant dense<0.000000e+00> : vector<1x21xf32>
    %371 = vector.multi_reduction <add>, %370, %cst_81 [1] : vector<1x17x21xf32> to vector<1x21xf32>
    %372 = vector.shape_cast %371 : vector<1x21xf32> to vector<1x1x21xf32>
    %373 = math.log %372 : vector<1x1x21xf32>
    %374 = arith.addf %367, %373 : vector<1x1x21xf32>
    %375 = arith.subf %62, %374 : vector<1x1x21xf32>
    %376 = vector.broadcast %375 : vector<1x1x21xf32> to vector<1x17x21xf32>
    %377 = arith.addf %52, %376 : vector<1x17x21xf32>
    %cst_82 = arith.constant dense<0xFF800000> : vector<1x17xf32>
    %378 = vector.multi_reduction <maximumf>, %377, %cst_82 [2] : vector<1x17x21xf32> to vector<1x17xf32>
    %379 = vector.shape_cast %378 : vector<1x17xf32> to vector<1x17x1xf32>
    %380 = vector.broadcast %379 : vector<1x17x1xf32> to vector<1x17x21xf32>
    %381 = arith.subf %377, %380 : vector<1x17x21xf32>
    %382 = math.exp %381 : vector<1x17x21xf32>
    %cst_83 = arith.constant dense<0.000000e+00> : vector<1x17xf32>
    %383 = vector.multi_reduction <add>, %382, %cst_83 [2] : vector<1x17x21xf32> to vector<1x17xf32>
    %384 = vector.shape_cast %383 : vector<1x17xf32> to vector<1x17x1xf32>
    %385 = math.log %384 : vector<1x17x1xf32>
    %386 = arith.addf %379, %385 : vector<1x17x1xf32>
    %387 = arith.subf %57, %386 : vector<1x17x1xf32>
    %388 = vector.broadcast %387 : vector<1x17x1xf32> to vector<1x17x21xf32>
    %389 = arith.addf %52, %388 : vector<1x17x21xf32>
    %cst_84 = arith.constant dense<0xFF800000> : vector<1x21xf32>
    %390 = vector.multi_reduction <maximumf>, %389, %cst_84 [1] : vector<1x17x21xf32> to vector<1x21xf32>
    %391 = vector.shape_cast %390 : vector<1x21xf32> to vector<1x1x21xf32>
    %392 = vector.broadcast %391 : vector<1x1x21xf32> to vector<1x17x21xf32>
    %393 = arith.subf %389, %392 : vector<1x17x21xf32>
    %394 = math.exp %393 : vector<1x17x21xf32>
    %cst_85 = arith.constant dense<0.000000e+00> : vector<1x21xf32>
    %395 = vector.multi_reduction <add>, %394, %cst_85 [1] : vector<1x17x21xf32> to vector<1x21xf32>
    %396 = vector.shape_cast %395 : vector<1x21xf32> to vector<1x1x21xf32>
    %397 = math.log %396 : vector<1x1x21xf32>
    %398 = arith.addf %391, %397 : vector<1x1x21xf32>
    %399 = arith.subf %62, %398 : vector<1x1x21xf32>
    %400 = vector.broadcast %399 : vector<1x1x21xf32> to vector<1x17x21xf32>
    %401 = arith.addf %52, %400 : vector<1x17x21xf32>
    %cst_86 = arith.constant dense<0xFF800000> : vector<1x17xf32>
    %402 = vector.multi_reduction <maximumf>, %401, %cst_86 [2] : vector<1x17x21xf32> to vector<1x17xf32>
    %403 = vector.shape_cast %402 : vector<1x17xf32> to vector<1x17x1xf32>
    %404 = vector.broadcast %403 : vector<1x17x1xf32> to vector<1x17x21xf32>
    %405 = arith.subf %401, %404 : vector<1x17x21xf32>
    %406 = math.exp %405 : vector<1x17x21xf32>
    %cst_87 = arith.constant dense<0.000000e+00> : vector<1x17xf32>
    %407 = vector.multi_reduction <add>, %406, %cst_87 [2] : vector<1x17x21xf32> to vector<1x17xf32>
    %408 = vector.shape_cast %407 : vector<1x17xf32> to vector<1x17x1xf32>
    %409 = math.log %408 : vector<1x17x1xf32>
    %410 = arith.addf %403, %409 : vector<1x17x1xf32>
    %411 = arith.subf %57, %410 : vector<1x17x1xf32>
    %412 = vector.broadcast %411 : vector<1x17x1xf32> to vector<1x17x21xf32>
    %413 = arith.addf %52, %412 : vector<1x17x21xf32>
    %cst_88 = arith.constant dense<0xFF800000> : vector<1x21xf32>
    %414 = vector.multi_reduction <maximumf>, %413, %cst_88 [1] : vector<1x17x21xf32> to vector<1x21xf32>
    %415 = vector.shape_cast %414 : vector<1x21xf32> to vector<1x1x21xf32>
    %416 = vector.broadcast %415 : vector<1x1x21xf32> to vector<1x17x21xf32>
    %417 = arith.subf %413, %416 : vector<1x17x21xf32>
    %418 = math.exp %417 : vector<1x17x21xf32>
    %cst_89 = arith.constant dense<0.000000e+00> : vector<1x21xf32>
    %419 = vector.multi_reduction <add>, %418, %cst_89 [1] : vector<1x17x21xf32> to vector<1x21xf32>
    %420 = vector.shape_cast %419 : vector<1x21xf32> to vector<1x1x21xf32>
    %421 = math.log %420 : vector<1x1x21xf32>
    %422 = arith.addf %415, %421 : vector<1x1x21xf32>
    %423 = arith.subf %62, %422 : vector<1x1x21xf32>
    %424 = vector.broadcast %423 : vector<1x1x21xf32> to vector<1x17x21xf32>
    %425 = arith.addf %52, %424 : vector<1x17x21xf32>
    %cst_90 = arith.constant dense<0xFF800000> : vector<1x17xf32>
    %426 = vector.multi_reduction <maximumf>, %425, %cst_90 [2] : vector<1x17x21xf32> to vector<1x17xf32>
    %427 = vector.shape_cast %426 : vector<1x17xf32> to vector<1x17x1xf32>
    %428 = vector.broadcast %427 : vector<1x17x1xf32> to vector<1x17x21xf32>
    %429 = arith.subf %425, %428 : vector<1x17x21xf32>
    %430 = math.exp %429 : vector<1x17x21xf32>
    %cst_91 = arith.constant dense<0.000000e+00> : vector<1x17xf32>
    %431 = vector.multi_reduction <add>, %430, %cst_91 [2] : vector<1x17x21xf32> to vector<1x17xf32>
    %432 = vector.shape_cast %431 : vector<1x17xf32> to vector<1x17x1xf32>
    %433 = math.log %432 : vector<1x17x1xf32>
    %434 = arith.addf %427, %433 : vector<1x17x1xf32>
    %435 = arith.subf %57, %434 : vector<1x17x1xf32>
    %436 = vector.broadcast %435 : vector<1x17x1xf32> to vector<1x17x21xf32>
    %437 = arith.addf %52, %436 : vector<1x17x21xf32>
    %cst_92 = arith.constant dense<0xFF800000> : vector<1x21xf32>
    %438 = vector.multi_reduction <maximumf>, %437, %cst_92 [1] : vector<1x17x21xf32> to vector<1x21xf32>
    %439 = vector.shape_cast %438 : vector<1x21xf32> to vector<1x1x21xf32>
    %440 = vector.broadcast %439 : vector<1x1x21xf32> to vector<1x17x21xf32>
    %441 = arith.subf %437, %440 : vector<1x17x21xf32>
    %442 = math.exp %441 : vector<1x17x21xf32>
    %cst_93 = arith.constant dense<0.000000e+00> : vector<1x21xf32>
    %443 = vector.multi_reduction <add>, %442, %cst_93 [1] : vector<1x17x21xf32> to vector<1x21xf32>
    %444 = vector.shape_cast %443 : vector<1x21xf32> to vector<1x1x21xf32>
    %445 = math.log %444 : vector<1x1x21xf32>
    %446 = arith.addf %439, %445 : vector<1x1x21xf32>
    %447 = arith.subf %62, %446 : vector<1x1x21xf32>
    %448 = vector.broadcast %447 : vector<1x1x21xf32> to vector<1x17x21xf32>
    %449 = arith.addf %52, %448 : vector<1x17x21xf32>
    %cst_94 = arith.constant dense<0xFF800000> : vector<1x17xf32>
    %450 = vector.multi_reduction <maximumf>, %449, %cst_94 [2] : vector<1x17x21xf32> to vector<1x17xf32>
    %451 = vector.shape_cast %450 : vector<1x17xf32> to vector<1x17x1xf32>
    %452 = vector.broadcast %451 : vector<1x17x1xf32> to vector<1x17x21xf32>
    %453 = arith.subf %449, %452 : vector<1x17x21xf32>
    %454 = math.exp %453 : vector<1x17x21xf32>
    %cst_95 = arith.constant dense<0.000000e+00> : vector<1x17xf32>
    %455 = vector.multi_reduction <add>, %454, %cst_95 [2] : vector<1x17x21xf32> to vector<1x17xf32>
    %456 = vector.shape_cast %455 : vector<1x17xf32> to vector<1x17x1xf32>
    %457 = math.log %456 : vector<1x17x1xf32>
    %458 = arith.addf %451, %457 : vector<1x17x1xf32>
    %459 = arith.subf %57, %458 : vector<1x17x1xf32>
    %460 = vector.broadcast %459 : vector<1x17x1xf32> to vector<1x17x21xf32>
    %461 = arith.addf %52, %460 : vector<1x17x21xf32>
    %cst_96 = arith.constant dense<0xFF800000> : vector<1x21xf32>
    %462 = vector.multi_reduction <maximumf>, %461, %cst_96 [1] : vector<1x17x21xf32> to vector<1x21xf32>
    %463 = vector.shape_cast %462 : vector<1x21xf32> to vector<1x1x21xf32>
    %464 = vector.broadcast %463 : vector<1x1x21xf32> to vector<1x17x21xf32>
    %465 = arith.subf %461, %464 : vector<1x17x21xf32>
    %466 = math.exp %465 : vector<1x17x21xf32>
    %cst_97 = arith.constant dense<0.000000e+00> : vector<1x21xf32>
    %467 = vector.multi_reduction <add>, %466, %cst_97 [1] : vector<1x17x21xf32> to vector<1x21xf32>
    %468 = vector.shape_cast %467 : vector<1x21xf32> to vector<1x1x21xf32>
    %469 = math.log %468 : vector<1x1x21xf32>
    %470 = arith.addf %463, %469 : vector<1x1x21xf32>
    %471 = arith.subf %62, %470 : vector<1x1x21xf32>
    %472 = vector.broadcast %471 : vector<1x1x21xf32> to vector<1x17x21xf32>
    %473 = arith.addf %52, %472 : vector<1x17x21xf32>
    %cst_98 = arith.constant dense<0xFF800000> : vector<1x17xf32>
    %474 = vector.multi_reduction <maximumf>, %473, %cst_98 [2] : vector<1x17x21xf32> to vector<1x17xf32>
    %475 = vector.shape_cast %474 : vector<1x17xf32> to vector<1x17x1xf32>
    %476 = vector.broadcast %475 : vector<1x17x1xf32> to vector<1x17x21xf32>
    %477 = arith.subf %473, %476 : vector<1x17x21xf32>
    %478 = math.exp %477 : vector<1x17x21xf32>
    %cst_99 = arith.constant dense<0.000000e+00> : vector<1x17xf32>
    %479 = vector.multi_reduction <add>, %478, %cst_99 [2] : vector<1x17x21xf32> to vector<1x17xf32>
    %480 = vector.shape_cast %479 : vector<1x17xf32> to vector<1x17x1xf32>
    %481 = math.log %480 : vector<1x17x1xf32>
    %482 = arith.addf %475, %481 : vector<1x17x1xf32>
    %483 = arith.subf %57, %482 : vector<1x17x1xf32>
    %484 = vector.broadcast %483 : vector<1x17x1xf32> to vector<1x17x21xf32>
    %485 = arith.addf %52, %484 : vector<1x17x21xf32>
    %cst_100 = arith.constant dense<0xFF800000> : vector<1x21xf32>
    %486 = vector.multi_reduction <maximumf>, %485, %cst_100 [1] : vector<1x17x21xf32> to vector<1x21xf32>
    %487 = vector.shape_cast %486 : vector<1x21xf32> to vector<1x1x21xf32>
    %488 = vector.broadcast %487 : vector<1x1x21xf32> to vector<1x17x21xf32>
    %489 = arith.subf %485, %488 : vector<1x17x21xf32>
    %490 = math.exp %489 : vector<1x17x21xf32>
    %cst_101 = arith.constant dense<0.000000e+00> : vector<1x21xf32>
    %491 = vector.multi_reduction <add>, %490, %cst_101 [1] : vector<1x17x21xf32> to vector<1x21xf32>
    %492 = vector.shape_cast %491 : vector<1x21xf32> to vector<1x1x21xf32>
    %493 = math.log %492 : vector<1x1x21xf32>
    %494 = arith.addf %487, %493 : vector<1x1x21xf32>
    %495 = arith.subf %62, %494 : vector<1x1x21xf32>
    %496 = vector.broadcast %495 : vector<1x1x21xf32> to vector<1x17x21xf32>
    %497 = arith.addf %52, %496 : vector<1x17x21xf32>
    %cst_102 = arith.constant dense<0xFF800000> : vector<1x17xf32>
    %498 = vector.multi_reduction <maximumf>, %497, %cst_102 [2] : vector<1x17x21xf32> to vector<1x17xf32>
    %499 = vector.shape_cast %498 : vector<1x17xf32> to vector<1x17x1xf32>
    %500 = vector.broadcast %499 : vector<1x17x1xf32> to vector<1x17x21xf32>
    %501 = arith.subf %497, %500 : vector<1x17x21xf32>
    %502 = math.exp %501 : vector<1x17x21xf32>
    %cst_103 = arith.constant dense<0.000000e+00> : vector<1x17xf32>
    %503 = vector.multi_reduction <add>, %502, %cst_103 [2] : vector<1x17x21xf32> to vector<1x17xf32>
    %504 = vector.shape_cast %503 : vector<1x17xf32> to vector<1x17x1xf32>
    %505 = math.log %504 : vector<1x17x1xf32>
    %506 = arith.addf %499, %505 : vector<1x17x1xf32>
    %507 = arith.subf %57, %506 : vector<1x17x1xf32>
    %508 = vector.broadcast %507 : vector<1x17x1xf32> to vector<1x17x21xf32>
    %509 = arith.addf %52, %508 : vector<1x17x21xf32>
    %cst_104 = arith.constant dense<0xFF800000> : vector<1x21xf32>
    %510 = vector.multi_reduction <maximumf>, %509, %cst_104 [1] : vector<1x17x21xf32> to vector<1x21xf32>
    %511 = vector.shape_cast %510 : vector<1x21xf32> to vector<1x1x21xf32>
    %512 = vector.broadcast %511 : vector<1x1x21xf32> to vector<1x17x21xf32>
    %513 = arith.subf %509, %512 : vector<1x17x21xf32>
    %514 = math.exp %513 : vector<1x17x21xf32>
    %cst_105 = arith.constant dense<0.000000e+00> : vector<1x21xf32>
    %515 = vector.multi_reduction <add>, %514, %cst_105 [1] : vector<1x17x21xf32> to vector<1x21xf32>
    %516 = vector.shape_cast %515 : vector<1x21xf32> to vector<1x1x21xf32>
    %517 = math.log %516 : vector<1x1x21xf32>
    %518 = arith.addf %511, %517 : vector<1x1x21xf32>
    %519 = arith.subf %62, %518 : vector<1x1x21xf32>
    %520 = vector.broadcast %519 : vector<1x1x21xf32> to vector<1x17x21xf32>
    %521 = arith.addf %52, %520 : vector<1x17x21xf32>
    %cst_106 = arith.constant dense<0xFF800000> : vector<1x17xf32>
    %522 = vector.multi_reduction <maximumf>, %521, %cst_106 [2] : vector<1x17x21xf32> to vector<1x17xf32>
    %523 = vector.shape_cast %522 : vector<1x17xf32> to vector<1x17x1xf32>
    %524 = vector.broadcast %523 : vector<1x17x1xf32> to vector<1x17x21xf32>
    %525 = arith.subf %521, %524 : vector<1x17x21xf32>
    %526 = math.exp %525 : vector<1x17x21xf32>
    %cst_107 = arith.constant dense<0.000000e+00> : vector<1x17xf32>
    %527 = vector.multi_reduction <add>, %526, %cst_107 [2] : vector<1x17x21xf32> to vector<1x17xf32>
    %528 = vector.shape_cast %527 : vector<1x17xf32> to vector<1x17x1xf32>
    %529 = math.log %528 : vector<1x17x1xf32>
    %530 = arith.addf %523, %529 : vector<1x17x1xf32>
    %531 = arith.subf %57, %530 : vector<1x17x1xf32>
    %532 = vector.broadcast %531 : vector<1x17x1xf32> to vector<1x17x21xf32>
    %533 = arith.addf %52, %532 : vector<1x17x21xf32>
    %cst_108 = arith.constant dense<0xFF800000> : vector<1x21xf32>
    %534 = vector.multi_reduction <maximumf>, %533, %cst_108 [1] : vector<1x17x21xf32> to vector<1x21xf32>
    %535 = vector.shape_cast %534 : vector<1x21xf32> to vector<1x1x21xf32>
    %536 = vector.broadcast %535 : vector<1x1x21xf32> to vector<1x17x21xf32>
    %537 = arith.subf %533, %536 : vector<1x17x21xf32>
    %538 = math.exp %537 : vector<1x17x21xf32>
    %cst_109 = arith.constant dense<0.000000e+00> : vector<1x21xf32>
    %539 = vector.multi_reduction <add>, %538, %cst_109 [1] : vector<1x17x21xf32> to vector<1x21xf32>
    %540 = vector.shape_cast %539 : vector<1x21xf32> to vector<1x1x21xf32>
    %541 = math.log %540 : vector<1x1x21xf32>
    %542 = arith.addf %535, %541 : vector<1x1x21xf32>
    %543 = arith.subf %62, %542 : vector<1x1x21xf32>
    %544 = vector.broadcast %531 : vector<1x17x1xf32> to vector<1x17x21xf32>
    %545 = arith.addf %52, %544 : vector<1x17x21xf32>
    %546 = vector.broadcast %543 : vector<1x1x21xf32> to vector<1x17x21xf32>
    %547 = arith.addf %545, %546 : vector<1x17x21xf32>
    %cst_110 = arith.constant -3.58351898 : f32
    %548 = vector.broadcast %cst_110 : f32 to vector<1x17x21xf32>
    %549 = arith.subf %547, %548 : vector<1x17x21xf32>
    %cst_111 = arith.constant dense<0xFF800000> : vector<1x17xf32>
    %550 = vector.multi_reduction <maximumf>, %549, %cst_111 [2] : vector<1x17x21xf32> to vector<1x17xf32>
    %551 = vector.shape_cast %550 : vector<1x17xf32> to vector<1x17x1xf32>
    %552 = vector.broadcast %551 : vector<1x17x1xf32> to vector<1x17x21xf32>
    %553 = arith.subf %549, %552 : vector<1x17x21xf32>
    %554 = math.exp %553 : vector<1x17x21xf32>
    %cst_112 = arith.constant dense<0.000000e+00> : vector<1x17xf32>
    %555 = vector.multi_reduction <add>, %554, %cst_112 [2] : vector<1x17x21xf32> to vector<1x17xf32>
    %556 = vector.shape_cast %555 : vector<1x17xf32> to vector<1x17x1xf32>
    %557 = tpu.reciprocal %556 {approx = true} : vector<1x17x1xf32> -> vector<1x17x1xf32>
    %558 = vector.broadcast %557 : vector<1x17x1xf32> to vector<1x17x21xf32>
    %559 = arith.mulf %554, %558 : vector<1x17x21xf32>
    %cst_113 = arith.constant 0.000000e+00 : f32
    %560 = vector.broadcast %cst_113 : f32 to vector<1x17x128xf32>
    %c0_114 = arith.constant 0 : index
    %c0_115 = arith.constant 0 : index
    %c0_116 = arith.constant 0 : index
    %561 = vector.load %arg6[%c0_114, %c0_115, %c0_116] : memref<1x17x128xf32, #tpu.memory_space<vmem>>, vector<1x17x128xf32>
    tpu.vector_store %arg6[%c0_114, %c0_115, %c0_116], %560 {strides = array<i32>} : memref<1x17x128xf32, #tpu.memory_space<vmem>>, vector<1x17x128xf32>,
    %c0_117 = arith.constant 0 : index
    %c0_118 = arith.constant 0 : index
    %c0_119 = arith.constant 0 : index
    %562 = vector.load %arg6[%c0_117, %c0_118, %c0_119] : memref<1x17x128xf32, #tpu.memory_space<vmem>>, vector<1x17x21xf32>
    tpu.vector_store %arg6[%c0_117, %c0_118, %c0_119], %559 {strides = array<i32>} : memref<1x17x128xf32, #tpu.memory_space<vmem>>, vector<1x17x21xf32>,
    return
  }
  func.func @transform_0(%arg0: i32) -> (i32, i32, i32) {
    %c0_i32 = arith.constant 0 : i32
    %c0_i32_0 = arith.constant 0 : i32
    %c0_i32_1 = arith.constant 0 : i32
    return %arg0, %c0_i32, %c0_i32_0 : i32, i32, i32
  }
  func.func @transform_1(%arg0: i32) -> (i32, i32) {
    %c0_i32 = arith.constant 0 : i32
    %c0_i32_0 = arith.constant 0 : i32
    %c0_i32_1 = arith.constant 0 : i32
    return %c0_i32, %c0_i32_0 : i32, i32
  }
  func.func @transform_2(%arg0: i32) -> (i32, i32) {
    %c0_i32 = arith.constant 0 : i32
    %c0_i32_0 = arith.constant 0 : i32
    %c0_i32_1 = arith.constant 0 : i32
    return %c0_i32, %c0_i32_0 : i32, i32
  }
  func.func @transform_3(%arg0: i32) -> (i32, i32) {
    %c0_i32 = arith.constant 0 : i32
    %c0_i32_0 = arith.constant 0 : i32
    %c0_i32_1 = arith.constant 0 : i32
    return %c0_i32, %c0_i32_0 : i32, i32
  }
  func.func @transform_4(%arg0: i32) -> (i32, i32) {
    %c0_i32 = arith.constant 0 : i32
    %c0_i32_0 = arith.constant 0 : i32
    %c0_i32_1 = arith.constant 0 : i32
    return %c0_i32, %c0_i32_0 : i32, i32
  }
  func.func @transform_5(%arg0: i32) -> (i32, i32, i32) {
    %c0_i32 = arith.constant 0 : i32
    %c0_i32_0 = arith.constant 0 : i32
    %c0_i32_1 = arith.constant 0 : i32
    return %arg0, %c0_i32, %c0_i32_0 : i32, i32, i32
  }
}

</mosaic_0001>

<llo_original>
// kernel: tpu_custom_call.1
$region0: #{tpu_custom_call.1}
  #allocation0 [shape = 'u32[]', space=smem, size = 0x4, offset = 0x4, fixed_abs, tag = 'smem constant byte address 0x4 - core index']
  #allocation1 [shape = 'u32[72,128]{1,0:T(1,128)}', space=vmem, size = 0x9000, scoped, tag = 'internal scratch']
  %s0 = inlined_call_operand.vmem [shape: bf16[2,48,256], index: 0, kind: input, shape index: {}]
  %s1 = inlined_call_operand.hbm [shape: bf16[256,256], index: 1, kind: input, shape index: {}]
  %s2 = inlined_call_operand.hbm [shape: bf16[256,256], index: 2, kind: input, shape index: {}]
  %s3 = inlined_call_operand.vmem [shape: bf16[256,64], index: 3, kind: input, shape index: {}]
  %s4 = inlined_call_operand.vmem [shape: f32[1,896], index: 4, kind: input, shape index: {}]
  %s5 = inlined_call_operand.vmem [shape: f32[2,17,128], index: 5, kind: output, shape index: {}]
  %s6 = sld [smem:[#allocation0]]
  $region61: #{tpu_custom_call.1} parent=0
    _
  %s8 = ssub.s32 1, %s6
  %s9 = scalar_select 0, %s8, %s6
  $region1: #{tpu_custom_call.1} parent=0
    #allocation2 [shape = 'u8[131072]{0}', space=vmem, size = 0x20000, scoped, tag = 'input window, operand 1, single buffered']
    #allocation3 [shape = 's32[2]{0}', space=sflag, size = 0x8, scoped, tag = 'scoped memory for tpu_custom_call.1']
    #allocation4 [shape = 'u8[131072]{0}', space=vmem, size = 0x20000, scoped, tag = 'input window, operand 2, single buffered']
    #allocation5 [shape = 's32[1]{0}', space=sflag, size = 0x4, scoped, tag = 'scoped memory for tpu_custom_call.1']
    %10 = vsyncpa [#allocation3], 0
    %11 = vsyncpa [#allocation5], 0
    loop: start=0, step=1, limit=4
    $region2: #{tpu_custom_call.1} parent=1 // loop_pre_header
      _
    $region3: #{tpu_custom_call.1} parent=1 // loop_header
      %s13 = sphi 0, %s17
      %p14 = scmp.ge.s32.totalorder %s13, 4
      %s23 = sphi 0, %s25
      %s26 = sphi 0, %s23
      %s27 = sphi 0, %s26
      %s43 = sphi 0, %s27
      %s47 = sphi 0, %s47
      %s49 = sphi 0, %s47
      %s50 = sphi 0, %s49
      %s64 = sphi 0, %s50
      %s68 = sphi 0, %s68
      %s70 = sphi 0, %s68
      %s71 = sphi 0, %s70
      %s85 = sphi 0, %s71
      %s89 = sphi 0, %s89
      %s91 = sphi 0, %s89
      %s92 = sphi 0, %s91
      %s106 = sphi 0, %s92
      %s110 = sphi 0, %s110
      %s112 = sphi 0, %s110
      %s113 = sphi 0, %s112
      %s127 = sphi 0, %s113
      %s133 = sphi 0, %s135
      %s136 = sphi 0, %s133
      %s137 = sphi 0, %s136
      %s153 = sphi 0, %s137
    $region4: #{tpu_custom_call.1} parent=1 // loop_header_branch
      %16 = sbr.rel (%p14) target = $region8
    $region5: #{tpu_custom_call.1} parent=1 // loop_body
      %s18 = ssub.s32 %s13, 1
      %s19 = ssub.s32 %s13, 2
      %s20 = sadd.s32 %s13, 1
      %s21 = ssub.s32 %s13, %s20
      %p22 = scmp.eq.s32.totalorder %s21, 0
      %s24 = sadd.s32 %s23, 1
      %s25 = scalar_select %p22, %s23, %s24
      %p28 = pneg %p22
      %p29 = scmp.eq.s32.totalorder %s13, 1
      %p30 = por %p28, %p29
      %p31 = scmp.ne.s32.totalorder %s23, %s26
      %p32 = scmp.eq.s32.totalorder %s13, 0
      %p33 = por %p31, %p32
      %p34 = scmp.ne.s32.totalorder %s23, %s26
      %p35 = scmp.eq.s32.totalorder %s18, 1
      %p36 = por %p34, %p35
      %p37 = scmp.ne.s32.totalorder %s26, %s27
      %p38 = scmp.eq.s32.totalorder %s18, 0
      %p39 = por %p37, %p38
      %p40 = scmp.ne.s32.totalorder %s26, %s27
      %p41 = scmp.eq.s32.totalorder %s19, 1
      %p42 = por %p40, %p41
      %p44 = scmp.ne.s32.totalorder %s27, %s43
      %p45 = scmp.eq.s32.totalorder %s19, 0
      %p46 = por %p44, %p45
      %s48 = sadd.s32 %s47, 1
      %p51 = scmp.eq.s32.totalorder %s13, 1
      %p52 = scmp.ne.s32.totalorder %s47, %s49
      %p53 = scmp.eq.s32.totalorder %s13, 0
      %p54 = por %p52, %p53
      %p55 = scmp.ne.s32.totalorder %s47, %s49
      %p56 = scmp.eq.s32.totalorder %s18, 1
      %p57 = por %p55, %p56
      %p58 = scmp.ne.s32.totalorder %s49, %s50
      %p59 = scmp.eq.s32.totalorder %s18, 0
      %p60 = por %p58, %p59
      %p61 = scmp.ne.s32.totalorder %s49, %s50
      %p62 = scmp.eq.s32.totalorder %s19, 1
      %p63 = por %p61, %p62
      %p65 = scmp.ne.s32.totalorder %s50, %s64
      %p66 = scmp.eq.s32.totalorder %s19, 0
      %p67 = por %p65, %p66
      %s69 = sadd.s32 %s68, 1
      %p72 = scmp.eq.s32.totalorder %s13, 1
      %p73 = scmp.ne.s32.totalorder %s68, %s70
      %p74 = scmp.eq.s32.totalorder %s13, 0
      %p75 = por %p73, %p74
      %p76 = scmp.ne.s32.totalorder %s68, %s70
      %p77 = scmp.eq.s32.totalorder %s18, 1
      %p78 = por %p76, %p77
      %p79 = scmp.ne.s32.totalorder %s70, %s71
      %p80 = scmp.eq.s32.totalorder %s18, 0
      %p81 = por %p79, %p80
      %p82 = scmp.ne.s32.totalorder %s70, %s71
      %p83 = scmp.eq.s32.totalorder %s19, 1
      %p84 = por %p82, %p83
      %p86 = scmp.ne.s32.totalorder %s71, %s85
      %p87 = scmp.eq.s32.totalorder %s19, 0
      %p88 = por %p86, %p87
      %s90 = sadd.s32 %s89, 1
      %p93 = scmp.eq.s32.totalorder %s13, 1
      %p94 = scmp.ne.s32.totalorder %s89, %s91
      %p95 = scmp.eq.s32.totalorder %s13, 0
      %p96 = por %p94, %p95
      %p97 = scmp.ne.s32.totalorder %s89, %s91
      %p98 = scmp.eq.s32.totalorder %s18, 1
      %p99 = por %p97, %p98
      %p100 = scmp.ne.s32.totalorder %s91, %s92
      %p101 = scmp.eq.s32.totalorder %s18, 0
      %p102 = por %p100, %p101
      %p103 = scmp.ne.s32.totalorder %s91, %s92
      %p104 = scmp.eq.s32.totalorder %s19, 1
      %p105 = por %p103, %p104
      %p107 = scmp.ne.s32.totalorder %s92, %s106
      %p108 = scmp.eq.s32.totalorder %s19, 0
      %p109 = por %p107, %p108
      %s111 = sadd.s32 %s110, 1
      %p114 = scmp.eq.s32.totalorder %s13, 1
      %p115 = scmp.ne.s32.totalorder %s110, %s112
      %p116 = scmp.eq.s32.totalorder %s13, 0
      %p117 = por %p115, %p116
      %p118 = scmp.ne.s32.totalorder %s110, %s112
      %p119 = scmp.eq.s32.totalorder %s18, 1
      %p120 = por %p118, %p119
      %p121 = scmp.ne.s32.totalorder %s112, %s113
      %p122 = scmp.eq.s32.totalorder %s18, 0
      %p123 = por %p121, %p122
      %p124 = scmp.ne.s32.totalorder %s112, %s113
      %p125 = scmp.eq.s32.totalorder %s19, 1
      %p126 = por %p124, %p125
      %p128 = scmp.ne.s32.totalorder %s113, %s127
      %p129 = scmp.eq.s32.totalorder %s19, 0
      %p130 = por %p128, %p129
      %s131 = ssub.s32 %s13, %s20
      %p132 = scmp.eq.s32.totalorder %s131, 0
      %s134 = sadd.s32 %s133, 1
      %s135 = scalar_select %p132, %s133, %s134
      %p138 = pneg %p132
      %p139 = scmp.eq.s32.totalorder %s13, 1
      %p140 = por %p138, %p139
      %p141 = scmp.ne.s32.totalorder %s133, %s136
      %p142 = scmp.eq.s32.totalorder %s13, 0
      %p143 = por %p141, %p142
      %p144 = scmp.ne.s32.totalorder %s133, %s136
      %p145 = scmp.eq.s32.totalorder %s18, 1
      %p146 = por %p144, %p145
      %p147 = scmp.ne.s32.totalorder %s136, %s137
      %p148 = scmp.eq.s32.totalorder %s18, 0
      %p149 = por %p147, %p148
      %p150 = scmp.ne.s32.totalorder %s136, %s137
      %p151 = scmp.eq.s32.totalorder %s19, 1
      %p152 = por %p150, %p151
      %p154 = scmp.ne.s32.totalorder %s137, %s153
      %p155 = scmp.eq.s32.totalorder %s19, 0
      %p156 = por %p154, %p155
      %p157 = scmp.le.s32.totalorder 1, %s13
      %p158 = scmp.lt.s32.totalorder %s13, 3
      %p159 = pnand %p157, %p158
      %p160 = pneg %p159
      // Predicated region
      $region9: #{tpu_custom_call.1} parent=5 // pred_check
        _
      $region10: #{tpu_custom_call.1} parent=5 // pred_check_branch
        %162 = sbr.rel (%p159) target = $region12
      $region11: #{tpu_custom_call.1} parent=5 // pred_region
        %s163 = ssub.s32 %s13, 1
        // Predicated region
        $region13: #{tpu_custom_call.1} parent=11 // pred_check
          %p164 = pneg %p60
        $region14: #{tpu_custom_call.1} parent=11 // pred_check_branch
          %166 = sbr.rel (%p164) target = $region16
        $region15: #{tpu_custom_call.1} parent=11 // pred_region
          %168 = vsyncadd [#allocation3], 0
          %s169 = sshll.u32 %s1, 4
          %s170 = int_to_ptr.hbm [resolvable:$true] %s169
          %s171 = sshll.u32 [#allocation2], 4
          %s172 = int_to_ptr.vmem [resolvable:$true] %s171
          %177 = dma.hbm_to_vmem [thread:$0]  %s170, 4096, %s172, [#allocation3], 128, 128, 8
        $region16: #{tpu_custom_call.1} parent=11 // pred_fallthru
          _
        // Predicated region
        $region17: #{tpu_custom_call.1} parent=11 // pred_check
          %p178 = pneg %p81
        $region18: #{tpu_custom_call.1} parent=11 // pred_check_branch
          %180 = sbr.rel (%p178) target = $region20
        $region19: #{tpu_custom_call.1} parent=11 // pred_region
          %182 = vsyncadd [#allocation5], 0
          %s183 = sshll.u32 %s2, 4
          %s184 = int_to_ptr.hbm [resolvable:$true] %s183
          %s185 = sshll.u32 [#allocation4], 4
          %s186 = int_to_ptr.vmem [resolvable:$true] %s185
          %191 = dma.hbm_to_vmem [thread:$0]  %s184, 4096, %s186, [#allocation5], 128, 128, 8
        $region20: #{tpu_custom_call.1} parent=11 // pred_fallthru
          _
        // Predicated region
        $region21: #{tpu_custom_call.1} parent=11 // pred_check
          %p192 = pneg %p102
        $region22: #{tpu_custom_call.1} parent=11 // pred_check_branch
          %194 = sbr.rel (%p192) target = $region24
        $region23: #{tpu_custom_call.1} parent=11 // pred_region
          _
        $region24: #{tpu_custom_call.1} parent=11 // pred_fallthru
          _
        // Predicated region
        $region25: #{tpu_custom_call.1} parent=11 // pred_check
          %p195 = pneg %p123
        $region26: #{tpu_custom_call.1} parent=11 // pred_check_branch
          %197 = sbr.rel (%p195) target = $region28
        $region27: #{tpu_custom_call.1} parent=11 // pred_region
          _
        $region28: #{tpu_custom_call.1} parent=11 // pred_fallthru
          _
      $region12: #{tpu_custom_call.1} parent=5 // pred_fallthru
        _
      %p198 = scmp.lt.s32.totalorder %s13, 2
      // Predicated region
      $region29: #{tpu_custom_call.1} parent=5 // pred_check
        %p199 = pneg %p198
      $region30: #{tpu_custom_call.1} parent=5 // pred_check_branch
        %201 = sbr.rel (%p199) target = $region32
      $region31: #{tpu_custom_call.1} parent=5 // pred_region
        // Predicated region
        $region33: #{tpu_custom_call.1} parent=31 // pred_check
          %p202 = pneg %p33
        $region34: #{tpu_custom_call.1} parent=31 // pred_check_branch
          %204 = sbr.rel (%p202) target = $region36
        $region35: #{tpu_custom_call.1} parent=31 // pred_region
          %p205 = scmp.lt.s32.totalorder %s13, 1
          %s206 = scalar_select %p205, %s13, 1
          %s207 = smul.addr %s206, 12
          %s208 = smul.addr %s207, 4
          %s209 = scalar_lea.vmem %s0, %s208
        $region36: #{tpu_custom_call.1} parent=31 // pred_fallthru
          _
      $region32: #{tpu_custom_call.1} parent=5 // pred_fallthru
        _
      %p210 = scmp.le.s32.totalorder 1, %s13
      %p211 = scmp.lt.s32.totalorder %s13, 3
      %p212 = pnand %p210, %p211
      %p213 = pneg %p212
      // Predicated region
      $region37: #{tpu_custom_call.1} parent=5 // pred_check
        _
      $region38: #{tpu_custom_call.1} parent=5 // pred_check_branch
        %215 = sbr.rel (%p212) target = $region40
      $region39: #{tpu_custom_call.1} parent=5 // pred_region
        %s216 = ssub.s32 %s13, 1
        // Predicated region
        $region41: #{tpu_custom_call.1} parent=39 // pred_check
          %p217 = pneg %p60
        $region42: #{tpu_custom_call.1} parent=39 // pred_check_branch
          %219 = sbr.rel (%p217) target = $region44
        $region43: #{tpu_custom_call.1} parent=39 // pred_region
          %221 = dma.done [#allocation3], 4096
        $region44: #{tpu_custom_call.1} parent=39 // pred_fallthru
          _
        // Predicated region
        $region45: #{tpu_custom_call.1} parent=39 // pred_check
          %p222 = pneg %p81
        $region46: #{tpu_custom_call.1} parent=39 // pred_check_branch
          %224 = sbr.rel (%p222) target = $region48
        $region47: #{tpu_custom_call.1} parent=39 // pred_region
          %226 = dma.done [#allocation5], 4096
        $region48: #{tpu_custom_call.1} parent=39 // pred_fallthru
          _
        %p227 = scmp.lt.s32.totalorder %s18, 1
        %s228 = scalar_select %p227, %s18, 1
        %s229 = smul.addr %s228, 12
        %s230 = smul.addr %s229, 4
        %s231 = scalar_lea.vmem %s0, %s230
        %p232 = pneg %p39
        %p233 = pneg %p36
        %p234 = pneg %p60
        %p235 = pneg %p57
        %p236 = pneg %p81
        %p237 = pneg %p78
        %p238 = pneg %p102
        %p239 = pneg %p99
        %p240 = pneg %p123
        %p241 = pneg %p120
        %p242 = pneg %p149
        %p243 = pneg %p146
        %p244 = scmp.lt.s32.totalorder %s18, 1
        %s245 = scalar_select %p244, %s18, 1
        %s246 = smul.addr %s245, 3
        %s247 = smul.addr %s246, 8
        %s248 = scalar_lea.vmem %s5, %s247
        %p249 = scmp.lt.s32.totalorder %s18, 1
        %s250 = scalar_select %p249, %s18, 1
        %s251 = smul.addr %s250, 12
        %s252 = smul.addr %s251, 4
        %s253 = scalar_lea.vmem %s0, %s252
        %p254 = scmp.lt.s32.totalorder %s18, 1
        %s255 = scalar_select %p254, %s18, 1
        %s256 = smul.addr %s255, 3
        %s257 = smul.addr %s256, 8
        %s258 = scalar_lea.vmem %s5, %s257
        %v260 = vld [vmem:[%s253] sm:$0xff]
        %v261 = vld [vmem:[%s253 + $0x8] sm:$0xff]
        %v262 = vld [vmem:[%s253 + $0x10] sm:$0xff]
        %v263 = vld [vmem:[%s253 + $0x18] sm:$0xff]
        %v264 = vld [vmem:[%s253 + $0x20] sm:$0xff]
        %v265 = vld [vmem:[%s253 + $0x28] sm:$0xff]
        %v266 = vld [vmem:[#allocation2] sm:$0xff]
        %v267 = vld [vmem:[#allocation2 + $0x8] sm:$0xff]
        %v268 = vld [vmem:[#allocation2 + $0x10] sm:$0xff]
        %v269 = vld [vmem:[#allocation2 + $0x18] sm:$0xff]
        %v270 = vld [vmem:[#allocation2 + $0x20] sm:$0xff]
        %v271 = vld [vmem:[#allocation2 + $0x28] sm:$0xff]
        %v272 = vld [vmem:[#allocation2 + $0x30] sm:$0xff]
        %v273 = vld [vmem:[#allocation2 + $0x38] sm:$0xff]
        %v274 = vld [vmem:[#allocation2 + $0x40] sm:$0xff]
        %v275 = vld [vmem:[#allocation2 + $0x48] sm:$0xff]
        %v276 = vld [vmem:[#allocation2 + $0x50] sm:$0xff]
        %v277 = vld [vmem:[#allocation2 + $0x58] sm:$0xff]
        %v278 = vld [vmem:[#allocation2 + $0x60] sm:$0xff]
        %v279 = vld [vmem:[#allocation2 + $0x68] sm:$0xff]
        %v280 = vld [vmem:[#allocation2 + $0x70] sm:$0xff]
        %v281 = vld [vmem:[#allocation2 + $0x78] sm:$0xff]
        %v282 = vld [vmem:[#allocation2 + $0x80] sm:$0xff]
        %v283 = vld [vmem:[#allocation2 + $0x88] sm:$0xff]
        %v284 = vld [vmem:[#allocation2 + $0x90] sm:$0xff]
        %v285 = vld [vmem:[#allocation2 + $0x98] sm:$0xff]
        %v286 = vld [vmem:[#allocation2 + $0xa0] sm:$0xff]
        %v287 = vld [vmem:[#allocation2 + $0xa8] sm:$0xff]
        %v288 = vld [vmem:[#allocation2 + $0xb0] sm:$0xff]
        %v289 = vld [vmem:[#allocation2 + $0xb8] sm:$0xff]
        %v290 = vld [vmem:[#allocation2 + $0xc0] sm:$0xff]
        %v291 = vld [vmem:[#allocation2 + $0xc8] sm:$0xff]
        %v292 = vld [vmem:[#allocation2 + $0xd0] sm:$0xff]
        %v293 = vld [vmem:[#allocation2 + $0xd8] sm:$0xff]
        %v294 = vld [vmem:[#allocation2 + $0xe0] sm:$0xff]
        %v295 = vld [vmem:[#allocation2 + $0xe8] sm:$0xff]
        %v296 = vld [vmem:[#allocation2 + $0xf0] sm:$0xff]
        %v297 = vld [vmem:[#allocation2 + $0xf8] sm:$0xff]
        %v298 = vld [vmem:[%s4] sm:$0x3]
        %v299 = vld [vmem:[%s4 + $0x2] sm:$0x3]
        %v300 = vld [vmem:[%s4 + $0x4] sm:$0x1]
        %v301 = vld [vmem:[%s4 + $0x5] sm:$0x1]
        %v302 = vld [vmem:[%s4 + $0x6] sm:$0x1]
        %v303 = vunpack.c.l.bf16 %v260
        %v304 = vunpack.c.h.bf16 %v260
        %v305 = vunpack.c.l.bf16 %v261
        %v306 = vunpack.c.h.bf16 %v261
        %v307 = vadd.f32 %v303, %v305
        %v308 = vrot.slane %v307, 4
        %v309 = vadd.f32 %v307, %v308
        %v310 = vrot.slane %v309, 2
        %v311 = vadd.f32 %v309, %v310
        %v312 = vrot.slane %v311, 1
        %v313 = vadd.f32 %v311, %v312
        %v314 = vadd.f32 %v304, %v306
        %v315 = vrot.slane %v314, 4
        %v316 = vadd.f32 %v314, %v315
        %v317 = vrot.slane %v316, 2
        %v318 = vadd.f32 %v316, %v317
        %v319 = vrot.slane %v318, 1
        %v320 = vadd.f32 %v318, %v319
        %v321 = vrcp.pop 16.0
        %v322 = vmul.f32 16.0, %v321
        %v323 = vsub.f32 1.0, %v322
        %v324 = vmul.f32 %v321, %v323
        %v325 = vadd.f32 %v321, %v324
        %vm326 = vweird.f32 %v321
        %v327 = vsel %vm326, %v321, %v325
        %v328 = vmul.f32 %v313, %v327
        %v329 = vmul.f32 %v320, %v327
        %v330 = vpack.c.bf16 %v328, %v328
        %v331 = vpack.c.bf16 %v329, %v329
        %v332 = vld [vmem:[#allocation4] sm:$0xff]
        %v333 = vld [vmem:[#allocation4 + $0x8] sm:$0xff]
        %v334 = vld [vmem:[#allocation4 + $0x10] sm:$0xff]
        %v335 = vld [vmem:[#allocation4 + $0x18] sm:$0xff]
        %v336 = vld [vmem:[#allocation4 + $0x20] sm:$0xff]
        %v337 = vld [vmem:[#allocation4 + $0x28] sm:$0xff]
        %v338 = vld [vmem:[#allocation4 + $0x30] sm:$0xff]
        %v339 = vld [vmem:[#allocation4 + $0x38] sm:$0xff]
        %v340 = vld [vmem:[#allocation4 + $0x40] sm:$0xff]
        %v341 = vld [vmem:[#allocation4 + $0x48] sm:$0xff]
        %v342 = vld [vmem:[#allocation4 + $0x50] sm:$0xff]
        %v343 = vld [vmem:[#allocation4 + $0x58] sm:$0xff]
        %v344 = vld [vmem:[#allocation4 + $0x60] sm:$0xff]
        %v345 = vld [vmem:[#allocation4 + $0x68] sm:$0xff]
        %v346 = vld [vmem:[#allocation4 + $0x70] sm:$0xff]
        %v347 = vld [vmem:[#allocation4 + $0x78] sm:$0xff]
        %v348 = vld [vmem:[#allocation4 + $0x80] sm:$0xff]
        %v349 = vld [vmem:[#allocation4 + $0x88] sm:$0xff]
        %v350 = vld [vmem:[#allocation4 + $0x90] sm:$0xff]
        %v351 = vld [vmem:[#allocation4 + $0x98] sm:$0xff]
        %v352 = vld [vmem:[#allocation4 + $0xa0] sm:$0xff]
        %v353 = vld [vmem:[#allocation4 + $0xa8] sm:$0xff]
        %v354 = vld [vmem:[#allocation4 + $0xb0] sm:$0xff]
        %v355 = vld [vmem:[#allocation4 + $0xb8] sm:$0xff]
        %v356 = vld [vmem:[#allocation4 + $0xc0] sm:$0xff]
        %v357 = vld [vmem:[#allocation4 + $0xc8] sm:$0xff]
        %v358 = vld [vmem:[#allocation4 + $0xd0] sm:$0xff]
        %v359 = vld [vmem:[#allocation4 + $0xd8] sm:$0xff]
        %v360 = vld [vmem:[#allocation4 + $0xe0] sm:$0xff]
        %v361 = vld [vmem:[#allocation4 + $0xe8] sm:$0xff]
        %v362 = vld [vmem:[#allocation4 + $0xf0] sm:$0xff]
        %v363 = vld [vmem:[#allocation4 + $0xf8] sm:$0xff]
        %v396 = vunpack.c.l.b16 %v332
        %v397 = vunpack.c.h.b16 %v332
        %v398 = vunpack.c.l.b16 %v333
        %v399 = vunpack.c.h.b16 %v333
        %v400 = vunpack.c.l.b16 %v334
        %v401 = vunpack.c.h.b16 %v334
        %v402 = vunpack.c.l.b16 %v335
        %v403 = vunpack.c.h.b16 %v335
        %v404 = vunpack.c.l.b16 %v336
        %v405 = vunpack.c.h.b16 %v336
        %v406 = vunpack.c.l.b16 %v337
        %v407 = vunpack.c.h.b16 %v337
        %v408 = vunpack.c.l.b16 %v338
        %v409 = vunpack.c.h.b16 %v338
        %v410 = vunpack.c.l.b16 %v339
        %v411 = vunpack.c.h.b16 %v339
        %v412 = vunpack.c.l.b16 %v340
        %v413 = vunpack.c.h.b16 %v340
        %v414 = vunpack.c.l.b16 %v341
        %v415 = vunpack.c.h.b16 %v341
        %v416 = vunpack.c.l.b16 %v342
        %v417 = vunpack.c.h.b16 %v342
        %v418 = vunpack.c.l.b16 %v343
        %v419 = vunpack.c.h.b16 %v343
        %v420 = vunpack.c.l.b16 %v344
        %v421 = vunpack.c.h.b16 %v344
        %v422 = vunpack.c.l.b16 %v345
        %v423 = vunpack.c.h.b16 %v345
        %v424 = vunpack.c.l.b16 %v346
        %v425 = vunpack.c.h.b16 %v346
        %v426 = vunpack.c.l.b16 %v347
        %v427 = vunpack.c.h.b16 %v347
        %v428 = vunpack.c.l.b16 %v348
        %v429 = vunpack.c.h.b16 %v348
        %v430 = vunpack.c.l.b16 %v349
        %v431 = vunpack.c.h.b16 %v349
        %v432 = vunpack.c.l.b16 %v350
        %v433 = vunpack.c.h.b16 %v350
        %v434 = vunpack.c.l.b16 %v351
        %v435 = vunpack.c.h.b16 %v351
        %v436 = vunpack.c.l.b16 %v352
        %v437 = vunpack.c.h.b16 %v352
        %v438 = vunpack.c.l.b16 %v353
        %v439 = vunpack.c.h.b16 %v353
        %v440 = vunpack.c.l.b16 %v354
        %v441 = vunpack.c.h.b16 %v354
        %v442 = vunpack.c.l.b16 %v355
        %v443 = vunpack.c.h.b16 %v355
        %v444 = vunpack.c.l.b16 %v356
        %v445 = vunpack.c.h.b16 %v356
        %v446 = vunpack.c.l.b16 %v357
        %v447 = vunpack.c.h.b16 %v357
        %v448 = vunpack.c.l.b16 %v358
        %v449 = vunpack.c.h.b16 %v358
        %v450 = vunpack.c.l.b16 %v359
        %v451 = vunpack.c.h.b16 %v359
        %v452 = vunpack.c.l.b16 %v360
        %v453 = vunpack.c.h.b16 %v360
        %v454 = vunpack.c.l.b16 %v361
        %v455 = vunpack.c.h.b16 %v361
        %v456 = vunpack.c.l.b16 %v362
        %v457 = vunpack.c.h.b16 %v362
        %v458 = vunpack.c.l.b16 %v363
        %v459 = vunpack.c.h.b16 %v363
        %v460 = vpack.c.b16 %v398, %v396
        %v461 = vpack.c.b16 %v399, %v397
        %v462 = vpack.c.b16 %v402, %v400
        %v463 = vpack.c.b16 %v403, %v401
        %v464 = vpack.c.b16 %v406, %v404
        %v465 = vpack.c.b16 %v407, %v405
        %v466 = vpack.c.b16 %v410, %v408
        %v467 = vpack.c.b16 %v411, %v409
        %v468 = vpack.c.b16 %v414, %v412
        %v469 = vpack.c.b16 %v415, %v413
        %v470 = vpack.c.b16 %v418, %v416
        %v471 = vpack.c.b16 %v419, %v417
        %v472 = vpack.c.b16 %v422, %v420
        %v473 = vpack.c.b16 %v423, %v421
        %v474 = vpack.c.b16 %v426, %v424
        %v475 = vpack.c.b16 %v427, %v425
        %v476 = vpack.c.b16 %v430, %v428
        %v477 = vpack.c.b16 %v431, %v429
        %v478 = vpack.c.b16 %v434, %v432
        %v479 = vpack.c.b16 %v435, %v433
        %v480 = vpack.c.b16 %v438, %v436
        %v481 = vpack.c.b16 %v439, %v437
        %v482 = vpack.c.b16 %v442, %v440
        %v483 = vpack.c.b16 %v443, %v441
        %v484 = vpack.c.b16 %v446, %v444
        %v485 = vpack.c.b16 %v447, %v445
        %v486 = vpack.c.b16 %v450, %v448
        %v487 = vpack.c.b16 %v451, %v449
        %v488 = vpack.c.b16 %v454, %v452
        %v489 = vpack.c.b16 %v455, %v453
        %v490 = vpack.c.b16 %v458, %v456
        %v491 = vpack.c.b16 %v459, %v457
        %v525 = vperm.slane %v299, 0
        %v526 = vperm.slane %v299, 1
        %529 = vmatpush.bf16.msra.mxu0 %v474
        %530 = vmatpush.bf16.msra.mxu0 %v472
        %531 = vmatpush.bf16.msra.mxu0 %v470
        %532 = vmatpush.bf16.msra.mxu0 %v468
        %533 = vmatpush.bf16.msra.mxu0 %v466
        %534 = vmatpush.bf16.msra.mxu0 %v464
        %535 = vmatpush.bf16.msra.mxu0 %v462
        %536 = vmatpush.bf16.msra.mxu0 %v460
        %537 = vmatmul.bf16.gmra.mxu0 %v330
        %v538 = vpop.f32.mrf.mxu0
        %v539 = vadd.f32 %v525, %v538
        %v540 = vpop.f32.mrf.mxu0
        %541 = vdwg.mxu0
        %542 = vmatpush.bf16.msra.mxu0 %v490
        %543 = vmatpush.bf16.msra.mxu0 %v488
        %544 = vmatpush.bf16.msra.mxu0 %v486
        %545 = vmatpush.bf16.msra.mxu0 %v484
        %546 = vmatpush.bf16.msra.mxu0 %v482
        %547 = vmatpush.bf16.msra.mxu0 %v480
        %548 = vmatpush.bf16.msra.mxu0 %v478
        %549 = vmatpush.bf16.msra.mxu0 %v476
        %550 = vmatmul.bf16.gmra.mxu0 %v331
        %v551 = vpop.f32.mrf.mxu0
        %v552 = vadd.f32 %v539, %v551
        %v553 = vpop.f32.mrf.mxu0
        %554 = vdwg.mxu0
        %555 = vmatpush.bf16.msra.mxu0 %v475
        %556 = vmatpush.bf16.msra.mxu0 %v473
        %557 = vmatpush.bf16.msra.mxu0 %v471
        %558 = vmatpush.bf16.msra.mxu0 %v469
        %559 = vmatpush.bf16.msra.mxu0 %v467
        %560 = vmatpush.bf16.msra.mxu0 %v465
        %561 = vmatpush.bf16.msra.mxu0 %v463
        %562 = vmatpush.bf16.msra.mxu0 %v461
        %563 = vmatmul.bf16.gmra.mxu0 %v330
        %v564 = vpop.f32.mrf.mxu0
        %v565 = vadd.f32 %v526, %v564
        %v566 = vpop.f32.mrf.mxu0
        %567 = vdwg.mxu0
        %568 = vmatpush.bf16.msra.mxu0 %v491
        %569 = vmatpush.bf16.msra.mxu0 %v489
        %570 = vmatpush.bf16.msra.mxu0 %v487
        %571 = vmatpush.bf16.msra.mxu0 %v485
        %572 = vmatpush.bf16.msra.mxu0 %v483
        %573 = vmatpush.bf16.msra.mxu0 %v481
        %574 = vmatpush.bf16.msra.mxu0 %v479
        %575 = vmatpush.bf16.msra.mxu0 %v477
        %576 = vmatmul.bf16.gmra.mxu0 %v331
        %v577 = vpop.f32.mrf.mxu0
        %v578 = vadd.f32 %v565, %v577
        %v579 = vpop.f32.mrf.mxu0
        %580 = vdwg.mxu0
        %v581 = vmax.f32 %v552, 0.0
        %v582 = vmax.f32 %v578, 0.0
        %v583 = vpack.c.bf16 %v581, %v581
        %v584 = vpack.c.bf16 %v582, %v582
        %v585 = vld [vmem:[%s3] sm:$0xf]
        %v586 = vld [vmem:[%s3 + $0x4] sm:$0xf]
        %v587 = vld [vmem:[%s3 + $0x8] sm:$0xf]
        %v588 = vld [vmem:[%s3 + $0xc] sm:$0xf]
        %v589 = vld [vmem:[%s3 + $0x10] sm:$0xf]
        %v590 = vld [vmem:[%s3 + $0x14] sm:$0xf]
        %v591 = vld [vmem:[%s3 + $0x18] sm:$0xf]
        %v592 = vld [vmem:[%s3 + $0x1c] sm:$0xf]
        %v593 = vld [vmem:[%s3 + $0x20] sm:$0xf]
        %v594 = vld [vmem:[%s3 + $0x24] sm:$0xf]
        %v595 = vld [vmem:[%s3 + $0x28] sm:$0xf]
        %v596 = vld [vmem:[%s3 + $0x2c] sm:$0xf]
        %v597 = vld [vmem:[%s3 + $0x30] sm:$0xf]
        %v598 = vld [vmem:[%s3 + $0x34] sm:$0xf]
        %v599 = vld [vmem:[%s3 + $0x38] sm:$0xf]
        %v600 = vld [vmem:[%s3 + $0x3c] sm:$0xf]
        %v601 = vld [vmem:[%s3 + $0x40] sm:$0xf]
        %v602 = vld [vmem:[%s3 + $0x44] sm:$0xf]
        %v603 = vld [vmem:[%s3 + $0x48] sm:$0xf]
        %v604 = vld [vmem:[%s3 + $0x4c] sm:$0xf]
        %v605 = vld [vmem:[%s3 + $0x50] sm:$0xf]
        %v606 = vld [vmem:[%s3 + $0x54] sm:$0xf]
        %v607 = vld [vmem:[%s3 + $0x58] sm:$0xf]
        %v608 = vld [vmem:[%s3 + $0x5c] sm:$0xf]
        %v609 = vld [vmem:[%s3 + $0x60] sm:$0xf]
        %v610 = vld [vmem:[%s3 + $0x64] sm:$0xf]
        %v611 = vld [vmem:[%s3 + $0x68] sm:$0xf]
        %v612 = vld [vmem:[%s3 + $0x6c] sm:$0xf]
        %v613 = vld [vmem:[%s3 + $0x70] sm:$0xf]
        %v614 = vld [vmem:[%s3 + $0x74] sm:$0xf]
        %v615 = vld [vmem:[%s3 + $0x78] sm:$0xf]
        %v616 = vld [vmem:[%s3 + $0x7c] sm:$0xf]
        %v649 = vunpack.c.l.b16 %v585
        %v650 = vunpack.c.l.b16 %v586
        %v651 = vunpack.c.l.b16 %v587
        %v652 = vunpack.c.l.b16 %v588
        %v653 = vunpack.c.l.b16 %v589
        %v654 = vunpack.c.l.b16 %v590
        %v655 = vunpack.c.l.b16 %v591
        %v656 = vunpack.c.l.b16 %v592
        %v657 = vunpack.c.l.b16 %v593
        %v658 = vunpack.c.l.b16 %v594
        %v659 = vunpack.c.l.b16 %v595
        %v660 = vunpack.c.l.b16 %v596
        %v661 = vunpack.c.l.b16 %v597
        %v662 = vunpack.c.l.b16 %v598
        %v663 = vunpack.c.l.b16 %v599
        %v664 = vunpack.c.l.b16 %v600
        %v665 = vunpack.c.l.b16 %v601
        %v666 = vunpack.c.l.b16 %v602
        %v667 = vunpack.c.l.b16 %v603
        %v668 = vunpack.c.l.b16 %v604
        %v669 = vunpack.c.l.b16 %v605
        %v670 = vunpack.c.l.b16 %v606
        %v671 = vunpack.c.l.b16 %v607
        %v672 = vunpack.c.l.b16 %v608
        %v673 = vunpack.c.l.b16 %v609
        %v674 = vunpack.c.l.b16 %v610
        %v675 = vunpack.c.l.b16 %v611
        %v676 = vunpack.c.l.b16 %v612
        %v677 = vunpack.c.l.b16 %v613
        %v678 = vunpack.c.l.b16 %v614
        %v679 = vunpack.c.l.b16 %v615
        %v680 = vunpack.c.l.b16 %v616
        %v681 = vpack.c.b16 %v650, %v649
        %v682 = vpack.c.b16 %v652, %v651
        %v683 = vpack.c.b16 %v654, %v653
        %v684 = vpack.c.b16 %v656, %v655
        %v685 = vpack.c.b16 %v658, %v657
        %v686 = vpack.c.b16 %v660, %v659
        %v687 = vpack.c.b16 %v662, %v661
        %v688 = vpack.c.b16 %v664, %v663
        %v689 = vpack.c.b16 %v666, %v665
        %v690 = vpack.c.b16 %v668, %v667
        %v691 = vpack.c.b16 %v670, %v669
        %v692 = vpack.c.b16 %v672, %v671
        %v693 = vpack.c.b16 %v674, %v673
        %v694 = vpack.c.b16 %v676, %v675
        %v695 = vpack.c.b16 %v678, %v677
        %v696 = vpack.c.b16 %v680, %v679
        %713 = vmatpush.bf16.msra.mxu0 %v688
        %714 = vmatpush.bf16.msra.mxu0 %v687
        %715 = vmatpush.bf16.msra.mxu0 %v686
        %716 = vmatpush.bf16.msra.mxu0 %v685
        %717 = vmatpush.bf16.msra.mxu0 %v684
        %718 = vmatpush.bf16.msra.mxu0 %v683
        %719 = vmatpush.bf16.msra.mxu0 %v682
        %720 = vmatpush.bf16.msra.mxu0 %v681
        %721 = vmatmul.bf16.gmra.mxu0 %v583
        %v722 = vpop.f32.mrf.mxu0
        %v723 = vadd.f32 %v300, %v722
        %v724 = vpop.f32.mrf.mxu0
        %725 = vdwg.mxu0
        %726 = vmatpush.bf16.msra.mxu0 %v696
        %727 = vmatpush.bf16.msra.mxu0 %v695
        %728 = vmatpush.bf16.msra.mxu0 %v694
        %729 = vmatpush.bf16.msra.mxu0 %v693
        %730 = vmatpush.bf16.msra.mxu0 %v692
        %731 = vmatpush.bf16.msra.mxu0 %v691
        %732 = vmatpush.bf16.msra.mxu0 %v690
        %733 = vmatpush.bf16.msra.mxu0 %v689
        %734 = vmatmul.bf16.gmra.mxu0 %v584
        %v735 = vpop.f32.mrf.mxu0
        %v736 = vadd.f32 %v723, %v735
        %v737 = vpop.f32.mrf.mxu0
        %738 = vdwg.mxu0
        %v739 = vmax.f32 %v736, 0.0
        %v740 = vmul.f32 %v739, %v301
        %vm741 = vcmask 516096
        %v742 = vsel %vm741, %v740, 0.0
        %743 = vadd.xlane.f32.xlu0 %v742
        %v744 = vpop.xlane.xlu0 %743
        %v745 = vadd.f32 %v744, %v302
        %v747 = vperm.slane %v298, 0
        %v748 = vperm.slane %v298, 1
        %v757 = vunpack.c.l.b16 %v260
        %v758 = vunpack.c.h.b16 %v260
        %v759 = vunpack.c.l.b16 %v261
        %v760 = vunpack.c.h.b16 %v261
        %v761 = vunpack.c.l.b16 %v262
        %v762 = vunpack.c.h.b16 %v262
        %v763 = vunpack.c.l.b16 %v263
        %v764 = vunpack.c.h.b16 %v263
        %v765 = vunpack.c.l.b16 %v264
        %v766 = vunpack.c.h.b16 %v264
        %v767 = vunpack.c.l.b16 %v265
        %v768 = vunpack.c.h.b16 %v265
        %v769 = vpack.c.b16 %v759, %v757
        %v770 = vpack.c.b16 %v760, %v758
        %v771 = vpack.c.b16 %v763, %v761
        %v772 = vpack.c.b16 %v764, %v762
        %v773 = vpack.c.b16 %v767, %v765
        %v774 = vpack.c.b16 %v768, %v766
        %v813 = vunpack.c.l.b16 %v266
        %v814 = vunpack.c.h.b16 %v266
        %v815 = vunpack.c.l.b16 %v267
        %v816 = vunpack.c.h.b16 %v267
        %v817 = vunpack.c.l.b16 %v268
        %v818 = vunpack.c.h.b16 %v268
        %v819 = vunpack.c.l.b16 %v269
        %v820 = vunpack.c.h.b16 %v269
        %v821 = vunpack.c.l.b16 %v270
        %v822 = vunpack.c.h.b16 %v270
        %v823 = vunpack.c.l.b16 %v271
        %v824 = vunpack.c.h.b16 %v271
        %v825 = vunpack.c.l.b16 %v272
        %v826 = vunpack.c.h.b16 %v272
        %v827 = vunpack.c.l.b16 %v273
        %v828 = vunpack.c.h.b16 %v273
        %v829 = vunpack.c.l.b16 %v274
        %v830 = vunpack.c.h.b16 %v274
        %v831 = vunpack.c.l.b16 %v275
        %v832 = vunpack.c.h.b16 %v275
        %v833 = vunpack.c.l.b16 %v276
        %v834 = vunpack.c.h.b16 %v276
        %v835 = vunpack.c.l.b16 %v277
        %v836 = vunpack.c.h.b16 %v277
        %v837 = vunpack.c.l.b16 %v278
        %v838 = vunpack.c.h.b16 %v278
        %v839 = vunpack.c.l.b16 %v279
        %v840 = vunpack.c.h.b16 %v279
        %v841 = vunpack.c.l.b16 %v280
        %v842 = vunpack.c.h.b16 %v280
        %v843 = vunpack.c.l.b16 %v281
        %v844 = vunpack.c.h.b16 %v281
        %v845 = vunpack.c.l.b16 %v282
        %v846 = vunpack.c.h.b16 %v282
        %v847 = vunpack.c.l.b16 %v283
        %v848 = vunpack.c.h.b16 %v283
        %v849 = vunpack.c.l.b16 %v284
        %v850 = vunpack.c.h.b16 %v284
        %v851 = vunpack.c.l.b16 %v285
        %v852 = vunpack.c.h.b16 %v285
        %v853 = vunpack.c.l.b16 %v286
        %v854 = vunpack.c.h.b16 %v286
        %v855 = vunpack.c.l.b16 %v287
        %v856 = vunpack.c.h.b16 %v287
        %v857 = vunpack.c.l.b16 %v288
        %v858 = vunpack.c.h.b16 %v288
        %v859 = vunpack.c.l.b16 %v289
        %v860 = vunpack.c.h.b16 %v289
        %v861 = vunpack.c.l.b16 %v290
        %v862 = vunpack.c.h.b16 %v290
        %v863 = vunpack.c.l.b16 %v291
        %v864 = vunpack.c.h.b16 %v291
        %v865 = vunpack.c.l.b16 %v292
        %v866 = vunpack.c.h.b16 %v292
        %v867 = vunpack.c.l.b16 %v293
        %v868 = vunpack.c.h.b16 %v293
        %v869 = vunpack.c.l.b16 %v294
        %v870 = vunpack.c.h.b16 %v294
        %v871 = vunpack.c.l.b16 %v295
        %v872 = vunpack.c.h.b16 %v295
        %v873 = vunpack.c.l.b16 %v296
        %v874 = vunpack.c.h.b16 %v296
        %v875 = vunpack.c.l.b16 %v297
        %v876 = vunpack.c.h.b16 %v297
        %v877 = vpack.c.b16 %v815, %v813
        %v878 = vpack.c.b16 %v816, %v814
        %v879 = vpack.c.b16 %v819, %v817
        %v880 = vpack.c.b16 %v820, %v818
        %v881 = vpack.c.b16 %v823, %v821
        %v882 = vpack.c.b16 %v824, %v822
        %v883 = vpack.c.b16 %v827, %v825
        %v884 = vpack.c.b16 %v828, %v826
        %v885 = vpack.c.b16 %v831, %v829
        %v886 = vpack.c.b16 %v832, %v830
        %v887 = vpack.c.b16 %v835, %v833
        %v888 = vpack.c.b16 %v836, %v834
        %v889 = vpack.c.b16 %v839, %v837
        %v890 = vpack.c.b16 %v840, %v838
        %v891 = vpack.c.b16 %v843, %v841
        %v892 = vpack.c.b16 %v844, %v842
        %v893 = vpack.c.b16 %v847, %v845
        %v894 = vpack.c.b16 %v848, %v846
        %v895 = vpack.c.b16 %v851, %v849
        %v896 = vpack.c.b16 %v852, %v850
        %v897 = vpack.c.b16 %v855, %v853
        %v898 = vpack.c.b16 %v856, %v854
        %v899 = vpack.c.b16 %v859, %v857
        %v900 = vpack.c.b16 %v860, %v858
        %v901 = vpack.c.b16 %v863, %v861
        %v902 = vpack.c.b16 %v864, %v862
        %v903 = vpack.c.b16 %v867, %v865
        %v904 = vpack.c.b16 %v868, %v866
        %v905 = vpack.c.b16 %v871, %v869
        %v906 = vpack.c.b16 %v872, %v870
        %v907 = vpack.c.b16 %v875, %v873
        %v908 = vpack.c.b16 %v876, %v874
        %941 = vmatpush.bf16.msra.mxu0 %v891
        %942 = vmatpush.bf16.msra.mxu0 %v889
        %943 = vmatpush.bf16.msra.mxu0 %v887
        %944 = vmatpush.bf16.msra.mxu0 %v885
        %945 = vmatpush.bf16.msra.mxu0 %v883
        %946 = vmatpush.bf16.msra.mxu0 %v881
        %947 = vmatpush.bf16.msra.mxu0 %v879
        %948 = vmatpush.bf16.msra.mxu0 %v877
        %949 = vmatmul.bf16.gmra.mxu0 %v769
        %v950 = vpop.f32.mrf.mxu0
        %v951 = vadd.f32 %v747, %v950
        %v952 = vpop.f32.mrf.mxu0
        %v953 = vadd.f32 %v747, %v952
        %954 = vmatmul.bf16.gmra.mxu0 %v771
        %v955 = vpop.f32.mrf.mxu0
        %v956 = vadd.f32 %v747, %v955
        %v957 = vpop.f32.mrf.mxu0
        %v958 = vadd.f32 %v747, %v957
        %959 = vmatmul.bf16.gmra.mxu0 %v773
        %v960 = vpop.f32.mrf.mxu0
        %v961 = vadd.f32 %v747, %v960
        %v962 = vpop.f32.mrf.mxu0
        %963 = vdwg.mxu0
        %964 = vmatpush.bf16.msra.mxu0 %v907
        %965 = vmatpush.bf16.msra.mxu0 %v905
        %966 = vmatpush.bf16.msra.mxu0 %v903
        %967 = vmatpush.bf16.msra.mxu0 %v901
        %968 = vmatpush.bf16.msra.mxu0 %v899
        %969 = vmatpush.bf16.msra.mxu0 %v897
        %970 = vmatpush.bf16.msra.mxu0 %v895
        %971 = vmatpush.bf16.msra.mxu0 %v893
        %972 = vmatmul.bf16.gmra.mxu0 %v770
        %v973 = vpop.f32.mrf.mxu0
        %v974 = vadd.f32 %v951, %v973
        %v975 = vpop.f32.mrf.mxu0
        %v976 = vadd.f32 %v953, %v975
        %977 = vmatmul.bf16.gmra.mxu0 %v772
        %v978 = vpop.f32.mrf.mxu0
        %v979 = vadd.f32 %v956, %v978
        %v980 = vpop.f32.mrf.mxu0
        %v981 = vadd.f32 %v958, %v980
        %982 = vmatmul.bf16.gmra.mxu0 %v774
        %v983 = vpop.f32.mrf.mxu0
        %v984 = vadd.f32 %v961, %v983
        %v985 = vpop.f32.mrf.mxu0
        %986 = vdwg.mxu0
        %987 = vmatpush.bf16.msra.mxu0 %v892
        %988 = vmatpush.bf16.msra.mxu0 %v890
        %989 = vmatpush.bf16.msra.mxu0 %v888
        %990 = vmatpush.bf16.msra.mxu0 %v886
        %991 = vmatpush.bf16.msra.mxu0 %v884
        %992 = vmatpush.bf16.msra.mxu0 %v882
        %993 = vmatpush.bf16.msra.mxu0 %v880
        %994 = vmatpush.bf16.msra.mxu0 %v878
        %995 = vmatmul.bf16.gmra.mxu0 %v769
        %v996 = vpop.f32.mrf.mxu0
        %v997 = vadd.f32 %v748, %v996
        %v998 = vpop.f32.mrf.mxu0
        %v999 = vadd.f32 %v748, %v998
        %1000 = vmatmul.bf16.gmra.mxu0 %v771
        %v1001 = vpop.f32.mrf.mxu0
        %v1002 = vadd.f32 %v748, %v1001
        %v1003 = vpop.f32.mrf.mxu0
        %v1004 = vadd.f32 %v748, %v1003
        %1005 = vmatmul.bf16.gmra.mxu0 %v773
        %v1006 = vpop.f32.mrf.mxu0
        %v1007 = vadd.f32 %v748, %v1006
        %v1008 = vpop.f32.mrf.mxu0
        %1009 = vdwg.mxu0
        %1010 = vmatpush.bf16.msra.mxu0 %v908
        %1011 = vmatpush.bf16.msra.mxu0 %v906
        %1012 = vmatpush.bf16.msra.mxu0 %v904
        %1013 = vmatpush.bf16.msra.mxu0 %v902
        %1014 = vmatpush.bf16.msra.mxu0 %v900
        %1015 = vmatpush.bf16.msra.mxu0 %v898
        %1016 = vmatpush.bf16.msra.mxu0 %v896
        %1017 = vmatpush.bf16.msra.mxu0 %v894
        %1018 = vmatmul.bf16.gmra.mxu0 %v770
        %v1019 = vpop.f32.mrf.mxu0
        %v1020 = vadd.f32 %v997, %v1019
        %v1021 = vpop.f32.mrf.mxu0
        %v1022 = vadd.f32 %v999, %v1021
        %1023 = vmatmul.bf16.gmra.mxu0 %v772
        %v1024 = vpop.f32.mrf.mxu0
        %v1025 = vadd.f32 %v1002, %v1024
        %v1026 = vpop.f32.mrf.mxu0
        %v1027 = vadd.f32 %v1004, %v1026
        %1028 = vmatmul.bf16.gmra.mxu0 %v774
        %v1029 = vpop.f32.mrf.mxu0
        %v1030 = vadd.f32 %v1007, %v1029
        %v1031 = vpop.f32.mrf.mxu0
        %1032 = vdwg.mxu0
        %v1033 = vpack.c.bf16 %v1020, %v974
        %v1034 = vpack.c.bf16 %v1022, %v976
        %v1035 = vpack.c.bf16 %v1025, %v979
        %v1036 = vpack.c.bf16 %v1027, %v981
        %v1037 = vpack.c.bf16 %v1030, %v984
        %v1041 = vunpack.c.l.b16 %v1033
        %v1042 = vunpack.c.h.b16 %v1033
        %v1043 = vunpack.c.l.b16 %v1034
        %v1044 = vunpack.c.h.b16 %v1034
        %v1045 = vunpack.c.l.b16 %v1035
        %v1046 = vunpack.c.h.b16 %v1035
        %v1047 = vpack.c.b16 %v1043, %v1041
        %v1048 = vpack.c.b16 %v1044, %v1042
        %v1049 = vpack.c.b16 %v1045, %v1045
        %v1050 = vpack.c.b16 %v1046, %v1046
        %v1057 = vunpack.c.l.b16 %v1036
        %v1058 = vunpack.c.h.b16 %v1036
        %v1059 = vunpack.c.l.b16 %v1037
        %v1060 = vunpack.c.h.b16 %v1037
        %v1061 = vpack.c.b16 %v1057, %v1045
        %v1062 = vpack.c.b16 %v1058, %v1046
        %v1063 = vpack.c.b16 %v1059, %v1059
        %v1064 = vpack.c.b16 %v1060, %v1060
        %1069 = vmatpush.bf16.xpose.msra.mxu0 0
        %1070 = vmatpush.bf16.xpose.msra.mxu0 0
        %1071 = vmatpush.bf16.xpose.msra.mxu0 0
        %1072 = vmatpush.bf16.xpose.msra.mxu0 0
        %1073 = vmatpush.bf16.xpose.msra.mxu0 0
        %1074 = vmatpush.bf16.xpose.msra.mxu0 0
        %1075 = vmatpush.bf16.xpose.msra.mxu0 %v1063
        %1076 = vmatpush.bf16.xpose.msra.mxu0 %v1061
        %1077 = vmatmul.bf16.gmra.mxu0 %v1047
        %v1078 = vpop.f32.mrf.mxu0
        %v1079 = vadd.f32 0.0, %v1078
        %v1080 = vpop.f32.mrf.mxu0
        %v1081 = vadd.f32 0.0, %v1080
        %1082 = vmatmul.bf16.gmra.mxu0 %v1049
        %v1083 = vpop.f32.mrf.mxu0
        %v1084 = vadd.f32 0.0, %v1083
        %v1085 = vpop.f32.mrf.mxu0
        %1086 = vdwg.mxu0
        %1087 = vmatpush.bf16.xpose.msra.mxu0 0
        %1088 = vmatpush.bf16.xpose.msra.mxu0 0
        %1089 = vmatpush.bf16.xpose.msra.mxu0 0
        %1090 = vmatpush.bf16.xpose.msra.mxu0 0
        %1091 = vmatpush.bf16.xpose.msra.mxu0 0
        %1092 = vmatpush.bf16.xpose.msra.mxu0 0
        %1093 = vmatpush.bf16.xpose.msra.mxu0 %v1064
        %1094 = vmatpush.bf16.xpose.msra.mxu0 %v1062
        %1095 = vmatmul.bf16.gmra.mxu0 %v1048
        %v1096 = vpop.f32.mrf.mxu0
        %v1097 = vadd.f32 %v1079, %v1096
        %v1098 = vpop.f32.mrf.mxu0
        %v1099 = vadd.f32 %v1081, %v1098
        %1100 = vmatmul.bf16.gmra.mxu0 %v1050
        %v1101 = vpop.f32.mrf.mxu0
        %v1102 = vadd.f32 %v1084, %v1101
        %v1103 = vpop.f32.mrf.mxu0
        %1104 = vdwg.mxu0
        %v1105 = vmul.f32 %v1097, 0.0625
        %v1106 = vmul.f32 %v1099, 0.0625
        %v1107 = vmul.f32 %v1102, 0.0625
        %v1108 = vlaneseq
        %v1109 = vshrl.u32 %v1108, 7
        %v1110 = vadd.s32 %v1109, 8
        %v1111 = vadd.s32 %v1109, 16
        %v1112 = vlaneseq
        %v1113 = vand.u32 %v1112, 127
        %vm1114 = vcmp.lt.s32.totalorder %v1109, 16
        %vm1115 = vcmp.lt.s32.totalorder %v1110, 16
        %vm1116 = vcmp.lt.s32.totalorder %v1111, 16
        %vm1117 = vcmp.lt.s32.totalorder %v1113, 20
        %v1118 = vsel %vm1114, 1, 0
        %v1119 = vsel %vm1115, 1, 0
        %v1120 = vsel %vm1116, 1, 0
        %vm1121 = vcmp.eq.s32.totalorder %v1118, 1
        %vm1122 = vcmp.eq.s32.totalorder %v1119, 1
        %vm1123 = vcmp.eq.s32.totalorder %v1120, 1
        %v1124 = vsel %vm1117, 1, 0
        %vm1125 = vcmp.eq.s32.totalorder %v1124, 1
        %vm1126 = vmand %vm1121, %vm1125
        %vm1127 = vmand %vm1122, %vm1125
        %vm1128 = vmand %vm1123, %vm1125
        %s1130 = vtos %v745
        %v1131 = vstv %s1130
        %v1133 = vsel %vm1126, %v1105, %v1131
        %v1134 = vsel %vm1127, %v1106, %v1131
        %v1135 = vsel %vm1128, %v1107, %v1131
        %v1136 = vsel %vm1114, -3.583519, -0.5877867
        %v1137 = vsel %vm1115, -3.583519, -0.5877867
        %v1138 = vsel %vm1116, -3.583519, -0.5877867
        %v1139 = vsel %vm1117, -3.583519, -0.8109302
        %v1140 = vadd.f32 %v1133, 0.0
        %v1141 = vadd.f32 %v1134, 0.0
        %v1142 = vadd.f32 %v1135, 0.0
        %vm1143 = vcmask 171008
        %v1144 = vsel %vm1143, %v1140, -inf
        %1145 = vmax.xlane.f32.xlu0 %v1144
        %v1146 = vpop.xlane.xlu0 %1145
        %v1147 = vsel %vm1143, %v1141, -inf
        %1148 = vmax.xlane.f32.xlu0 %v1147
        %v1149 = vpop.xlane.xlu0 %1148
        %vm1150 = vcmask 163840
        %v1151 = vsel %vm1150, %v1142, -inf
        %1152 = vmax.xlane.f32.xlu0 %v1151
        %v1153 = vpop.xlane.xlu0 %1152
        %v1154 = vsub.f32 %v1140, %v1146
        %v1155 = vsub.f32 %v1141, %v1149
        %v1156 = vsub.f32 %v1142, %v1153
        %v1157 = vmul.f32 %v1154, 1.442695
        %v1158 = vpow.pop %v1157
        %v1159 = vmul.f32 %v1155, 1.442695
        %v1160 = vpow.pop %v1159
        %v1161 = vmul.f32 %v1156, 1.442695
        %v1162 = vpow.pop %v1161
        %v1163 = vsel %vm1143, %v1158, 0.0
        %1164 = vadd.xlane.f32.xlu0 %v1163
        %v1165 = vpop.xlane.xlu0 %1164
        %v1166 = vsel %vm1143, %v1160, 0.0
        %1167 = vadd.xlane.f32.xlu0 %v1166
        %v1168 = vpop.xlane.xlu0 %1167
        %v1169 = vsel %vm1150, %v1162, 0.0
        %1170 = vadd.xlane.f32.xlu0 %v1169
        %v1171 = vpop.xlane.xlu0 %1170
        %v1172 = vlog2.pop %v1165
        %v1173 = vmul.f32 %v1172, 0.6931472
        %v1174 = vlog2.pop %v1168
        %v1175 = vmul.f32 %v1174, 0.6931472
        %v1176 = vlog2.pop %v1171
        %v1177 = vmul.f32 %v1176, 0.6931472
        %v1178 = vadd.f32 %v1146, %v1173
        %v1179 = vadd.f32 %v1149, %v1175
        %v1180 = vadd.f32 %v1153, %v1177
        %v1181 = vsub.f32 %v1136, %v1178
        %v1182 = vsub.f32 %v1137, %v1179
        %v1183 = vsub.f32 %v1138, %v1180
        %v1184 = vadd.f32 %v1133, %v1181
        %v1185 = vadd.f32 %v1134, %v1182
        %v1186 = vadd.f32 %v1135, %v1183
        %v1187 = vsel %vm1143, %v1184, -inf
        %v1188 = vsel %vm1143, %v1185, -inf
        %v1189 = vsel %vm1150, %v1186, -inf
        %v1190 = vmax.f32 %v1187, %v1188
        %v1191 = vmax.f32 %v1190, %v1189
        %v1192 = vrot.slane %v1191, 4
        %v1193 = vmax.f32 %v1191, %v1192
        %v1194 = vrot.slane %v1193, 2
        %v1195 = vmax.f32 %v1193, %v1194
        %v1196 = vrot.slane %v1195, 1
        %v1197 = vmax.f32 %v1195, %v1196
        %v1198 = vsub.f32 %v1184, %v1197
        %v1199 = vsub.f32 %v1185, %v1197
        %v1200 = vsub.f32 %v1186, %v1197
        %v1201 = vmul.f32 %v1198, 1.442695
        %v1202 = vpow.pop %v1201
        %v1203 = vmul.f32 %v1199, 1.442695
        %v1204 = vpow.pop %v1203
        %v1205 = vmul.f32 %v1200, 1.442695
        %v1206 = vpow.pop %v1205
        %v1207 = vsel %vm1143, %v1202, 0.0
        %v1208 = vsel %vm1143, %v1204, 0.0
        %v1209 = vadd.f32 %v1207, %v1208
        %v1210 = vsel %vm1150, %v1206, 0.0
        %v1211 = vadd.f32 %v1209, %v1210
        %v1212 = vrot.slane %v1211, 4
        %v1213 = vadd.f32 %v1211, %v1212
        %v1214 = vrot.slane %v1213, 2
        %v1215 = vadd.f32 %v1213, %v1214
        %v1216 = vrot.slane %v1215, 1
        %v1217 = vadd.f32 %v1215, %v1216
        %v1218 = vlog2.pop %v1217
        %v1219 = vmul.f32 %v1218, 0.6931472
        %v1220 = vadd.f32 %v1197, %v1219
        %v1221 = vsub.f32 %v1139, %v1220
        %v1222 = vadd.f32 %v1133, %v1221
        %v1223 = vadd.f32 %v1134, %v1221
        %v1224 = vadd.f32 %v1135, %v1221
        %v1225 = vsel %vm1143, %v1222, -inf
        %1226 = vmax.xlane.f32.xlu0 %v1225
        %v1227 = vpop.xlane.xlu0 %1226
        %v1228 = vsel %vm1143, %v1223, -inf
        %1229 = vmax.xlane.f32.xlu0 %v1228
        %v1230 = vpop.xlane.xlu0 %1229
        %v1231 = vsel %vm1150, %v1224, -inf
        %1232 = vmax.xlane.f32.xlu0 %v1231
        %v1233 = vpop.xlane.xlu0 %1232
        %v1234 = vsub.f32 %v1222, %v1227
        %v1235 = vsub.f32 %v1223, %v1230
        %v1236 = vsub.f32 %v1224, %v1233
        %v1237 = vmul.f32 %v1234, 1.442695
        %v1238 = vpow.pop %v1237
        %v1239 = vmul.f32 %v1235, 1.442695
        %v1240 = vpow.pop %v1239
        %v1241 = vmul.f32 %v1236, 1.442695
        %v1242 = vpow.pop %v1241
        %v1243 = vsel %vm1143, %v1238, 0.0
        %1244 = vadd.xlane.f32.xlu0 %v1243
        %v1245 = vpop.xlane.xlu0 %1244
        %v1246 = vsel %vm1143, %v1240, 0.0
        %1247 = vadd.xlane.f32.xlu0 %v1246
        %v1248 = vpop.xlane.xlu0 %1247
        %v1249 = vsel %vm1150, %v1242, 0.0
        %1250 = vadd.xlane.f32.xlu0 %v1249
        %v1251 = vpop.xlane.xlu0 %1250
        %v1252 = vlog2.pop %v1245
        %v1253 = vmul.f32 %v1252, 0.6931472
        %v1254 = vlog2.pop %v1248
        %v1255 = vmul.f32 %v1254, 0.6931472
        %v1256 = vlog2.pop %v1251
        %v1257 = vmul.f32 %v1256, 0.6931472
        %v1258 = vadd.f32 %v1227, %v1253
        %v1259 = vadd.f32 %v1230, %v1255
        %v1260 = vadd.f32 %v1233, %v1257
        %v1261 = vsub.f32 %v1136, %v1258
        %v1262 = vsub.f32 %v1137, %v1259
        %v1263 = vsub.f32 %v1138, %v1260
        %v1264 = vadd.f32 %v1133, %v1261
        %v1265 = vadd.f32 %v1134, %v1262
        %v1266 = vadd.f32 %v1135, %v1263
        %v1267 = vsel %vm1143, %v1264, -inf
        %v1268 = vsel %vm1143, %v1265, -inf
        %v1269 = vsel %vm1150, %v1266, -inf
        %v1270 = vmax.f32 %v1267, %v1268
        %v1271 = vmax.f32 %v1270, %v1269
        %v1272 = vrot.slane %v1271, 4
        %v1273 = vmax.f32 %v1271, %v1272
        %v1274 = vrot.slane %v1273, 2
        %v1275 = vmax.f32 %v1273, %v1274
        %v1276 = vrot.slane %v1275, 1
        %v1277 = vmax.f32 %v1275, %v1276
        %v1278 = vsub.f32 %v1264, %v1277
        %v1279 = vsub.f32 %v1265, %v1277
        %v1280 = vsub.f32 %v1266, %v1277
        %v1281 = vmul.f32 %v1278, 1.442695
        %v1282 = vpow.pop %v1281
        %v1283 = vmul.f32 %v1279, 1.442695
        %v1284 = vpow.pop %v1283
        %v1285 = vmul.f32 %v1280, 1.442695
        %v1286 = vpow.pop %v1285
        %v1287 = vsel %vm1143, %v1282, 0.0
        %v1288 = vsel %vm1143, %v1284, 0.0
        %v1289 = vadd.f32 %v1287, %v1288
        %v1290 = vsel %vm1150, %v1286, 0.0
        %v1291 = vadd.f32 %v1289, %v1290
        %v1292 = vrot.slane %v1291, 4
        %v1293 = vadd.f32 %v1291, %v1292
        %v1294 = vrot.slane %v1293, 2
        %v1295 = vadd.f32 %v1293, %v1294
        %v1296 = vrot.slane %v1295, 1
        %v1297 = vadd.f32 %v1295, %v1296
        %v1298 = vlog2.pop %v1297
        %v1299 = vmul.f32 %v1298, 0.6931472
        %v1300 = vadd.f32 %v1277, %v1299
        %v1301 = vsub.f32 %v1139, %v1300
        %v1302 = vadd.f32 %v1133, %v1301
        %v1303 = vadd.f32 %v1134, %v1301
        %v1304 = vadd.f32 %v1135, %v1301
        %v1305 = vsel %vm1143, %v1302, -inf
        %1306 = vmax.xlane.f32.xlu0 %v1305
        %v1307 = vpop.xlane.xlu0 %1306
        %v1308 = vsel %vm1143, %v1303, -inf
        %1309 = vmax.xlane.f32.xlu0 %v1308
        %v1310 = vpop.xlane.xlu0 %1309
        %v1311 = vsel %vm1150, %v1304, -inf
        %1312 = vmax.xlane.f32.xlu0 %v1311
        %v1313 = vpop.xlane.xlu0 %1312
        %v1314 = vsub.f32 %v1302, %v1307
        %v1315 = vsub.f32 %v1303, %v1310
        %v1316 = vsub.f32 %v1304, %v1313
        %v1317 = vmul.f32 %v1314, 1.442695
        %v1318 = vpow.pop %v1317
        %v1319 = vmul.f32 %v1315, 1.442695
        %v1320 = vpow.pop %v1319
        %v1321 = vmul.f32 %v1316, 1.442695
        %v1322 = vpow.pop %v1321
        %v1323 = vsel %vm1143, %v1318, 0.0
        %1324 = vadd.xlane.f32.xlu0 %v1323
        %v1325 = vpop.xlane.xlu0 %1324
        %v1326 = vsel %vm1143, %v1320, 0.0
        %1327 = vadd.xlane.f32.xlu0 %v1326
        %v1328 = vpop.xlane.xlu0 %1327
        %v1329 = vsel %vm1150, %v1322, 0.0
        %1330 = vadd.xlane.f32.xlu0 %v1329
        %v1331 = vpop.xlane.xlu0 %1330
        %v1332 = vlog2.pop %v1325
        %v1333 = vmul.f32 %v1332, 0.6931472
        %v1334 = vlog2.pop %v1328
        %v1335 = vmul.f32 %v1334, 0.6931472
        %v1336 = vlog2.pop %v1331
        %v1337 = vmul.f32 %v1336, 0.6931472
        %v1338 = vadd.f32 %v1307, %v1333
        %v1339 = vadd.f32 %v1310, %v1335
        %v1340 = vadd.f32 %v1313, %v1337
        %v1341 = vsub.f32 %v1136, %v1338
        %v1342 = vsub.f32 %v1137, %v1339
        %v1343 = vsub.f32 %v1138, %v1340
        %v1344 = vadd.f32 %v1133, %v1341
        %v1345 = vadd.f32 %v1134, %v1342
        %v1346 = vadd.f32 %v1135, %v1343
        %v1347 = vsel %vm1143, %v1344, -inf
        %v1348 = vsel %vm1143, %v1345, -inf
        %v1349 = vsel %vm1150, %v1346, -inf
        %v1350 = vmax.f32 %v1347, %v1348
        %v1351 = vmax.f32 %v1350, %v1349
        %v1352 = vrot.slane %v1351, 4
        %v1353 = vmax.f32 %v1351, %v1352
        %v1354 = vrot.slane %v1353, 2
        %v1355 = vmax.f32 %v1353, %v1354
        %v1356 = vrot.slane %v1355, 1
        %v1357 = vmax.f32 %v1355, %v1356
        %v1358 = vsub.f32 %v1344, %v1357
        %v1359 = vsub.f32 %v1345, %v1357
        %v1360 = vsub.f32 %v1346, %v1357
        %v1361 = vmul.f32 %v1358, 1.442695
        %v1362 = vpow.pop %v1361
        %v1363 = vmul.f32 %v1359, 1.442695
        %v1364 = vpow.pop %v1363
        %v1365 = vmul.f32 %v1360, 1.442695
        %v1366 = vpow.pop %v1365
        %v1367 = vsel %vm1143, %v1362, 0.0
        %v1368 = vsel %vm1143, %v1364, 0.0
        %v1369 = vadd.f32 %v1367, %v1368
        %v1370 = vsel %vm1150, %v1366, 0.0
        %v1371 = vadd.f32 %v1369, %v1370
        %v1372 = vrot.slane %v1371, 4
        %v1373 = vadd.f32 %v1371, %v1372
        %v1374 = vrot.slane %v1373, 2
        %v1375 = vadd.f32 %v1373, %v1374
        %v1376 = vrot.slane %v1375, 1
        %v1377 = vadd.f32 %v1375, %v1376
        %v1378 = vlog2.pop %v1377
        %v1379 = vmul.f32 %v1378, 0.6931472
        %v1380 = vadd.f32 %v1357, %v1379
        %v1381 = vsub.f32 %v1139, %v1380
        %v1382 = vadd.f32 %v1133, %v1381
        %v1383 = vadd.f32 %v1134, %v1381
        %v1384 = vadd.f32 %v1135, %v1381
        %v1385 = vsel %vm1143, %v1382, -inf
        %1386 = vmax.xlane.f32.xlu0 %v1385
        %v1387 = vpop.xlane.xlu0 %1386
        %v1388 = vsel %vm1143, %v1383, -inf
        %1389 = vmax.xlane.f32.xlu0 %v1388
        %v1390 = vpop.xlane.xlu0 %1389
        %v1391 = vsel %vm1150, %v1384, -inf
        %1392 = vmax.xlane.f32.xlu0 %v1391
        %v1393 = vpop.xlane.xlu0 %1392
        %v1394 = vsub.f32 %v1382, %v1387
        %v1395 = vsub.f32 %v1383, %v1390
        %v1396 = vsub.f32 %v1384, %v1393
        %v1397 = vmul.f32 %v1394, 1.442695
        %v1398 = vpow.pop %v1397
        %v1399 = vmul.f32 %v1395, 1.442695
        %v1400 = vpow.pop %v1399
        %v1401 = vmul.f32 %v1396, 1.442695
        %v1402 = vpow.pop %v1401
        %v1403 = vsel %vm1143, %v1398, 0.0
        %1404 = vadd.xlane.f32.xlu0 %v1403
        %v1405 = vpop.xlane.xlu0 %1404
        %v1406 = vsel %vm1143, %v1400, 0.0
        %1407 = vadd.xlane.f32.xlu0 %v1406
        %v1408 = vpop.xlane.xlu0 %1407
        %v1409 = vsel %vm1150, %v1402, 0.0
        %1410 = vadd.xlane.f32.xlu0 %v1409
        %v1411 = vpop.xlane.xlu0 %1410
        %v1412 = vlog2.pop %v1405
        %v1413 = vmul.f32 %v1412, 0.6931472
        %v1414 = vlog2.pop %v1408
        %v1415 = vmul.f32 %v1414, 0.6931472
        %v1416 = vlog2.pop %v1411
        %v1417 = vmul.f32 %v1416, 0.6931472
        %v1418 = vadd.f32 %v1387, %v1413
        %v1419 = vadd.f32 %v1390, %v1415
        %v1420 = vadd.f32 %v1393, %v1417
        %v1421 = vsub.f32 %v1136, %v1418
        %v1422 = vsub.f32 %v1137, %v1419
        %v1423 = vsub.f32 %v1138, %v1420
        %v1424 = vadd.f32 %v1133, %v1421
        %v1425 = vadd.f32 %v1134, %v1422
        %v1426 = vadd.f32 %v1135, %v1423
        %v1427 = vsel %vm1143, %v1424, -inf
        %v1428 = vsel %vm1143, %v1425, -inf
        %v1429 = vsel %vm1150, %v1426, -inf
        %v1430 = vmax.f32 %v1427, %v1428
        %v1431 = vmax.f32 %v1430, %v1429
        %v1432 = vrot.slane %v1431, 4
        %v1433 = vmax.f32 %v1431, %v1432
        %v1434 = vrot.slane %v1433, 2
        %v1435 = vmax.f32 %v1433, %v1434
        %v1436 = vrot.slane %v1435, 1
        %v1437 = vmax.f32 %v1435, %v1436
        %v1438 = vsub.f32 %v1424, %v1437
        %v1439 = vsub.f32 %v1425, %v1437
        %v1440 = vsub.f32 %v1426, %v1437
        %v1441 = vmul.f32 %v1438, 1.442695
        %v1442 = vpow.pop %v1441
        %v1443 = vmul.f32 %v1439, 1.442695
        %v1444 = vpow.pop %v1443
        %v1445 = vmul.f32 %v1440, 1.442695
        %v1446 = vpow.pop %v1445
        %v1447 = vsel %vm1143, %v1442, 0.0
        %v1448 = vsel %vm1143, %v1444, 0.0
        %v1449 = vadd.f32 %v1447, %v1448
        %v1450 = vsel %vm1150, %v1446, 0.0
        %v1451 = vadd.f32 %v1449, %v1450
        %v1452 = vrot.slane %v1451, 4
        %v1453 = vadd.f32 %v1451, %v1452
        %v1454 = vrot.slane %v1453, 2
        %v1455 = vadd.f32 %v1453, %v1454
        %v1456 = vrot.slane %v1455, 1
        %v1457 = vadd.f32 %v1455, %v1456
        %v1458 = vlog2.pop %v1457
        %v1459 = vmul.f32 %v1458, 0.6931472
        %v1460 = vadd.f32 %v1437, %v1459
        %v1461 = vsub.f32 %v1139, %v1460
        %v1462 = vadd.f32 %v1133, %v1461
        %v1463 = vadd.f32 %v1134, %v1461
        %v1464 = vadd.f32 %v1135, %v1461
        %v1465 = vsel %vm1143, %v1462, -inf
        %1466 = vmax.xlane.f32.xlu0 %v1465
        %v1467 = vpop.xlane.xlu0 %1466
        %v1468 = vsel %vm1143, %v1463, -inf
        %1469 = vmax.xlane.f32.xlu0 %v1468
        %v1470 = vpop.xlane.xlu0 %1469
        %v1471 = vsel %vm1150, %v1464, -inf
        %1472 = vmax.xlane.f32.xlu0 %v1471
        %v1473 = vpop.xlane.xlu0 %1472
        %v1474 = vsub.f32 %v1462, %v1467
        %v1475 = vsub.f32 %v1463, %v1470
        %v1476 = vsub.f32 %v1464, %v1473
        %v1477 = vmul.f32 %v1474, 1.442695
        %v1478 = vpow.pop %v1477
        %v1479 = vmul.f32 %v1475, 1.442695
        %v1480 = vpow.pop %v1479
        %v1481 = vmul.f32 %v1476, 1.442695
        %v1482 = vpow.pop %v1481
        %v1483 = vsel %vm1143, %v1478, 0.0
        %1484 = vadd.xlane.f32.xlu0 %v1483
        %v1485 = vpop.xlane.xlu0 %1484
        %v1486 = vsel %vm1143, %v1480, 0.0
        %1487 = vadd.xlane.f32.xlu0 %v1486
        %v1488 = vpop.xlane.xlu0 %1487
        %v1489 = vsel %vm1150, %v1482, 0.0
        %1490 = vadd.xlane.f32.xlu0 %v1489
        %v1491 = vpop.xlane.xlu0 %1490
        %v1492 = vlog2.pop %v1485
        %v1493 = vmul.f32 %v1492, 0.6931472
        %v1494 = vlog2.pop %v1488
        %v1495 = vmul.f32 %v1494, 0.6931472
        %v1496 = vlog2.pop %v1491
        %v1497 = vmul.f32 %v1496, 0.6931472
        %v1498 = vadd.f32 %v1467, %v1493
        %v1499 = vadd.f32 %v1470, %v1495
        %v1500 = vadd.f32 %v1473, %v1497
        %v1501 = vsub.f32 %v1136, %v1498
        %v1502 = vsub.f32 %v1137, %v1499
        %v1503 = vsub.f32 %v1138, %v1500
        %v1504 = vadd.f32 %v1133, %v1501
        %v1505 = vadd.f32 %v1134, %v1502
        %v1506 = vadd.f32 %v1135, %v1503
        %v1507 = vsel %vm1143, %v1504, -inf
        %v1508 = vsel %vm1143, %v1505, -inf
        %v1509 = vsel %vm1150, %v1506, -inf
        %v1510 = vmax.f32 %v1507, %v1508
        %v1511 = vmax.f32 %v1510, %v1509
        %v1512 = vrot.slane %v1511, 4
        %v1513 = vmax.f32 %v1511, %v1512
        %v1514 = vrot.slane %v1513, 2
        %v1515 = vmax.f32 %v1513, %v1514
        %v1516 = vrot.slane %v1515, 1
        %v1517 = vmax.f32 %v1515, %v1516
        %v1518 = vsub.f32 %v1504, %v1517
        %v1519 = vsub.f32 %v1505, %v1517
        %v1520 = vsub.f32 %v1506, %v1517
        %v1521 = vmul.f32 %v1518, 1.442695
        %v1522 = vpow.pop %v1521
        %v1523 = vmul.f32 %v1519, 1.442695
        %v1524 = vpow.pop %v1523
        %v1525 = vmul.f32 %v1520, 1.442695
        %v1526 = vpow.pop %v1525
        %v1527 = vsel %vm1143, %v1522, 0.0
        %v1528 = vsel %vm1143, %v1524, 0.0
        %v1529 = vadd.f32 %v1527, %v1528
        %v1530 = vsel %vm1150, %v1526, 0.0
        %v1531 = vadd.f32 %v1529, %v1530
        %v1532 = vrot.slane %v1531, 4
        %v1533 = vadd.f32 %v1531, %v1532
        %v1534 = vrot.slane %v1533, 2
        %v1535 = vadd.f32 %v1533, %v1534
        %v1536 = vrot.slane %v1535, 1
        %v1537 = vadd.f32 %v1535, %v1536
        %v1538 = vlog2.pop %v1537
        %v1539 = vmul.f32 %v1538, 0.6931472
        %v1540 = vadd.f32 %v1517, %v1539
        %v1541 = vsub.f32 %v1139, %v1540
        %v1542 = vadd.f32 %v1133, %v1541
        %v1543 = vadd.f32 %v1134, %v1541
        %v1544 = vadd.f32 %v1135, %v1541
        %v1545 = vsel %vm1143, %v1542, -inf
        %1546 = vmax.xlane.f32.xlu0 %v1545
        %v1547 = vpop.xlane.xlu0 %1546
        %v1548 = vsel %vm1143, %v1543, -inf
        %1549 = vmax.xlane.f32.xlu0 %v1548
        %v1550 = vpop.xlane.xlu0 %1549
        %v1551 = vsel %vm1150, %v1544, -inf
        %1552 = vmax.xlane.f32.xlu0 %v1551
        %v1553 = vpop.xlane.xlu0 %1552
        %v1554 = vsub.f32 %v1542, %v1547
        %v1555 = vsub.f32 %v1543, %v1550
        %v1556 = vsub.f32 %v1544, %v1553
        %v1557 = vmul.f32 %v1554, 1.442695
        %v1558 = vpow.pop %v1557
        %v1559 = vmul.f32 %v1555, 1.442695
        %v1560 = vpow.pop %v1559
        %v1561 = vmul.f32 %v1556, 1.442695
        %v1562 = vpow.pop %v1561
        %v1563 = vsel %vm1143, %v1558, 0.0
        %1564 = vadd.xlane.f32.xlu0 %v1563
        %v1565 = vpop.xlane.xlu0 %1564
        %v1566 = vsel %vm1143, %v1560, 0.0
        %1567 = vadd.xlane.f32.xlu0 %v1566
        %v1568 = vpop.xlane.xlu0 %1567
        %v1569 = vsel %vm1150, %v1562, 0.0
        %1570 = vadd.xlane.f32.xlu0 %v1569
        %v1571 = vpop.xlane.xlu0 %1570
        %v1572 = vlog2.pop %v1565
        %v1573 = vmul.f32 %v1572, 0.6931472
        %v1574 = vlog2.pop %v1568
        %v1575 = vmul.f32 %v1574, 0.6931472
        %v1576 = vlog2.pop %v1571
        %v1577 = vmul.f32 %v1576, 0.6931472
        %v1578 = vadd.f32 %v1547, %v1573
        %v1579 = vadd.f32 %v1550, %v1575
        %v1580 = vadd.f32 %v1553, %v1577
        %v1581 = vsub.f32 %v1136, %v1578
        %v1582 = vsub.f32 %v1137, %v1579
        %v1583 = vsub.f32 %v1138, %v1580
        %v1584 = vadd.f32 %v1133, %v1581
        %v1585 = vadd.f32 %v1134, %v1582
        %v1586 = vadd.f32 %v1135, %v1583
        %v1587 = vsel %vm1143, %v1584, -inf
        %v1588 = vsel %vm1143, %v1585, -inf
        %v1589 = vsel %vm1150, %v1586, -inf
        %v1590 = vmax.f32 %v1587, %v1588
        %v1591 = vmax.f32 %v1590, %v1589
        %v1592 = vrot.slane %v1591, 4
        %v1593 = vmax.f32 %v1591, %v1592
        %v1594 = vrot.slane %v1593, 2
        %v1595 = vmax.f32 %v1593, %v1594
        %v1596 = vrot.slane %v1595, 1
        %v1597 = vmax.f32 %v1595, %v1596
        %v1598 = vsub.f32 %v1584, %v1597
        %v1599 = vsub.f32 %v1585, %v1597
        %v1600 = vsub.f32 %v1586, %v1597
        %v1601 = vmul.f32 %v1598, 1.442695
        %v1602 = vpow.pop %v1601
        %v1603 = vmul.f32 %v1599, 1.442695
        %v1604 = vpow.pop %v1603
        %v1605 = vmul.f32 %v1600, 1.442695
        %v1606 = vpow.pop %v1605
        %v1607 = vsel %vm1143, %v1602, 0.0
        %v1608 = vsel %vm1143, %v1604, 0.0
        %v1609 = vadd.f32 %v1607, %v1608
        %v1610 = vsel %vm1150, %v1606, 0.0
        %v1611 = vadd.f32 %v1609, %v1610
        %v1612 = vrot.slane %v1611, 4
        %v1613 = vadd.f32 %v1611, %v1612
        %v1614 = vrot.slane %v1613, 2
        %v1615 = vadd.f32 %v1613, %v1614
        %v1616 = vrot.slane %v1615, 1
        %v1617 = vadd.f32 %v1615, %v1616
        %v1618 = vlog2.pop %v1617
        %v1619 = vmul.f32 %v1618, 0.6931472
        %v1620 = vadd.f32 %v1597, %v1619
        %v1621 = vsub.f32 %v1139, %v1620
        %v1622 = vadd.f32 %v1133, %v1621
        %v1623 = vadd.f32 %v1134, %v1621
        %v1624 = vadd.f32 %v1135, %v1621
        %v1625 = vsel %vm1143, %v1622, -inf
        %1626 = vmax.xlane.f32.xlu0 %v1625
        %v1627 = vpop.xlane.xlu0 %1626
        %v1628 = vsel %vm1143, %v1623, -inf
        %1629 = vmax.xlane.f32.xlu0 %v1628
        %v1630 = vpop.xlane.xlu0 %1629
        %v1631 = vsel %vm1150, %v1624, -inf
        %1632 = vmax.xlane.f32.xlu0 %v1631
        %v1633 = vpop.xlane.xlu0 %1632
        %v1634 = vsub.f32 %v1622, %v1627
        %v1635 = vsub.f32 %v1623, %v1630
        %v1636 = vsub.f32 %v1624, %v1633
        %v1637 = vmul.f32 %v1634, 1.442695
        %v1638 = vpow.pop %v1637
        %v1639 = vmul.f32 %v1635, 1.442695
        %v1640 = vpow.pop %v1639
        %v1641 = vmul.f32 %v1636, 1.442695
        %v1642 = vpow.pop %v1641
        %v1643 = vsel %vm1143, %v1638, 0.0
        %1644 = vadd.xlane.f32.xlu0 %v1643
        %v1645 = vpop.xlane.xlu0 %1644
        %v1646 = vsel %vm1143, %v1640, 0.0
        %1647 = vadd.xlane.f32.xlu0 %v1646
        %v1648 = vpop.xlane.xlu0 %1647
        %v1649 = vsel %vm1150, %v1642, 0.0
        %1650 = vadd.xlane.f32.xlu0 %v1649
        %v1651 = vpop.xlane.xlu0 %1650
        %v1652 = vlog2.pop %v1645
        %v1653 = vmul.f32 %v1652, 0.6931472
        %v1654 = vlog2.pop %v1648
        %v1655 = vmul.f32 %v1654, 0.6931472
        %v1656 = vlog2.pop %v1651
        %v1657 = vmul.f32 %v1656, 0.6931472
        %v1658 = vadd.f32 %v1627, %v1653
        %v1659 = vadd.f32 %v1630, %v1655
        %v1660 = vadd.f32 %v1633, %v1657
        %v1661 = vsub.f32 %v1136, %v1658
        %v1662 = vsub.f32 %v1137, %v1659
        %v1663 = vsub.f32 %v1138, %v1660
        %v1664 = vadd.f32 %v1133, %v1661
        %v1665 = vadd.f32 %v1134, %v1662
        %v1666 = vadd.f32 %v1135, %v1663
        %v1667 = vsel %vm1143, %v1664, -inf
        %v1668 = vsel %vm1143, %v1665, -inf
        %v1669 = vsel %vm1150, %v1666, -inf
        %v1670 = vmax.f32 %v1667, %v1668
        %v1671 = vmax.f32 %v1670, %v1669
        %v1672 = vrot.slane %v1671, 4
        %v1673 = vmax.f32 %v1671, %v1672
        %v1674 = vrot.slane %v1673, 2
        %v1675 = vmax.f32 %v1673, %v1674
        %v1676 = vrot.slane %v1675, 1
        %v1677 = vmax.f32 %v1675, %v1676
        %v1678 = vsub.f32 %v1664, %v1677
        %v1679 = vsub.f32 %v1665, %v1677
        %v1680 = vsub.f32 %v1666, %v1677
        %v1681 = vmul.f32 %v1678, 1.442695
        %v1682 = vpow.pop %v1681
        %v1683 = vmul.f32 %v1679, 1.442695
        %v1684 = vpow.pop %v1683
        %v1685 = vmul.f32 %v1680, 1.442695
        %v1686 = vpow.pop %v1685
        %v1687 = vsel %vm1143, %v1682, 0.0
        %v1688 = vsel %vm1143, %v1684, 0.0
        %v1689 = vadd.f32 %v1687, %v1688
        %v1690 = vsel %vm1150, %v1686, 0.0
        %v1691 = vadd.f32 %v1689, %v1690
        %v1692 = vrot.slane %v1691, 4
        %v1693 = vadd.f32 %v1691, %v1692
        %v1694 = vrot.slane %v1693, 2
        %v1695 = vadd.f32 %v1693, %v1694
        %v1696 = vrot.slane %v1695, 1
        %v1697 = vadd.f32 %v1695, %v1696
        %v1698 = vlog2.pop %v1697
        %v1699 = vmul.f32 %v1698, 0.6931472
        %v1700 = vadd.f32 %v1677, %v1699
        %v1701 = vsub.f32 %v1139, %v1700
        %v1702 = vadd.f32 %v1133, %v1701
        %v1703 = vadd.f32 %v1134, %v1701
        %v1704 = vadd.f32 %v1135, %v1701
        %v1705 = vsel %vm1143, %v1702, -inf
        %1706 = vmax.xlane.f32.xlu0 %v1705
        %v1707 = vpop.xlane.xlu0 %1706
        %v1708 = vsel %vm1143, %v1703, -inf
        %1709 = vmax.xlane.f32.xlu0 %v1708
        %v1710 = vpop.xlane.xlu0 %1709
        %v1711 = vsel %vm1150, %v1704, -inf
        %1712 = vmax.xlane.f32.xlu0 %v1711
        %v1713 = vpop.xlane.xlu0 %1712
        %v1714 = vsub.f32 %v1702, %v1707
        %v1715 = vsub.f32 %v1703, %v1710
        %v1716 = vsub.f32 %v1704, %v1713
        %v1717 = vmul.f32 %v1714, 1.442695
        %v1718 = vpow.pop %v1717
        %v1719 = vmul.f32 %v1715, 1.442695
        %v1720 = vpow.pop %v1719
        %v1721 = vmul.f32 %v1716, 1.442695
        %v1722 = vpow.pop %v1721
        %v1723 = vsel %vm1143, %v1718, 0.0
        %1724 = vadd.xlane.f32.xlu0 %v1723
        %v1725 = vpop.xlane.xlu0 %1724
        %v1726 = vsel %vm1143, %v1720, 0.0
        %1727 = vadd.xlane.f32.xlu0 %v1726
        %v1728 = vpop.xlane.xlu0 %1727
        %v1729 = vsel %vm1150, %v1722, 0.0
        %1730 = vadd.xlane.f32.xlu0 %v1729
        %v1731 = vpop.xlane.xlu0 %1730
        %v1732 = vlog2.pop %v1725
        %v1733 = vmul.f32 %v1732, 0.6931472
        %v1734 = vlog2.pop %v1728
        %v1735 = vmul.f32 %v1734, 0.6931472
        %v1736 = vlog2.pop %v1731
        %v1737 = vmul.f32 %v1736, 0.6931472
        %v1738 = vadd.f32 %v1707, %v1733
        %v1739 = vadd.f32 %v1710, %v1735
        %v1740 = vadd.f32 %v1713, %v1737
        %v1741 = vsub.f32 %v1136, %v1738
        %v1742 = vsub.f32 %v1137, %v1739
        %v1743 = vsub.f32 %v1138, %v1740
        %v1744 = vadd.f32 %v1133, %v1741
        %v1745 = vadd.f32 %v1134, %v1742
        %v1746 = vadd.f32 %v1135, %v1743
        %v1747 = vsel %vm1143, %v1744, -inf
        %v1748 = vsel %vm1143, %v1745, -inf
        %v1749 = vsel %vm1150, %v1746, -inf
        %v1750 = vmax.f32 %v1747, %v1748
        %v1751 = vmax.f32 %v1750, %v1749
        %v1752 = vrot.slane %v1751, 4
        %v1753 = vmax.f32 %v1751, %v1752
        %v1754 = vrot.slane %v1753, 2
        %v1755 = vmax.f32 %v1753, %v1754
        %v1756 = vrot.slane %v1755, 1
        %v1757 = vmax.f32 %v1755, %v1756
        %v1758 = vsub.f32 %v1744, %v1757
        %v1759 = vsub.f32 %v1745, %v1757
        %v1760 = vsub.f32 %v1746, %v1757
        %v1761 = vmul.f32 %v1758, 1.442695
        %v1762 = vpow.pop %v1761
        %v1763 = vmul.f32 %v1759, 1.442695
        %v1764 = vpow.pop %v1763
        %v1765 = vmul.f32 %v1760, 1.442695
        %v1766 = vpow.pop %v1765
        %v1767 = vsel %vm1143, %v1762, 0.0
        %v1768 = vsel %vm1143, %v1764, 0.0
        %v1769 = vadd.f32 %v1767, %v1768
        %v1770 = vsel %vm1150, %v1766, 0.0
        %v1771 = vadd.f32 %v1769, %v1770
        %v1772 = vrot.slane %v1771, 4
        %v1773 = vadd.f32 %v1771, %v1772
        %v1774 = vrot.slane %v1773, 2
        %v1775 = vadd.f32 %v1773, %v1774
        %v1776 = vrot.slane %v1775, 1
        %v1777 = vadd.f32 %v1775, %v1776
        %v1778 = vlog2.pop %v1777
        %v1779 = vmul.f32 %v1778, 0.6931472
        %v1780 = vadd.f32 %v1757, %v1779
        %v1781 = vsub.f32 %v1139, %v1780
        %v1782 = vadd.f32 %v1133, %v1781
        %v1783 = vadd.f32 %v1134, %v1781
        %v1784 = vadd.f32 %v1135, %v1781
        %v1785 = vsel %vm1143, %v1782, -inf
        %1786 = vmax.xlane.f32.xlu0 %v1785
        %v1787 = vpop.xlane.xlu0 %1786
        %v1788 = vsel %vm1143, %v1783, -inf
        %1789 = vmax.xlane.f32.xlu0 %v1788
        %v1790 = vpop.xlane.xlu0 %1789
        %v1791 = vsel %vm1150, %v1784, -inf
        %1792 = vmax.xlane.f32.xlu0 %v1791
        %v1793 = vpop.xlane.xlu0 %1792
        %v1794 = vsub.f32 %v1782, %v1787
        %v1795 = vsub.f32 %v1783, %v1790
        %v1796 = vsub.f32 %v1784, %v1793
        %v1797 = vmul.f32 %v1794, 1.442695
        %v1798 = vpow.pop %v1797
        %v1799 = vmul.f32 %v1795, 1.442695
        %v1800 = vpow.pop %v1799
        %v1801 = vmul.f32 %v1796, 1.442695
        %v1802 = vpow.pop %v1801
        %v1803 = vsel %vm1143, %v1798, 0.0
        %1804 = vadd.xlane.f32.xlu0 %v1803
        %v1805 = vpop.xlane.xlu0 %1804
        %v1806 = vsel %vm1143, %v1800, 0.0
        %1807 = vadd.xlane.f32.xlu0 %v1806
        %v1808 = vpop.xlane.xlu0 %1807
        %v1809 = vsel %vm1150, %v1802, 0.0
        %1810 = vadd.xlane.f32.xlu0 %v1809
        %v1811 = vpop.xlane.xlu0 %1810
        %v1812 = vlog2.pop %v1805
        %v1813 = vmul.f32 %v1812, 0.6931472
        %v1814 = vlog2.pop %v1808
        %v1815 = vmul.f32 %v1814, 0.6931472
        %v1816 = vlog2.pop %v1811
        %v1817 = vmul.f32 %v1816, 0.6931472
        %v1818 = vadd.f32 %v1787, %v1813
        %v1819 = vadd.f32 %v1790, %v1815
        %v1820 = vadd.f32 %v1793, %v1817
        %v1821 = vsub.f32 %v1136, %v1818
        %v1822 = vsub.f32 %v1137, %v1819
        %v1823 = vsub.f32 %v1138, %v1820
        %v1824 = vadd.f32 %v1133, %v1821
        %v1825 = vadd.f32 %v1134, %v1822
        %v1826 = vadd.f32 %v1135, %v1823
        %v1827 = vsel %vm1143, %v1824, -inf
        %v1828 = vsel %vm1143, %v1825, -inf
        %v1829 = vsel %vm1150, %v1826, -inf
        %v1830 = vmax.f32 %v1827, %v1828
        %v1831 = vmax.f32 %v1830, %v1829
        %v1832 = vrot.slane %v1831, 4
        %v1833 = vmax.f32 %v1831, %v1832
        %v1834 = vrot.slane %v1833, 2
        %v1835 = vmax.f32 %v1833, %v1834
        %v1836 = vrot.slane %v1835, 1
        %v1837 = vmax.f32 %v1835, %v1836
        %v1838 = vsub.f32 %v1824, %v1837
        %v1839 = vsub.f32 %v1825, %v1837
        %v1840 = vsub.f32 %v1826, %v1837
        %v1841 = vmul.f32 %v1838, 1.442695
        %v1842 = vpow.pop %v1841
        %v1843 = vmul.f32 %v1839, 1.442695
        %v1844 = vpow.pop %v1843
        %v1845 = vmul.f32 %v1840, 1.442695
        %v1846 = vpow.pop %v1845
        %v1847 = vsel %vm1143, %v1842, 0.0
        %v1848 = vsel %vm1143, %v1844, 0.0
        %v1849 = vadd.f32 %v1847, %v1848
        %v1850 = vsel %vm1150, %v1846, 0.0
        %v1851 = vadd.f32 %v1849, %v1850
        %v1852 = vrot.slane %v1851, 4
        %v1853 = vadd.f32 %v1851, %v1852
        %v1854 = vrot.slane %v1853, 2
        %v1855 = vadd.f32 %v1853, %v1854
        %v1856 = vrot.slane %v1855, 1
        %v1857 = vadd.f32 %v1855, %v1856
        %v1858 = vlog2.pop %v1857
        %v1859 = vmul.f32 %v1858, 0.6931472
        %v1860 = vadd.f32 %v1837, %v1859
        %v1861 = vsub.f32 %v1139, %v1860
        %v1862 = vadd.f32 %v1133, %v1861
        %v1863 = vadd.f32 %v1134, %v1861
        %v1864 = vadd.f32 %v1135, %v1861
        %v1865 = vsel %vm1143, %v1862, -inf
        %1866 = vmax.xlane.f32.xlu0 %v1865
        %v1867 = vpop.xlane.xlu0 %1866
        %v1868 = vsel %vm1143, %v1863, -inf
        %1869 = vmax.xlane.f32.xlu0 %v1868
        %v1870 = vpop.xlane.xlu0 %1869
        %v1871 = vsel %vm1150, %v1864, -inf
        %1872 = vmax.xlane.f32.xlu0 %v1871
        %v1873 = vpop.xlane.xlu0 %1872
        %v1874 = vsub.f32 %v1862, %v1867
        %v1875 = vsub.f32 %v1863, %v1870
        %v1876 = vsub.f32 %v1864, %v1873
        %v1877 = vmul.f32 %v1874, 1.442695
        %v1878 = vpow.pop %v1877
        %v1879 = vmul.f32 %v1875, 1.442695
        %v1880 = vpow.pop %v1879
        %v1881 = vmul.f32 %v1876, 1.442695
        %v1882 = vpow.pop %v1881
        %v1883 = vsel %vm1143, %v1878, 0.0
        %1884 = vadd.xlane.f32.xlu0 %v1883
        %v1885 = vpop.xlane.xlu0 %1884
        %v1886 = vsel %vm1143, %v1880, 0.0
        %1887 = vadd.xlane.f32.xlu0 %v1886
        %v1888 = vpop.xlane.xlu0 %1887
        %v1889 = vsel %vm1150, %v1882, 0.0
        %1890 = vadd.xlane.f32.xlu0 %v1889
        %v1891 = vpop.xlane.xlu0 %1890
        %v1892 = vlog2.pop %v1885
        %v1893 = vmul.f32 %v1892, 0.6931472
        %v1894 = vlog2.pop %v1888
        %v1895 = vmul.f32 %v1894, 0.6931472
        %v1896 = vlog2.pop %v1891
        %v1897 = vmul.f32 %v1896, 0.6931472
        %v1898 = vadd.f32 %v1867, %v1893
        %v1899 = vadd.f32 %v1870, %v1895
        %v1900 = vadd.f32 %v1873, %v1897
        %v1901 = vsub.f32 %v1136, %v1898
        %v1902 = vsub.f32 %v1137, %v1899
        %v1903 = vsub.f32 %v1138, %v1900
        %v1904 = vadd.f32 %v1133, %v1901
        %v1905 = vadd.f32 %v1134, %v1902
        %v1906 = vadd.f32 %v1135, %v1903
        %v1907 = vsel %vm1143, %v1904, -inf
        %v1908 = vsel %vm1143, %v1905, -inf
        %v1909 = vsel %vm1150, %v1906, -inf
        %v1910 = vmax.f32 %v1907, %v1908
        %v1911 = vmax.f32 %v1910, %v1909
        %v1912 = vrot.slane %v1911, 4
        %v1913 = vmax.f32 %v1911, %v1912
        %v1914 = vrot.slane %v1913, 2
        %v1915 = vmax.f32 %v1913, %v1914
        %v1916 = vrot.slane %v1915, 1
        %v1917 = vmax.f32 %v1915, %v1916
        %v1918 = vsub.f32 %v1904, %v1917
        %v1919 = vsub.f32 %v1905, %v1917
        %v1920 = vsub.f32 %v1906, %v1917
        %v1921 = vmul.f32 %v1918, 1.442695
        %v1922 = vpow.pop %v1921
        %v1923 = vmul.f32 %v1919, 1.442695
        %v1924 = vpow.pop %v1923
        %v1925 = vmul.f32 %v1920, 1.442695
        %v1926 = vpow.pop %v1925
        %v1927 = vsel %vm1143, %v1922, 0.0
        %v1928 = vsel %vm1143, %v1924, 0.0
        %v1929 = vadd.f32 %v1927, %v1928
        %v1930 = vsel %vm1150, %v1926, 0.0
        %v1931 = vadd.f32 %v1929, %v1930
        %v1932 = vrot.slane %v1931, 4
        %v1933 = vadd.f32 %v1931, %v1932
        %v1934 = vrot.slane %v1933, 2
        %v1935 = vadd.f32 %v1933, %v1934
        %v1936 = vrot.slane %v1935, 1
        %v1937 = vadd.f32 %v1935, %v1936
        %v1938 = vlog2.pop %v1937
        %v1939 = vmul.f32 %v1938, 0.6931472
        %v1940 = vadd.f32 %v1917, %v1939
        %v1941 = vsub.f32 %v1139, %v1940
        %v1942 = vadd.f32 %v1133, %v1941
        %v1943 = vadd.f32 %v1134, %v1941
        %v1944 = vadd.f32 %v1135, %v1941
        %v1945 = vsel %vm1143, %v1942, -inf
        %1946 = vmax.xlane.f32.xlu0 %v1945
        %v1947 = vpop.xlane.xlu0 %1946
        %v1948 = vsel %vm1143, %v1943, -inf
        %1949 = vmax.xlane.f32.xlu0 %v1948
        %v1950 = vpop.xlane.xlu0 %1949
        %v1951 = vsel %vm1150, %v1944, -inf
        %1952 = vmax.xlane.f32.xlu0 %v1951
        %v1953 = vpop.xlane.xlu0 %1952
        %v1954 = vsub.f32 %v1942, %v1947
        %v1955 = vsub.f32 %v1943, %v1950
        %v1956 = vsub.f32 %v1944, %v1953
        %v1957 = vmul.f32 %v1954, 1.442695
        %v1958 = vpow.pop %v1957
        %v1959 = vmul.f32 %v1955, 1.442695
        %v1960 = vpow.pop %v1959
        %v1961 = vmul.f32 %v1956, 1.442695
        %v1962 = vpow.pop %v1961
        %v1963 = vsel %vm1143, %v1958, 0.0
        %1964 = vadd.xlane.f32.xlu0 %v1963
        %v1965 = vpop.xlane.xlu0 %1964
        %v1966 = vsel %vm1143, %v1960, 0.0
        %1967 = vadd.xlane.f32.xlu0 %v1966
        %v1968 = vpop.xlane.xlu0 %1967
        %v1969 = vsel %vm1150, %v1962, 0.0
        %1970 = vadd.xlane.f32.xlu0 %v1969
        %v1971 = vpop.xlane.xlu0 %1970
        %v1972 = vlog2.pop %v1965
        %v1973 = vmul.f32 %v1972, 0.6931472
        %v1974 = vlog2.pop %v1968
        %v1975 = vmul.f32 %v1974, 0.6931472
        %v1976 = vlog2.pop %v1971
        %v1977 = vmul.f32 %v1976, 0.6931472
        %v1978 = vadd.f32 %v1947, %v1973
        %v1979 = vadd.f32 %v1950, %v1975
        %v1980 = vadd.f32 %v1953, %v1977
        %v1981 = vsub.f32 %v1136, %v1978
        %v1982 = vsub.f32 %v1137, %v1979
        %v1983 = vsub.f32 %v1138, %v1980
        %v1984 = vadd.f32 %v1133, %v1981
        %v1985 = vadd.f32 %v1134, %v1982
        %v1986 = vadd.f32 %v1135, %v1983
        %v1987 = vsel %vm1143, %v1984, -inf
        %v1988 = vsel %vm1143, %v1985, -inf
        %v1989 = vsel %vm1150, %v1986, -inf
        %v1990 = vmax.f32 %v1987, %v1988
        %v1991 = vmax.f32 %v1990, %v1989
        %v1992 = vrot.slane %v1991, 4
        %v1993 = vmax.f32 %v1991, %v1992
        %v1994 = vrot.slane %v1993, 2
        %v1995 = vmax.f32 %v1993, %v1994
        %v1996 = vrot.slane %v1995, 1
        %v1997 = vmax.f32 %v1995, %v1996
        %v1998 = vsub.f32 %v1984, %v1997
        %v1999 = vsub.f32 %v1985, %v1997
        %v2000 = vsub.f32 %v1986, %v1997
        %v2001 = vmul.f32 %v1998, 1.442695
        %v2002 = vpow.pop %v2001
        %v2003 = vmul.f32 %v1999, 1.442695
        %v2004 = vpow.pop %v2003
        %v2005 = vmul.f32 %v2000, 1.442695
        %v2006 = vpow.pop %v2005
        %v2007 = vsel %vm1143, %v2002, 0.0
        %v2008 = vsel %vm1143, %v2004, 0.0
        %v2009 = vadd.f32 %v2007, %v2008
        %v2010 = vsel %vm1150, %v2006, 0.0
        %v2011 = vadd.f32 %v2009, %v2010
        %v2012 = vrot.slane %v2011, 4
        %v2013 = vadd.f32 %v2011, %v2012
        %v2014 = vrot.slane %v2013, 2
        %v2015 = vadd.f32 %v2013, %v2014
        %v2016 = vrot.slane %v2015, 1
        %v2017 = vadd.f32 %v2015, %v2016
        %v2018 = vlog2.pop %v2017
        %v2019 = vmul.f32 %v2018, 0.6931472
        %v2020 = vadd.f32 %v1997, %v2019
        %v2021 = vsub.f32 %v1139, %v2020
        %v2022 = vadd.f32 %v1133, %v2021
        %v2023 = vadd.f32 %v1134, %v2021
        %v2024 = vadd.f32 %v1135, %v2021
        %v2025 = vsel %vm1143, %v2022, -inf
        %2026 = vmax.xlane.f32.xlu0 %v2025
        %v2027 = vpop.xlane.xlu0 %2026
        %v2028 = vsel %vm1143, %v2023, -inf
        %2029 = vmax.xlane.f32.xlu0 %v2028
        %v2030 = vpop.xlane.xlu0 %2029
        %v2031 = vsel %vm1150, %v2024, -inf
        %2032 = vmax.xlane.f32.xlu0 %v2031
        %v2033 = vpop.xlane.xlu0 %2032
        %v2034 = vsub.f32 %v2022, %v2027
        %v2035 = vsub.f32 %v2023, %v2030
        %v2036 = vsub.f32 %v2024, %v2033
        %v2037 = vmul.f32 %v2034, 1.442695
        %v2038 = vpow.pop %v2037
        %v2039 = vmul.f32 %v2035, 1.442695
        %v2040 = vpow.pop %v2039
        %v2041 = vmul.f32 %v2036, 1.442695
        %v2042 = vpow.pop %v2041
        %v2043 = vsel %vm1143, %v2038, 0.0
        %2044 = vadd.xlane.f32.xlu0 %v2043
        %v2045 = vpop.xlane.xlu0 %2044
        %v2046 = vsel %vm1143, %v2040, 0.0
        %2047 = vadd.xlane.f32.xlu0 %v2046
        %v2048 = vpop.xlane.xlu0 %2047
        %v2049 = vsel %vm1150, %v2042, 0.0
        %2050 = vadd.xlane.f32.xlu0 %v2049
        %v2051 = vpop.xlane.xlu0 %2050
        %v2052 = vlog2.pop %v2045
        %v2053 = vmul.f32 %v2052, 0.6931472
        %v2054 = vlog2.pop %v2048
        %v2055 = vmul.f32 %v2054, 0.6931472
        %v2056 = vlog2.pop %v2051
        %v2057 = vmul.f32 %v2056, 0.6931472
        %v2058 = vadd.f32 %v2027, %v2053
        %v2059 = vadd.f32 %v2030, %v2055
        %v2060 = vadd.f32 %v2033, %v2057
        %v2061 = vsub.f32 %v1136, %v2058
        %v2062 = vsub.f32 %v1137, %v2059
        %v2063 = vsub.f32 %v1138, %v2060
        %v2064 = vadd.f32 %v1133, %v2061
        %v2065 = vadd.f32 %v1134, %v2062
        %v2066 = vadd.f32 %v1135, %v2063
        %v2067 = vsel %vm1143, %v2064, -inf
        %v2068 = vsel %vm1143, %v2065, -inf
        %v2069 = vsel %vm1150, %v2066, -inf
        %v2070 = vmax.f32 %v2067, %v2068
        %v2071 = vmax.f32 %v2070, %v2069
        %v2072 = vrot.slane %v2071, 4
        %v2073 = vmax.f32 %v2071, %v2072
        %v2074 = vrot.slane %v2073, 2
        %v2075 = vmax.f32 %v2073, %v2074
        %v2076 = vrot.slane %v2075, 1
        %v2077 = vmax.f32 %v2075, %v2076
        %v2078 = vsub.f32 %v2064, %v2077
        %v2079 = vsub.f32 %v2065, %v2077
        %v2080 = vsub.f32 %v2066, %v2077
        %v2081 = vmul.f32 %v2078, 1.442695
        %v2082 = vpow.pop %v2081
        %v2083 = vmul.f32 %v2079, 1.442695
        %v2084 = vpow.pop %v2083
        %v2085 = vmul.f32 %v2080, 1.442695
        %v2086 = vpow.pop %v2085
        %v2087 = vsel %vm1143, %v2082, 0.0
        %v2088 = vsel %vm1143, %v2084, 0.0
        %v2089 = vadd.f32 %v2087, %v2088
        %v2090 = vsel %vm1150, %v2086, 0.0
        %v2091 = vadd.f32 %v2089, %v2090
        %v2092 = vrot.slane %v2091, 4
        %v2093 = vadd.f32 %v2091, %v2092
        %v2094 = vrot.slane %v2093, 2
        %v2095 = vadd.f32 %v2093, %v2094
        %v2096 = vrot.slane %v2095, 1
        %v2097 = vadd.f32 %v2095, %v2096
        %v2098 = vlog2.pop %v2097
        %v2099 = vmul.f32 %v2098, 0.6931472
        %v2100 = vadd.f32 %v2077, %v2099
        %v2101 = vsub.f32 %v1139, %v2100
        %v2102 = vadd.f32 %v1133, %v2101
        %v2103 = vadd.f32 %v1134, %v2101
        %v2104 = vadd.f32 %v1135, %v2101
        %v2105 = vsel %vm1143, %v2102, -inf
        %2106 = vmax.xlane.f32.xlu0 %v2105
        %v2107 = vpop.xlane.xlu0 %2106
        %v2108 = vsel %vm1143, %v2103, -inf
        %2109 = vmax.xlane.f32.xlu0 %v2108
        %v2110 = vpop.xlane.xlu0 %2109
        %v2111 = vsel %vm1150, %v2104, -inf
        %2112 = vmax.xlane.f32.xlu0 %v2111
        %v2113 = vpop.xlane.xlu0 %2112
        %v2114 = vsub.f32 %v2102, %v2107
        %v2115 = vsub.f32 %v2103, %v2110
        %v2116 = vsub.f32 %v2104, %v2113
        %v2117 = vmul.f32 %v2114, 1.442695
        %v2118 = vpow.pop %v2117
        %v2119 = vmul.f32 %v2115, 1.442695
        %v2120 = vpow.pop %v2119
        %v2121 = vmul.f32 %v2116, 1.442695
        %v2122 = vpow.pop %v2121
        %v2123 = vsel %vm1143, %v2118, 0.0
        %2124 = vadd.xlane.f32.xlu0 %v2123
        %v2125 = vpop.xlane.xlu0 %2124
        %v2126 = vsel %vm1143, %v2120, 0.0
        %2127 = vadd.xlane.f32.xlu0 %v2126
        %v2128 = vpop.xlane.xlu0 %2127
        %v2129 = vsel %vm1150, %v2122, 0.0
        %2130 = vadd.xlane.f32.xlu0 %v2129
        %v2131 = vpop.xlane.xlu0 %2130
        %v2132 = vlog2.pop %v2125
        %v2133 = vmul.f32 %v2132, 0.6931472
        %v2134 = vlog2.pop %v2128
        %v2135 = vmul.f32 %v2134, 0.6931472
        %v2136 = vlog2.pop %v2131
        %v2137 = vmul.f32 %v2136, 0.6931472
        %v2138 = vadd.f32 %v2107, %v2133
        %v2139 = vadd.f32 %v2110, %v2135
        %v2140 = vadd.f32 %v2113, %v2137
        %v2141 = vsub.f32 %v1136, %v2138
        %v2142 = vsub.f32 %v1137, %v2139
        %v2143 = vsub.f32 %v1138, %v2140
        %v2144 = vadd.f32 %v1133, %v2141
        %v2145 = vadd.f32 %v1134, %v2142
        %v2146 = vadd.f32 %v1135, %v2143
        %v2147 = vsel %vm1143, %v2144, -inf
        %v2148 = vsel %vm1143, %v2145, -inf
        %v2149 = vsel %vm1150, %v2146, -inf
        %v2150 = vmax.f32 %v2147, %v2148
        %v2151 = vmax.f32 %v2150, %v2149
        %v2152 = vrot.slane %v2151, 4
        %v2153 = vmax.f32 %v2151, %v2152
        %v2154 = vrot.slane %v2153, 2
        %v2155 = vmax.f32 %v2153, %v2154
        %v2156 = vrot.slane %v2155, 1
        %v2157 = vmax.f32 %v2155, %v2156
        %v2158 = vsub.f32 %v2144, %v2157
        %v2159 = vsub.f32 %v2145, %v2157
        %v2160 = vsub.f32 %v2146, %v2157
        %v2161 = vmul.f32 %v2158, 1.442695
        %v2162 = vpow.pop %v2161
        %v2163 = vmul.f32 %v2159, 1.442695
        %v2164 = vpow.pop %v2163
        %v2165 = vmul.f32 %v2160, 1.442695
        %v2166 = vpow.pop %v2165
        %v2167 = vsel %vm1143, %v2162, 0.0
        %v2168 = vsel %vm1143, %v2164, 0.0
        %v2169 = vadd.f32 %v2167, %v2168
        %v2170 = vsel %vm1150, %v2166, 0.0
        %v2171 = vadd.f32 %v2169, %v2170
        %v2172 = vrot.slane %v2171, 4
        %v2173 = vadd.f32 %v2171, %v2172
        %v2174 = vrot.slane %v2173, 2
        %v2175 = vadd.f32 %v2173, %v2174
        %v2176 = vrot.slane %v2175, 1
        %v2177 = vadd.f32 %v2175, %v2176
        %v2178 = vlog2.pop %v2177
        %v2179 = vmul.f32 %v2178, 0.6931472
        %v2180 = vadd.f32 %v2157, %v2179
        %v2181 = vsub.f32 %v1139, %v2180
        %v2182 = vadd.f32 %v1133, %v2181
        %v2183 = vadd.f32 %v1134, %v2181
        %v2184 = vadd.f32 %v1135, %v2181
        %v2185 = vsel %vm1143, %v2182, -inf
        %2186 = vmax.xlane.f32.xlu0 %v2185
        %v2187 = vpop.xlane.xlu0 %2186
        %v2188 = vsel %vm1143, %v2183, -inf
        %2189 = vmax.xlane.f32.xlu0 %v2188
        %v2190 = vpop.xlane.xlu0 %2189
        %v2191 = vsel %vm1150, %v2184, -inf
        %2192 = vmax.xlane.f32.xlu0 %v2191
        %v2193 = vpop.xlane.xlu0 %2192
        %v2194 = vsub.f32 %v2182, %v2187
        %v2195 = vsub.f32 %v2183, %v2190
        %v2196 = vsub.f32 %v2184, %v2193
        %v2197 = vmul.f32 %v2194, 1.442695
        %v2198 = vpow.pop %v2197
        %v2199 = vmul.f32 %v2195, 1.442695
        %v2200 = vpow.pop %v2199
        %v2201 = vmul.f32 %v2196, 1.442695
        %v2202 = vpow.pop %v2201
        %v2203 = vsel %vm1143, %v2198, 0.0
        %2204 = vadd.xlane.f32.xlu0 %v2203
        %v2205 = vpop.xlane.xlu0 %2204
        %v2206 = vsel %vm1143, %v2200, 0.0
        %2207 = vadd.xlane.f32.xlu0 %v2206
        %v2208 = vpop.xlane.xlu0 %2207
        %v2209 = vsel %vm1150, %v2202, 0.0
        %2210 = vadd.xlane.f32.xlu0 %v2209
        %v2211 = vpop.xlane.xlu0 %2210
        %v2212 = vlog2.pop %v2205
        %v2213 = vmul.f32 %v2212, 0.6931472
        %v2214 = vlog2.pop %v2208
        %v2215 = vmul.f32 %v2214, 0.6931472
        %v2216 = vlog2.pop %v2211
        %v2217 = vmul.f32 %v2216, 0.6931472
        %v2218 = vadd.f32 %v2187, %v2213
        %v2219 = vadd.f32 %v2190, %v2215
        %v2220 = vadd.f32 %v2193, %v2217
        %v2221 = vsub.f32 %v1136, %v2218
        %v2222 = vsub.f32 %v1137, %v2219
        %v2223 = vsub.f32 %v1138, %v2220
        %v2224 = vadd.f32 %v1133, %v2221
        %v2225 = vadd.f32 %v1134, %v2222
        %v2226 = vadd.f32 %v1135, %v2223
        %v2227 = vsel %vm1143, %v2224, -inf
        %v2228 = vsel %vm1143, %v2225, -inf
        %v2229 = vsel %vm1150, %v2226, -inf
        %v2230 = vmax.f32 %v2227, %v2228
        %v2231 = vmax.f32 %v2230, %v2229
        %v2232 = vrot.slane %v2231, 4
        %v2233 = vmax.f32 %v2231, %v2232
        %v2234 = vrot.slane %v2233, 2
        %v2235 = vmax.f32 %v2233, %v2234
        %v2236 = vrot.slane %v2235, 1
        %v2237 = vmax.f32 %v2235, %v2236
        %v2238 = vsub.f32 %v2224, %v2237
        %v2239 = vsub.f32 %v2225, %v2237
        %v2240 = vsub.f32 %v2226, %v2237
        %v2241 = vmul.f32 %v2238, 1.442695
        %v2242 = vpow.pop %v2241
        %v2243 = vmul.f32 %v2239, 1.442695
        %v2244 = vpow.pop %v2243
        %v2245 = vmul.f32 %v2240, 1.442695
        %v2246 = vpow.pop %v2245
        %v2247 = vsel %vm1143, %v2242, 0.0
        %v2248 = vsel %vm1143, %v2244, 0.0
        %v2249 = vadd.f32 %v2247, %v2248
        %v2250 = vsel %vm1150, %v2246, 0.0
        %v2251 = vadd.f32 %v2249, %v2250
        %v2252 = vrot.slane %v2251, 4
        %v2253 = vadd.f32 %v2251, %v2252
        %v2254 = vrot.slane %v2253, 2
        %v2255 = vadd.f32 %v2253, %v2254
        %v2256 = vrot.slane %v2255, 1
        %v2257 = vadd.f32 %v2255, %v2256
        %v2258 = vlog2.pop %v2257
        %v2259 = vmul.f32 %v2258, 0.6931472
        %v2260 = vadd.f32 %v2237, %v2259
        %v2261 = vsub.f32 %v1139, %v2260
        %v2262 = vadd.f32 %v1133, %v2261
        %v2263 = vadd.f32 %v1134, %v2261
        %v2264 = vadd.f32 %v1135, %v2261
        %v2265 = vsel %vm1143, %v2262, -inf
        %2266 = vmax.xlane.f32.xlu0 %v2265
        %v2267 = vpop.xlane.xlu0 %2266
        %v2268 = vsel %vm1143, %v2263, -inf
        %2269 = vmax.xlane.f32.xlu0 %v2268
        %v2270 = vpop.xlane.xlu0 %2269
        %v2271 = vsel %vm1150, %v2264, -inf
        %2272 = vmax.xlane.f32.xlu0 %v2271
        %v2273 = vpop.xlane.xlu0 %2272
        %v2274 = vsub.f32 %v2262, %v2267
        %v2275 = vsub.f32 %v2263, %v2270
        %v2276 = vsub.f32 %v2264, %v2273
        %v2277 = vmul.f32 %v2274, 1.442695
        %v2278 = vpow.pop %v2277
        %v2279 = vmul.f32 %v2275, 1.442695
        %v2280 = vpow.pop %v2279
        %v2281 = vmul.f32 %v2276, 1.442695
        %v2282 = vpow.pop %v2281
        %v2283 = vsel %vm1143, %v2278, 0.0
        %2284 = vadd.xlane.f32.xlu0 %v2283
        %v2285 = vpop.xlane.xlu0 %2284
        %v2286 = vsel %vm1143, %v2280, 0.0
        %2287 = vadd.xlane.f32.xlu0 %v2286
        %v2288 = vpop.xlane.xlu0 %2287
        %v2289 = vsel %vm1150, %v2282, 0.0
        %2290 = vadd.xlane.f32.xlu0 %v2289
        %v2291 = vpop.xlane.xlu0 %2290
        %v2292 = vlog2.pop %v2285
        %v2293 = vmul.f32 %v2292, 0.6931472
        %v2294 = vlog2.pop %v2288
        %v2295 = vmul.f32 %v2294, 0.6931472
        %v2296 = vlog2.pop %v2291
        %v2297 = vmul.f32 %v2296, 0.6931472
        %v2298 = vadd.f32 %v2267, %v2293
        %v2299 = vadd.f32 %v2270, %v2295
        %v2300 = vadd.f32 %v2273, %v2297
        %v2301 = vsub.f32 %v1136, %v2298
        %v2302 = vsub.f32 %v1137, %v2299
        %v2303 = vsub.f32 %v1138, %v2300
        %v2304 = vadd.f32 %v1133, %v2301
        %v2305 = vadd.f32 %v1134, %v2302
        %v2306 = vadd.f32 %v1135, %v2303
        %v2307 = vsel %vm1143, %v2304, -inf
        %v2308 = vsel %vm1143, %v2305, -inf
        %v2309 = vsel %vm1150, %v2306, -inf
        %v2310 = vmax.f32 %v2307, %v2308
        %v2311 = vmax.f32 %v2310, %v2309
        %v2312 = vrot.slane %v2311, 4
        %v2313 = vmax.f32 %v2311, %v2312
        %v2314 = vrot.slane %v2313, 2
        %v2315 = vmax.f32 %v2313, %v2314
        %v2316 = vrot.slane %v2315, 1
        %v2317 = vmax.f32 %v2315, %v2316
        %v2318 = vsub.f32 %v2304, %v2317
        %v2319 = vsub.f32 %v2305, %v2317
        %v2320 = vsub.f32 %v2306, %v2317
        %v2321 = vmul.f32 %v2318, 1.442695
        %v2322 = vpow.pop %v2321
        %v2323 = vmul.f32 %v2319, 1.442695
        %v2324 = vpow.pop %v2323
        %v2325 = vmul.f32 %v2320, 1.442695
        %v2326 = vpow.pop %v2325
        %v2327 = vsel %vm1143, %v2322, 0.0
        %v2328 = vsel %vm1143, %v2324, 0.0
        %v2329 = vadd.f32 %v2327, %v2328
        %v2330 = vsel %vm1150, %v2326, 0.0
        %v2331 = vadd.f32 %v2329, %v2330
        %v2332 = vrot.slane %v2331, 4
        %v2333 = vadd.f32 %v2331, %v2332
        %v2334 = vrot.slane %v2333, 2
        %v2335 = vadd.f32 %v2333, %v2334
        %v2336 = vrot.slane %v2335, 1
        %v2337 = vadd.f32 %v2335, %v2336
        %v2338 = vlog2.pop %v2337
        %v2339 = vmul.f32 %v2338, 0.6931472
        %v2340 = vadd.f32 %v2317, %v2339
        %v2341 = vsub.f32 %v1139, %v2340
        %v2342 = vadd.f32 %v1133, %v2341
        %v2343 = vadd.f32 %v1134, %v2341
        %v2344 = vadd.f32 %v1135, %v2341
        %v2345 = vsel %vm1143, %v2342, -inf
        %2346 = vmax.xlane.f32.xlu0 %v2345
        %v2347 = vpop.xlane.xlu0 %2346
        %v2348 = vsel %vm1143, %v2343, -inf
        %2349 = vmax.xlane.f32.xlu0 %v2348
        %v2350 = vpop.xlane.xlu0 %2349
        %v2351 = vsel %vm1150, %v2344, -inf
        %2352 = vmax.xlane.f32.xlu0 %v2351
        %v2353 = vpop.xlane.xlu0 %2352
        %v2354 = vsub.f32 %v2342, %v2347
        %v2355 = vsub.f32 %v2343, %v2350
        %v2356 = vsub.f32 %v2344, %v2353
        %v2357 = vmul.f32 %v2354, 1.442695
        %v2358 = vpow.pop %v2357
        %v2359 = vmul.f32 %v2355, 1.442695
        %v2360 = vpow.pop %v2359
        %v2361 = vmul.f32 %v2356, 1.442695
        %v2362 = vpow.pop %v2361
        %v2363 = vsel %vm1143, %v2358, 0.0
        %2364 = vadd.xlane.f32.xlu0 %v2363
        %v2365 = vpop.xlane.xlu0 %2364
        %v2366 = vsel %vm1143, %v2360, 0.0
        %2367 = vadd.xlane.f32.xlu0 %v2366
        %v2368 = vpop.xlane.xlu0 %2367
        %v2369 = vsel %vm1150, %v2362, 0.0
        %2370 = vadd.xlane.f32.xlu0 %v2369
        %v2371 = vpop.xlane.xlu0 %2370
        %v2372 = vlog2.pop %v2365
        %v2373 = vmul.f32 %v2372, 0.6931472
        %v2374 = vlog2.pop %v2368
        %v2375 = vmul.f32 %v2374, 0.6931472
        %v2376 = vlog2.pop %v2371
        %v2377 = vmul.f32 %v2376, 0.6931472
        %v2378 = vadd.f32 %v2347, %v2373
        %v2379 = vadd.f32 %v2350, %v2375
        %v2380 = vadd.f32 %v2353, %v2377
        %v2381 = vsub.f32 %v1136, %v2378
        %v2382 = vsub.f32 %v1137, %v2379
        %v2383 = vsub.f32 %v1138, %v2380
        %v2384 = vadd.f32 %v1133, %v2381
        %v2385 = vadd.f32 %v1134, %v2382
        %v2386 = vadd.f32 %v1135, %v2383
        %v2387 = vsel %vm1143, %v2384, -inf
        %v2388 = vsel %vm1143, %v2385, -inf
        %v2389 = vsel %vm1150, %v2386, -inf
        %v2390 = vmax.f32 %v2387, %v2388
        %v2391 = vmax.f32 %v2390, %v2389
        %v2392 = vrot.slane %v2391, 4
        %v2393 = vmax.f32 %v2391, %v2392
        %v2394 = vrot.slane %v2393, 2
        %v2395 = vmax.f32 %v2393, %v2394
        %v2396 = vrot.slane %v2395, 1
        %v2397 = vmax.f32 %v2395, %v2396
        %v2398 = vsub.f32 %v2384, %v2397
        %v2399 = vsub.f32 %v2385, %v2397
        %v2400 = vsub.f32 %v2386, %v2397
        %v2401 = vmul.f32 %v2398, 1.442695
        %v2402 = vpow.pop %v2401
        %v2403 = vmul.f32 %v2399, 1.442695
        %v2404 = vpow.pop %v2403
        %v2405 = vmul.f32 %v2400, 1.442695
        %v2406 = vpow.pop %v2405
        %v2407 = vsel %vm1143, %v2402, 0.0
        %v2408 = vsel %vm1143, %v2404, 0.0
        %v2409 = vadd.f32 %v2407, %v2408
        %v2410 = vsel %vm1150, %v2406, 0.0
        %v2411 = vadd.f32 %v2409, %v2410
        %v2412 = vrot.slane %v2411, 4
        %v2413 = vadd.f32 %v2411, %v2412
        %v2414 = vrot.slane %v2413, 2
        %v2415 = vadd.f32 %v2413, %v2414
        %v2416 = vrot.slane %v2415, 1
        %v2417 = vadd.f32 %v2415, %v2416
        %v2418 = vlog2.pop %v2417
        %v2419 = vmul.f32 %v2418, 0.6931472
        %v2420 = vadd.f32 %v2397, %v2419
        %v2421 = vsub.f32 %v1139, %v2420
        %v2422 = vadd.f32 %v1133, %v2421
        %v2423 = vadd.f32 %v1134, %v2421
        %v2424 = vadd.f32 %v1135, %v2421
        %v2425 = vsel %vm1143, %v2422, -inf
        %2426 = vmax.xlane.f32.xlu0 %v2425
        %v2427 = vpop.xlane.xlu0 %2426
        %v2428 = vsel %vm1143, %v2423, -inf
        %2429 = vmax.xlane.f32.xlu0 %v2428
        %v2430 = vpop.xlane.xlu0 %2429
        %v2431 = vsel %vm1150, %v2424, -inf
        %2432 = vmax.xlane.f32.xlu0 %v2431
        %v2433 = vpop.xlane.xlu0 %2432
        %v2434 = vsub.f32 %v2422, %v2427
        %v2435 = vsub.f32 %v2423, %v2430
        %v2436 = vsub.f32 %v2424, %v2433
        %v2437 = vmul.f32 %v2434, 1.442695
        %v2438 = vpow.pop %v2437
        %v2439 = vmul.f32 %v2435, 1.442695
        %v2440 = vpow.pop %v2439
        %v2441 = vmul.f32 %v2436, 1.442695
        %v2442 = vpow.pop %v2441
        %v2443 = vsel %vm1143, %v2438, 0.0
        %2444 = vadd.xlane.f32.xlu0 %v2443
        %v2445 = vpop.xlane.xlu0 %2444
        %v2446 = vsel %vm1143, %v2440, 0.0
        %2447 = vadd.xlane.f32.xlu0 %v2446
        %v2448 = vpop.xlane.xlu0 %2447
        %v2449 = vsel %vm1150, %v2442, 0.0
        %2450 = vadd.xlane.f32.xlu0 %v2449
        %v2451 = vpop.xlane.xlu0 %2450
        %v2452 = vlog2.pop %v2445
        %v2453 = vmul.f32 %v2452, 0.6931472
        %v2454 = vlog2.pop %v2448
        %v2455 = vmul.f32 %v2454, 0.6931472
        %v2456 = vlog2.pop %v2451
        %v2457 = vmul.f32 %v2456, 0.6931472
        %v2458 = vadd.f32 %v2427, %v2453
        %v2459 = vadd.f32 %v2430, %v2455
        %v2460 = vadd.f32 %v2433, %v2457
        %v2461 = vsub.f32 %v1136, %v2458
        %v2462 = vsub.f32 %v1137, %v2459
        %v2463 = vsub.f32 %v1138, %v2460
        %v2464 = vadd.f32 %v1133, %v2461
        %v2465 = vadd.f32 %v1134, %v2462
        %v2466 = vadd.f32 %v1135, %v2463
        %v2467 = vsel %vm1143, %v2464, -inf
        %v2468 = vsel %vm1143, %v2465, -inf
        %v2469 = vsel %vm1150, %v2466, -inf
        %v2470 = vmax.f32 %v2467, %v2468
        %v2471 = vmax.f32 %v2470, %v2469
        %v2472 = vrot.slane %v2471, 4
        %v2473 = vmax.f32 %v2471, %v2472
        %v2474 = vrot.slane %v2473, 2
        %v2475 = vmax.f32 %v2473, %v2474
        %v2476 = vrot.slane %v2475, 1
        %v2477 = vmax.f32 %v2475, %v2476
        %v2478 = vsub.f32 %v2464, %v2477
        %v2479 = vsub.f32 %v2465, %v2477
        %v2480 = vsub.f32 %v2466, %v2477
        %v2481 = vmul.f32 %v2478, 1.442695
        %v2482 = vpow.pop %v2481
        %v2483 = vmul.f32 %v2479, 1.442695
        %v2484 = vpow.pop %v2483
        %v2485 = vmul.f32 %v2480, 1.442695
        %v2486 = vpow.pop %v2485
        %v2487 = vsel %vm1143, %v2482, 0.0
        %v2488 = vsel %vm1143, %v2484, 0.0
        %v2489 = vadd.f32 %v2487, %v2488
        %v2490 = vsel %vm1150, %v2486, 0.0
        %v2491 = vadd.f32 %v2489, %v2490
        %v2492 = vrot.slane %v2491, 4
        %v2493 = vadd.f32 %v2491, %v2492
        %v2494 = vrot.slane %v2493, 2
        %v2495 = vadd.f32 %v2493, %v2494
        %v2496 = vrot.slane %v2495, 1
        %v2497 = vadd.f32 %v2495, %v2496
        %v2498 = vlog2.pop %v2497
        %v2499 = vmul.f32 %v2498, 0.6931472
        %v2500 = vadd.f32 %v2477, %v2499
        %v2501 = vsub.f32 %v1139, %v2500
        %v2502 = vadd.f32 %v1133, %v2501
        %v2503 = vadd.f32 %v1134, %v2501
        %v2504 = vadd.f32 %v1135, %v2501
        %v2505 = vsel %vm1143, %v2502, -inf
        %2506 = vmax.xlane.f32.xlu0 %v2505
        %v2507 = vpop.xlane.xlu0 %2506
        %v2508 = vsel %vm1143, %v2503, -inf
        %2509 = vmax.xlane.f32.xlu0 %v2508
        %v2510 = vpop.xlane.xlu0 %2509
        %v2511 = vsel %vm1150, %v2504, -inf
        %2512 = vmax.xlane.f32.xlu0 %v2511
        %v2513 = vpop.xlane.xlu0 %2512
        %v2514 = vsub.f32 %v2502, %v2507
        %v2515 = vsub.f32 %v2503, %v2510
        %v2516 = vsub.f32 %v2504, %v2513
        %v2517 = vmul.f32 %v2514, 1.442695
        %v2518 = vpow.pop %v2517
        %v2519 = vmul.f32 %v2515, 1.442695
        %v2520 = vpow.pop %v2519
        %v2521 = vmul.f32 %v2516, 1.442695
        %v2522 = vpow.pop %v2521
        %v2523 = vsel %vm1143, %v2518, 0.0
        %2524 = vadd.xlane.f32.xlu0 %v2523
        %v2525 = vpop.xlane.xlu0 %2524
        %v2526 = vsel %vm1143, %v2520, 0.0
        %2527 = vadd.xlane.f32.xlu0 %v2526
        %v2528 = vpop.xlane.xlu0 %2527
        %v2529 = vsel %vm1150, %v2522, 0.0
        %2530 = vadd.xlane.f32.xlu0 %v2529
        %v2531 = vpop.xlane.xlu0 %2530
        %v2532 = vlog2.pop %v2525
        %v2533 = vmul.f32 %v2532, 0.6931472
        %v2534 = vlog2.pop %v2528
        %v2535 = vmul.f32 %v2534, 0.6931472
        %v2536 = vlog2.pop %v2531
        %v2537 = vmul.f32 %v2536, 0.6931472
        %v2538 = vadd.f32 %v2507, %v2533
        %v2539 = vadd.f32 %v2510, %v2535
        %v2540 = vadd.f32 %v2513, %v2537
        %v2541 = vsub.f32 %v1136, %v2538
        %v2542 = vsub.f32 %v1137, %v2539
        %v2543 = vsub.f32 %v1138, %v2540
        %v2544 = vadd.f32 %v1133, %v2541
        %v2545 = vadd.f32 %v1134, %v2542
        %v2546 = vadd.f32 %v1135, %v2543
        %v2547 = vsel %vm1143, %v2544, -inf
        %v2548 = vsel %vm1143, %v2545, -inf
        %v2549 = vsel %vm1150, %v2546, -inf
        %v2550 = vmax.f32 %v2547, %v2548
        %v2551 = vmax.f32 %v2550, %v2549
        %v2552 = vrot.slane %v2551, 4
        %v2553 = vmax.f32 %v2551, %v2552
        %v2554 = vrot.slane %v2553, 2
        %v2555 = vmax.f32 %v2553, %v2554
        %v2556 = vrot.slane %v2555, 1
        %v2557 = vmax.f32 %v2555, %v2556
        %v2558 = vsub.f32 %v2544, %v2557
        %v2559 = vsub.f32 %v2545, %v2557
        %v2560 = vsub.f32 %v2546, %v2557
        %v2561 = vmul.f32 %v2558, 1.442695
        %v2562 = vpow.pop %v2561
        %v2563 = vmul.f32 %v2559, 1.442695
        %v2564 = vpow.pop %v2563
        %v2565 = vmul.f32 %v2560, 1.442695
        %v2566 = vpow.pop %v2565
        %v2567 = vsel %vm1143, %v2562, 0.0
        %v2568 = vsel %vm1143, %v2564, 0.0
        %v2569 = vadd.f32 %v2567, %v2568
        %v2570 = vsel %vm1150, %v2566, 0.0
        %v2571 = vadd.f32 %v2569, %v2570
        %v2572 = vrot.slane %v2571, 4
        %v2573 = vadd.f32 %v2571, %v2572
        %v2574 = vrot.slane %v2573, 2
        %v2575 = vadd.f32 %v2573, %v2574
        %v2576 = vrot.slane %v2575, 1
        %v2577 = vadd.f32 %v2575, %v2576
        %v2578 = vlog2.pop %v2577
        %v2579 = vmul.f32 %v2578, 0.6931472
        %v2580 = vadd.f32 %v2557, %v2579
        %v2581 = vsub.f32 %v1139, %v2580
        %v2582 = vadd.f32 %v1133, %v2581
        %v2583 = vadd.f32 %v1134, %v2581
        %v2584 = vadd.f32 %v1135, %v2581
        %v2585 = vsel %vm1143, %v2582, -inf
        %2586 = vmax.xlane.f32.xlu0 %v2585
        %v2587 = vpop.xlane.xlu0 %2586
        %v2588 = vsel %vm1143, %v2583, -inf
        %2589 = vmax.xlane.f32.xlu0 %v2588
        %v2590 = vpop.xlane.xlu0 %2589
        %v2591 = vsel %vm1150, %v2584, -inf
        %2592 = vmax.xlane.f32.xlu0 %v2591
        %v2593 = vpop.xlane.xlu0 %2592
        %v2594 = vsub.f32 %v2582, %v2587
        %v2595 = vsub.f32 %v2583, %v2590
        %v2596 = vsub.f32 %v2584, %v2593
        %v2597 = vmul.f32 %v2594, 1.442695
        %v2598 = vpow.pop %v2597
        %v2599 = vmul.f32 %v2595, 1.442695
        %v2600 = vpow.pop %v2599
        %v2601 = vmul.f32 %v2596, 1.442695
        %v2602 = vpow.pop %v2601
        %v2603 = vsel %vm1143, %v2598, 0.0
        %2604 = vadd.xlane.f32.xlu0 %v2603
        %v2605 = vpop.xlane.xlu0 %2604
        %v2606 = vsel %vm1143, %v2600, 0.0
        %2607 = vadd.xlane.f32.xlu0 %v2606
        %v2608 = vpop.xlane.xlu0 %2607
        %v2609 = vsel %vm1150, %v2602, 0.0
        %2610 = vadd.xlane.f32.xlu0 %v2609
        %v2611 = vpop.xlane.xlu0 %2610
        %v2612 = vlog2.pop %v2605
        %v2613 = vmul.f32 %v2612, 0.6931472
        %v2614 = vlog2.pop %v2608
        %v2615 = vmul.f32 %v2614, 0.6931472
        %v2616 = vlog2.pop %v2611
        %v2617 = vmul.f32 %v2616, 0.6931472
        %v2618 = vadd.f32 %v2587, %v2613
        %v2619 = vadd.f32 %v2590, %v2615
        %v2620 = vadd.f32 %v2593, %v2617
        %v2621 = vsub.f32 %v1136, %v2618
        %v2622 = vsub.f32 %v1137, %v2619
        %v2623 = vsub.f32 %v1138, %v2620
        %v2624 = vadd.f32 %v1133, %v2621
        %v2625 = vadd.f32 %v1134, %v2622
        %v2626 = vadd.f32 %v1135, %v2623
        %v2627 = vsel %vm1143, %v2624, -inf
        %v2628 = vsel %vm1143, %v2625, -inf
        %v2629 = vsel %vm1150, %v2626, -inf
        %v2630 = vmax.f32 %v2627, %v2628
        %v2631 = vmax.f32 %v2630, %v2629
        %v2632 = vrot.slane %v2631, 4
        %v2633 = vmax.f32 %v2631, %v2632
        %v2634 = vrot.slane %v2633, 2
        %v2635 = vmax.f32 %v2633, %v2634
        %v2636 = vrot.slane %v2635, 1
        %v2637 = vmax.f32 %v2635, %v2636
        %v2638 = vsub.f32 %v2624, %v2637
        %v2639 = vsub.f32 %v2625, %v2637
        %v2640 = vsub.f32 %v2626, %v2637
        %v2641 = vmul.f32 %v2638, 1.442695
        %v2642 = vpow.pop %v2641
        %v2643 = vmul.f32 %v2639, 1.442695
        %v2644 = vpow.pop %v2643
        %v2645 = vmul.f32 %v2640, 1.442695
        %v2646 = vpow.pop %v2645
        %v2647 = vsel %vm1143, %v2642, 0.0
        %v2648 = vsel %vm1143, %v2644, 0.0
        %v2649 = vadd.f32 %v2647, %v2648
        %v2650 = vsel %vm1150, %v2646, 0.0
        %v2651 = vadd.f32 %v2649, %v2650
        %v2652 = vrot.slane %v2651, 4
        %v2653 = vadd.f32 %v2651, %v2652
        %v2654 = vrot.slane %v2653, 2
        %v2655 = vadd.f32 %v2653, %v2654
        %v2656 = vrot.slane %v2655, 1
        %v2657 = vadd.f32 %v2655, %v2656
        %v2658 = vlog2.pop %v2657
        %v2659 = vmul.f32 %v2658, 0.6931472
        %v2660 = vadd.f32 %v2637, %v2659
        %v2661 = vsub.f32 %v1139, %v2660
        %v2662 = vadd.f32 %v1133, %v2661
        %v2663 = vadd.f32 %v1134, %v2661
        %v2664 = vadd.f32 %v1135, %v2661
        %v2665 = vsel %vm1143, %v2662, -inf
        %2666 = vmax.xlane.f32.xlu0 %v2665
        %v2667 = vpop.xlane.xlu0 %2666
        %v2668 = vsel %vm1143, %v2663, -inf
        %2669 = vmax.xlane.f32.xlu0 %v2668
        %v2670 = vpop.xlane.xlu0 %2669
        %v2671 = vsel %vm1150, %v2664, -inf
        %2672 = vmax.xlane.f32.xlu0 %v2671
        %v2673 = vpop.xlane.xlu0 %2672
        %v2674 = vsub.f32 %v2662, %v2667
        %v2675 = vsub.f32 %v2663, %v2670
        %v2676 = vsub.f32 %v2664, %v2673
        %v2677 = vmul.f32 %v2674, 1.442695
        %v2678 = vpow.pop %v2677
        %v2679 = vmul.f32 %v2675, 1.442695
        %v2680 = vpow.pop %v2679
        %v2681 = vmul.f32 %v2676, 1.442695
        %v2682 = vpow.pop %v2681
        %v2683 = vsel %vm1143, %v2678, 0.0
        %2684 = vadd.xlane.f32.xlu0 %v2683
        %v2685 = vpop.xlane.xlu0 %2684
        %v2686 = vsel %vm1143, %v2680, 0.0
        %2687 = vadd.xlane.f32.xlu0 %v2686
        %v2688 = vpop.xlane.xlu0 %2687
        %v2689 = vsel %vm1150, %v2682, 0.0
        %2690 = vadd.xlane.f32.xlu0 %v2689
        %v2691 = vpop.xlane.xlu0 %2690
        %v2692 = vlog2.pop %v2685
        %v2693 = vmul.f32 %v2692, 0.6931472
        %v2694 = vlog2.pop %v2688
        %v2695 = vmul.f32 %v2694, 0.6931472
        %v2696 = vlog2.pop %v2691
        %v2697 = vmul.f32 %v2696, 0.6931472
        %v2698 = vadd.f32 %v2667, %v2693
        %v2699 = vadd.f32 %v2670, %v2695
        %v2700 = vadd.f32 %v2673, %v2697
        %v2701 = vsub.f32 %v1136, %v2698
        %v2702 = vsub.f32 %v1137, %v2699
        %v2703 = vsub.f32 %v1138, %v2700
        %v2704 = vadd.f32 %v1133, %v2701
        %v2705 = vadd.f32 %v1134, %v2702
        %v2706 = vadd.f32 %v1135, %v2703
        %v2707 = vsel %vm1143, %v2704, -inf
        %v2708 = vsel %vm1143, %v2705, -inf
        %v2709 = vsel %vm1150, %v2706, -inf
        %v2710 = vmax.f32 %v2707, %v2708
        %v2711 = vmax.f32 %v2710, %v2709
        %v2712 = vrot.slane %v2711, 4
        %v2713 = vmax.f32 %v2711, %v2712
        %v2714 = vrot.slane %v2713, 2
        %v2715 = vmax.f32 %v2713, %v2714
        %v2716 = vrot.slane %v2715, 1
        %v2717 = vmax.f32 %v2715, %v2716
        %v2718 = vsub.f32 %v2704, %v2717
        %v2719 = vsub.f32 %v2705, %v2717
        %v2720 = vsub.f32 %v2706, %v2717
        %v2721 = vmul.f32 %v2718, 1.442695
        %v2722 = vpow.pop %v2721
        %v2723 = vmul.f32 %v2719, 1.442695
        %v2724 = vpow.pop %v2723
        %v2725 = vmul.f32 %v2720, 1.442695
        %v2726 = vpow.pop %v2725
        %v2727 = vsel %vm1143, %v2722, 0.0
        %v2728 = vsel %vm1143, %v2724, 0.0
        %v2729 = vadd.f32 %v2727, %v2728
        %v2730 = vsel %vm1150, %v2726, 0.0
        %v2731 = vadd.f32 %v2729, %v2730
        %v2732 = vrot.slane %v2731, 4
        %v2733 = vadd.f32 %v2731, %v2732
        %v2734 = vrot.slane %v2733, 2
        %v2735 = vadd.f32 %v2733, %v2734
        %v2736 = vrot.slane %v2735, 1
        %v2737 = vadd.f32 %v2735, %v2736
        %v2738 = vlog2.pop %v2737
        %v2739 = vmul.f32 %v2738, 0.6931472
        %v2740 = vadd.f32 %v2717, %v2739
        %v2741 = vsub.f32 %v1139, %v2740
        %v2742 = vadd.f32 %v2704, %v2741
        %v2743 = vadd.f32 %v2705, %v2741
        %v2744 = vadd.f32 %v2706, %v2741
        %v2745 = vsub.f32 %v2742, -3.583519
        %v2746 = vsub.f32 %v2743, -3.583519
        %v2747 = vsub.f32 %v2744, -3.583519
        %v2748 = vsel %vm1143, %v2745, -inf
        %2749 = vmax.xlane.f32.xlu0 %v2748
        %v2750 = vpop.xlane.xlu0 %2749
        %v2751 = vsel %vm1143, %v2746, -inf
        %2752 = vmax.xlane.f32.xlu0 %v2751
        %v2753 = vpop.xlane.xlu0 %2752
        %v2754 = vsel %vm1150, %v2747, -inf
        %2755 = vmax.xlane.f32.xlu0 %v2754
        %v2756 = vpop.xlane.xlu0 %2755
        %v2757 = vsub.f32 %v2745, %v2750
        %v2758 = vsub.f32 %v2746, %v2753
        %v2759 = vsub.f32 %v2747, %v2756
        %v2760 = vmul.f32 %v2757, 1.442695
        %v2761 = vpow.pop %v2760
        %v2762 = vmul.f32 %v2758, 1.442695
        %v2763 = vpow.pop %v2762
        %v2764 = vmul.f32 %v2759, 1.442695
        %v2765 = vpow.pop %v2764
        %v2766 = vsel %vm1143, %v2761, 0.0
        %2767 = vadd.xlane.f32.xlu0 %v2766
        %v2768 = vpop.xlane.xlu0 %2767
        %v2769 = vsel %vm1143, %v2763, 0.0
        %2770 = vadd.xlane.f32.xlu0 %v2769
        %v2771 = vpop.xlane.xlu0 %2770
        %v2772 = vsel %vm1150, %v2765, 0.0
        %2773 = vadd.xlane.f32.xlu0 %v2772
        %v2774 = vpop.xlane.xlu0 %2773
        %v2775 = vrcp.pop %v2768
        %v2776 = vrcp.pop %v2771
        %v2777 = vrcp.pop %v2774
        %v2778 = vmul.f32 %v2761, %v2775
        %v2779 = vmul.f32 %v2763, %v2776
        %v2780 = vmul.f32 %v2765, %v2777
        %2781 = vst [vmem:[%s258] sm:$0xff] 0.0
        %2782 = vst [vmem:[%s258 + $0x8] sm:$0xff] 0.0
        %2783 = vst [vmem:[%s258 + $0x10] sm:$0x1] 0.0
        %2784 = vst.msk [vmem:[%s258] sm:$0xff] %vm1143, %v2778
        %2785 = vst.msk [vmem:[%s258 + $0x8] sm:$0xff] %vm1143, %v2779
        %2786 = vst.msk [vmem:[%s258 + $0x10] sm:$0x1] %vm1150, %v2780
        %p2787 = scmp.lt.s32.totalorder %s18, 1
        %s2788 = scalar_select %p2787, %s18, 1
        %s2789 = smul.addr %s2788, 3
        %s2790 = smul.addr %s2789, 8
        %s2791 = scalar_lea.vmem %s5, %s2790
        // Predicated region
        $region49: #{tpu_custom_call.1} parent=39 // pred_check
          %p2792 = pneg %p146
        $region50: #{tpu_custom_call.1} parent=39 // pred_check_branch
          %2794 = sbr.rel (%p2792) target = $region52
        $region51: #{tpu_custom_call.1} parent=39 // pred_region
          _
        $region52: #{tpu_custom_call.1} parent=39 // pred_fallthru
          _
      $region40: #{tpu_custom_call.1} parent=5 // pred_fallthru
        _
      %p2795 = scmp.le.s32.totalorder 2, %s13
      // Predicated region
      $region53: #{tpu_custom_call.1} parent=5 // pred_check
        %p2796 = pneg %p2795
      $region54: #{tpu_custom_call.1} parent=5 // pred_check_branch
        %2798 = sbr.rel (%p2796) target = $region56
      $region55: #{tpu_custom_call.1} parent=5 // pred_region
        %s2799 = ssub.s32 %s13, 2
        // Predicated region
        $region57: #{tpu_custom_call.1} parent=55 // pred_check
          %p2800 = pneg %p152
        $region58: #{tpu_custom_call.1} parent=55 // pred_check_branch
          %2802 = sbr.rel (%p2800) target = $region60
        $region59: #{tpu_custom_call.1} parent=55 // pred_region
          %p2803 = scmp.lt.s32.totalorder %s19, 1
          %s2804 = scalar_select %p2803, %s19, 1
          %s2805 = smul.addr %s2804, 3
          %s2806 = smul.addr %s2805, 8
          %s2807 = scalar_lea.vmem %s5, %s2806
        $region60: #{tpu_custom_call.1} parent=55 // pred_fallthru
          _
      $region56: #{tpu_custom_call.1} parent=5 // pred_fallthru
        _
    $region6: #{tpu_custom_call.1} parent=1 // loop_footer
      %s17 = sadd.s32 1, %s13
    $region7: #{tpu_custom_call.1} parent=1 // loop_footer_branch
      %12 = sbr.rel target = $region3
    $region8: #{tpu_custom_call.1} parent=1 // loop_exit
      _
    %2808 = vsyncpa [#allocation3], 1
    %s2809 = scalar_lea.sflag [#allocation3], 1
    %2810 = vsyncpa %s2809, 1
    %2811 = vsyncpa [#allocation5], 1

</llo_original>
